<compile_context>
chip_gen: v6e
topology: v6e:2x2x1
jax: 0.10.0
libtpu: 0.0.40
codegen_flags: <defaults>
</compile_context>

<pallas_src>
import functools

import jax
import jax.numpy as jnp
from jax import lax
from jax.experimental import pallas as pl
from jax.experimental.pallas import tpu as pltpu

H_PAD = 128     # lane-padded hidden width (vreg/MXU lane count)
OUT_PAD = 128   # lane-padded readout width (lane-dense output store)


def _round_up(v, m):
    return (v + m - 1) // m * m


def _silu(x):
    return x * jax.nn.sigmoid(x)


# ----------------------------- fused Pallas kernel -----------------------------

def mpnn_fused_kernel(
    # node / edge operands
    x_ref, pe_ref, dist_ref, S_ref, R_ref, pool_ref,
    # embed (concat([x, pe]) folded into split weights)
    w_ex_ref, w_ep_ref, b_e_ref,
    # per-layer weights (leading [L] axis squeezed away by the BlockSpec)
    w1s_ref, w1r_ref, w1d_ref, b1_ref, w2_ref, b2_ref,
    w3x_ref, w3a_ref, b3_ref, w4_ref, b4_ref,
    # readout
    wp1_ref, bp1_ref, wp2_ref, bp2_ref, wr1_ref, br1_ref, wr2_ref, br2_ref,
    # output
    out_ref,
    # VMEM scratch (persist across the whole grid)
    h_ref, aggr_ref,
):
    f32 = jnp.float32
    bf16 = jnp.bfloat16
    l = pl.program_id(0)
    e = pl.program_id(1)
    last_l = pl.num_programs(0) - 1
    last_e = pl.num_programs(1) - 1

    # --- once: h = embed(cat([x, pe])) with the concat folded into split weights ---
    @pl.when(jnp.logical_and(l == 0, e == 0))
    def _embed():
        h_ref[...] = (
            jnp.dot(x_ref[...], w_ex_ref[...], preferred_element_type=f32)
            + jnp.dot(pe_ref[...], w_ep_ref[...], preferred_element_type=f32)
            + b_e_ref[...]
        )

    # --- start of each layer: reset the scatter accumulator ---
    @pl.when(e == 0)
    def _zero_aggr():
        aggr_ref[...] = jnp.zeros_like(aggr_ref)

    # --- every (layer, edge-tile): gather -> message MLP -> scatter-add ---
    h_b = h_ref[...].astype(bf16)                                   # bf16 only at the one-hot matmul input
    xs = jnp.dot(S_ref[...], h_b, preferred_element_type=f32)       # h[send]  [Et, H]
    xr = jnp.dot(R_ref[...], h_b, preferred_element_type=f32)       # h[rec]   [Et, H]

    # message_mlp(cat([h[send], h[rec], dist])) with the concat folded into split weights
    m = (
        jnp.dot(xs, w1s_ref[...], preferred_element_type=f32)
        + jnp.dot(xr, w1r_ref[...], preferred_element_type=f32)
        + dist_ref[...] * w1d_ref[...]
        + b1_ref[...]
    )
    m = _silu(m)
    msg = _silu(jnp.dot(m, w2_ref[...], preferred_element_type=f32) + b2_ref[...])

    # scatter_add(msg, rec): contract the edge axis of R directly (no R^T materialised);
    # accumulation stays in f32 in the VMEM scratch.
    aggr_ref[...] += lax.dot_general(
        R_ref[...], msg.astype(bf16),
        dimension_numbers=(((0,), (0,)), ((), ())),
        preferred_element_type=f32,
    )

    # --- end of layer: update MLP + residual (h stays f32) ---
    @pl.when(e == last_e)
    def _update():
        h = h_ref[...]
        u = _silu(
            jnp.dot(h, w3x_ref[...], preferred_element_type=f32)
            + jnp.dot(aggr_ref[...], w3a_ref[...], preferred_element_type=f32)
            + b3_ref[...]
        )
        h_ref[...] = h + jnp.dot(u, w4_ref[...], preferred_element_type=f32) + b4_ref[...]

    # --- after the last layer: pre_readout -> global_add_pool -> readout ---
    @pl.when(jnp.logical_and(l == last_l, e == last_e))
    def _readout():
        h = h_ref[...]
        t = _silu(jnp.dot(h, wp1_ref[...], preferred_element_type=f32) + bp1_ref[...])
        t = jnp.dot(t, wp2_ref[...], preferred_element_type=f32) + bp2_ref[...]
        pooled = jnp.dot(pool_ref[...], t, preferred_element_type=f32)          # [G, H]
        r = _silu(jnp.dot(pooled, wr1_ref[...], preferred_element_type=f32) + br1_ref[...])
        out_ref[...] = jnp.dot(r, wr2_ref[...], preferred_element_type=f32) + br2_ref[...]


# ----------------------------- wrapper -----------------------------

def mpnn_forward(kp, x, pos, pe, send, rec, batch, *, n_graphs, out_channels, e_tile=512):
    """Full MPNN forward in a single fused pallas_call."""
    f32, bf16 = jnp.float32, jnp.bfloat16
    N, C = x.shape
    PE = pe.shape[1]
    E = send.shape[0]
    L = kp["w1s"].shape[0]
    HP = kp["w1s"].shape[1]
    OP = kp["wr2"].shape[1]
    G = n_graphs

    # pad node rows to a sublane multiple and edge rows to whole tiles
    n_pad = _round_up(N, 8)
    e_tile = _round_up(max(8, min(e_tile, _round_up(E, 8))), 8)
    e_pad = _round_up(E, e_tile)
    n_et = e_pad // e_tile

    x_p = jnp.zeros((n_pad, C), f32).at[:N].set(x)
    pe_p = jnp.zeros((n_pad, PE), f32).at[:N].set(pe)

    # dist is identical in every layer -> hoisted and computed once (removes the per-layer
    # pos gathers from the kernel).  Forward-exact; add an eps before sqrt if a VJP over
    # zero-length edges is ever needed.
    dist = jnp.sqrt(jnp.sum((pos[send] - pos[rec]) ** 2, axis=1, keepdims=True))
    dist_p = jnp.zeros((e_pad, 1), f32).at[:E].set(dist)

    # one-hot gather / scatter / pool operators in bf16 (0/1 exact); padded edge / node
    # slots get all-zero rows/columns so they contribute nothing.
    node_ids = jnp.arange(n_pad, dtype=jnp.int32)
    send_p = jnp.full((e_pad,), -1, jnp.int32).at[:E].set(send)
    rec_p = jnp.full((e_pad,), -1, jnp.int32).at[:E].set(rec)
    batch_p = jnp.full((n_pad,), -1, jnp.int32).at[:N].set(batch)
    S = (send_p[:, None] == node_ids[None, :]).astype(bf16)        # [Ep, Np]
    R = (rec_p[:, None] == node_ids[None, :]).astype(bf16)         # [Ep, Np]
    pool = (jnp.arange(G, dtype=jnp.int32)[:, None] == batch_p[None, :]).astype(bf16)

    def c2(shape):   # full-array block, constant index -> stays resident in VMEM
        return pl.BlockSpec(shape, lambda l, e: (0, 0))

    def et(shape):   # edge-tiled block
        return pl.BlockSpec(shape, lambda l, e: (e, 0))

    def lw(shape):   # per-layer stacked weight, leading layer axis squeezed out
        return pl.BlockSpec((None,) + shape, lambda l, e: (l, 0, 0))

    in_specs = [
        c2((n_pad, C)), c2((n_pad, PE)),
        et((e_tile, 1)), et((e_tile, n_pad)), et((e_tile, n_pad)),
        c2((G, n_pad)),
        c2((C, HP)), c2((PE, HP)), c2((1, HP)),
        lw((HP, HP)), lw((HP, HP)), lw((1, HP)), lw((1, HP)),
        lw((HP, HP)), lw((1, HP)),
        lw((HP, HP)), lw((HP, HP)), lw((1, HP)),
        lw((HP, HP)), lw((1, HP)),
        c2((HP, HP)), c2((1, HP)), c2((HP, HP)), c2((1, HP)),
        c2((HP, HP)), c2((1, HP)), c2((HP, OP)), c2((1, OP)),
    ]
    out_spec = pl.BlockSpec((G, OP), lambda l, e: (0, 0))

    operands = [
        x_p, pe_p, dist_p, S, R, pool,
        kp["w_ex"], kp["w_ep"], kp["b_e"],
        kp["w1s"], kp["w1r"], kp["w1d"], kp["b1"], kp["w2"], kp["b2"],
        kp["w3x"], kp["w3a"], kp["b3"], kp["w4"], kp["b4"],
        kp["wp1"], kp["bp1"], kp["wp2"], kp["bp2"],
        kp["wr1"], kp["br1"], kp["wr2"], kp["br2"],
    ]

    # advisory cost estimate for XLA's scheduler
    flops = (
        L * (6 * e_pad * n_pad * HP + 6 * e_pad * HP * HP + 6 * n_pad * HP * HP)
        + 2 * n_pad * (C + PE) * HP
        + 4 * n_pad * HP * HP + 2 * G * n_pad * HP + 2 * G * HP * HP + 2 * G * HP * OP
    )
    transcendentals = L * (2 * e_pad * HP + n_pad * HP) + n_pad * HP + G * HP
    bytes_accessed = sum(int(a.size) * a.dtype.itemsize for a in operands) + G * OP * 4
    bytes_accessed += (L - 1) * (2 * e_pad * n_pad * 2 + e_pad * 4)   # S, R, dist re-streamed per layer

    out = pl.pallas_call(
        mpnn_fused_kernel,
        out_shape=jax.ShapeDtypeStruct((G, OP), f32),
        grid_spec=pltpu.PrefetchScalarGridSpec(
            num_scalar_prefetch=0,
            grid=(L, n_et),
            in_specs=in_specs,
            out_specs=out_spec,
            scratch_shapes=[
                pltpu.VMEM((n_pad, HP), f32),   # h: resident node features
                pltpu.VMEM((n_pad, HP), f32),   # aggr: scatter accumulator
            ],
        ),
        compiler_params=pltpu.CompilerParams(
            dimension_semantics=("arbitrary", "arbitrary"),
            vmem_limit_bytes=48 * 1024 * 1024,
        ),
        cost_estimate=pl.CostEstimate(
            flops=int(flops),
            transcendentals=int(transcendentals),
            bytes_accessed=int(bytes_accessed),
        ),
    )(*operands)

    return jnp.squeeze(out[:, :out_channels])   # matches torch.squeeze on the readout


# ----------------------------- parameters -----------------------------

def _linear(key, fan_in, fan_out):
    # PyTorch nn.Linear default init: U(-1/sqrt(fan_in), 1/sqrt(fan_in)); stored as [in, out].
    kw, kb = jax.random.split(key)
    bound = 1.0 / (fan_in ** 0.5)
    w = jax.random.uniform(kw, (fan_in, fan_out), jnp.float32, -bound, bound)
    b = jax.random.uniform(kb, (1, fan_out), jnp.float32, -bound, bound)
    return w, b


def init_params(key, in_channels, hidden, num_layers, out_channels, pe_dim):
    keys = jax.random.split(key, 5 + 4 * num_layers)
    ki = iter(keys)
    p = {}
    p["embed_w"], p["embed_b"] = _linear(next(ki), in_channels + pe_dim, hidden)
    layers = []
    for _ in range(num_layers):
        w1, b1 = _linear(next(ki), 2 * hidden + 1, hidden)   # message_mlp[0]
        w2, b2 = _linear(next(ki), hidden, hidden)           # message_mlp[2]
        w3, b3 = _linear(next(ki), 2 * hidden, hidden)       # update_mlp[0]
        w4, b4 = _linear(next(ki), hidden, hidden)           # update_mlp[2]
        layers.append(dict(w1=w1, b1=b1, w2=w2, b2=b2, w3=w3, b3=b3, w4=w4, b4=b4))
    p["layers"] = layers
    p["wp1"], p["bp1"] = _linear(next(ki), hidden, hidden)
    p["wp2"], p["bp2"] = _linear(next(ki), hidden, hidden)
    p["wr1"], p["br1"] = _linear(next(ki), hidden, hidden)
    p["wr2"], p["br2"] = _linear(next(ki), hidden, out_channels)
    return p


def pack_params(p, in_channels, hidden, pe_dim):
    """Zero-pad to 128-lane widths (exact: padded cols are 0, silu(0)=0) and stack layers on [L,...]."""
    H = hidden

    def pad(w, r, c):
        return jnp.zeros((r, c), jnp.float32).at[: w.shape[0], : w.shape[1]].set(w)

    def stack(fn):
        return jnp.stack([fn(lp) for lp in p["layers"]], axis=0)

    return {
        "w_ex": pad(p["embed_w"][:in_channels], in_channels, H_PAD),
        "w_ep": pad(p["embed_w"][in_channels:], pe_dim, H_PAD),
        "b_e": pad(p["embed_b"], 1, H_PAD),
        "w1s": stack(lambda lp: pad(lp["w1"][:H], H_PAD, H_PAD)),
        "w1r": stack(lambda lp: pad(lp["w1"][H:2 * H], H_PAD, H_PAD)),
        "w1d": stack(lambda lp: pad(lp["w1"][2 * H:], 1, H_PAD)),
        "b1": stack(lambda lp: pad(lp["b1"], 1, H_PAD)),
        "w2": stack(lambda lp: pad(lp["w2"], H_PAD, H_PAD)),
        "b2": stack(lambda lp: pad(lp["b2"], 1, H_PAD)),
        "w3x": stack(lambda lp: pad(lp["w3"][:H], H_PAD, H_PAD)),
        "w3a": stack(lambda lp: pad(lp["w3"][H:], H_PAD, H_PAD)),
        "b3": stack(lambda lp: pad(lp["b3"], 1, H_PAD)),
        "w4": stack(lambda lp: pad(lp["w4"], H_PAD, H_PAD)),
        "b4": stack(lambda lp: pad(lp["b4"], 1, H_PAD)),
        "wp1": pad(p["wp1"], H_PAD, H_PAD), "bp1": pad(p["bp1"], 1, H_PAD),
        "wp2": pad(p["wp2"], H_PAD, H_PAD), "bp2": pad(p["bp2"], 1, H_PAD),
        "wr1": pad(p["wr1"], H_PAD, H_PAD), "br1": pad(p["br1"], 1, H_PAD),
        "wr2": pad(p["wr2"], H_PAD, OUT_PAD), "br2": pad(p["br2"], 1, OUT_PAD),
    }


# ----------------------------- plain-JAX reference -----------------------------

def mpnn_reference(params, x, pos, pe, send, rec, batch, n_graphs):
    """Reference with the same mixed-precision policy as the kernel
    (h / msg rounded to bf16 only at the gather / scatter inputs)."""
    f32, bf16 = jnp.float32, jnp.bfloat16
    h = jnp.concatenate([x, pe], axis=-1) @ params["embed_w"] + params["embed_b"]
    dist = jnp.sqrt(jnp.sum((pos[send] - pos[rec]) ** 2, axis=1, keepdims=True))
    for lp in params["layers"]:
        hq = h.astype(bf16).astype(f32)
        state = jnp.concatenate([hq[send], hq[rec], dist], axis=1)
        m = jax.nn.silu(state @ lp["w1"] + lp["b1"])
        msg = jax.nn.silu(m @ lp["w2"] + lp["b2"]).astype(bf16).astype(f32)
        aggr = jnp.zeros_like(h).at[rec].add(msg)
        u = jax.nn.silu(jnp.concatenate([h, aggr], axis=1) @ lp["w3"] + lp["b3"])
        h = h + u @ lp["w4"] + lp["b4"]
    t = jax.nn.silu(h @ params["wp1"] + params["bp1"]) @ params["wp2"] + params["bp2"]
    pooled = jnp.zeros((n_graphs, t.shape[1]), t.dtype).at[batch].add(t)
    r = jax.nn.silu(pooled @ params["wr1"] + params["br1"])
    return jnp.squeeze(r @ params["wr2"] + params["br2"])


# ----------------------------- main -----------------------------

if __name__ == "__main__":
    IN_CH, HIDDEN, NUM_LAYERS, OUT_CH, PE_DIM = 4, 32, 2, 3, 8
    N_PER_GRAPH, N_GRAPHS = 8, 2
    N = N_PER_GRAPH * N_GRAPHS
    E_TILE = 16   # small tile so the toy graph exercises the edge-tiled accumulation path

    key = jax.random.PRNGKey(0)
    kx, kpz, kpe, kparam = jax.random.split(key, 4)

    x = jax.random.normal(kx, (N, IN_CH), jnp.float32)
    pos = jax.random.normal(kpz, (N, 3), jnp.float32)
    pe = jax.random.normal(kpe, (N, PE_DIM), jnp.float32)

    # deterministic bidirectional ring edges inside each graph
    send_l, rec_l = [], []
    for g in range(N_GRAPHS):
        base = g * N_PER_GRAPH
        for i in range(N_PER_GRAPH):
            a, b = base + i, base + (i + 1) % N_PER_GRAPH
            send_l += [a, b]
            rec_l += [b, a]
    send = jnp.array(send_l, jnp.int32)
    rec = jnp.array(rec_l, jnp.int32)
    batch = jnp.array(sum([[g] * N_PER_GRAPH for g in range(N_GRAPHS)], []), jnp.int32)

    params = init_params(kparam, IN_CH, HIDDEN, NUM_LAYERS, OUT_CH, PE_DIM)
    kp = pack_params(params, IN_CH, HIDDEN, PE_DIM)

    fwd = jax.jit(functools.partial(
        mpnn_forward, kp, n_graphs=N_GRAPHS, out_channels=OUT_CH, e_tile=E_TILE))
    out = jax.block_until_ready(fwd(x, pos, pe, send, rec, batch))

    ref = jax.block_until_ready(
        mpnn_reference(params, x, pos, pe, send, rec, batch, N_GRAPHS))

    assert out.shape == (N_GRAPHS, OUT_CH), out.shape
    assert jnp.allclose(out, ref, atol=2e-3, rtol=2e-3), (out, ref)
    print("KERNEL_OK")
</pallas_src>

<mosaic_0001>
module attributes {stable_mosaic.version = 11 : i64} {
  func.func @mpnn_fused_kernel(%arg0: i32, %arg1: i32, %arg2: memref<16x4xf32, #tpu.memory_space<vmem>>, %arg3: memref<16x8xf32, #tpu.memory_space<vmem>>, %arg4: memref<16x1xf32, #tpu.memory_space<vmem>>, %arg5: memref<16x16xbf16, #tpu.memory_space<vmem>>, %arg6: memref<16x16xbf16, #tpu.memory_space<vmem>>, %arg7: memref<2x16xbf16, #tpu.memory_space<vmem>>, %arg8: memref<4x128xf32, #tpu.memory_space<vmem>>, %arg9: memref<8x128xf32, #tpu.memory_space<vmem>>, %arg10: memref<1x128xf32, #tpu.memory_space<vmem>>, %arg11: memref<1x128x128xf32, #tpu.memory_space<vmem>>, %arg12: memref<1x128x128xf32, #tpu.memory_space<vmem>>, %arg13: memref<1x1x128xf32, #tpu.memory_space<vmem>>, %arg14: memref<1x1x128xf32, #tpu.memory_space<vmem>>, %arg15: memref<1x128x128xf32, #tpu.memory_space<vmem>>, %arg16: memref<1x1x128xf32, #tpu.memory_space<vmem>>, %arg17: memref<1x128x128xf32, #tpu.memory_space<vmem>>, %arg18: memref<1x128x128xf32, #tpu.memory_space<vmem>>, %arg19: memref<1x1x128xf32, #tpu.memory_space<vmem>>, %arg20: memref<1x128x128xf32, #tpu.memory_space<vmem>>, %arg21: memref<1x1x128xf32, #tpu.memory_space<vmem>>, %arg22: memref<128x128xf32, #tpu.memory_space<vmem>>, %arg23: memref<1x128xf32, #tpu.memory_space<vmem>>, %arg24: memref<128x128xf32, #tpu.memory_space<vmem>>, %arg25: memref<1x128xf32, #tpu.memory_space<vmem>>, %arg26: memref<128x128xf32, #tpu.memory_space<vmem>>, %arg27: memref<1x128xf32, #tpu.memory_space<vmem>>, %arg28: memref<128x128xf32, #tpu.memory_space<vmem>>, %arg29: memref<1x128xf32, #tpu.memory_space<vmem>>, %arg30: memref<2x128xf32, #tpu.memory_space<vmem>>, %arg31: memref<16x128xf32, #tpu.memory_space<vmem>>, %arg32: memref<16x128xf32, #tpu.memory_space<vmem>>) attributes {dimension_semantics = [#tpu.dimension_semantics<arbitrary>, #tpu.dimension_semantics<arbitrary>], iteration_bounds = array<i64: 2, 2>, scalar_prefetch = 0 : i64, scratch_operands = 2 : i64, tpu.core_type = #tpu.core_type<tc>, window_params = [{pipeline_mode = #tpu.pipeline_mode<synchronous>, transform_indices = @transform_0, window_bounds = array<i64: 16, 4>}, {pipeline_mode = #tpu.pipeline_mode<synchronous>, transform_indices = @transform_1, window_bounds = array<i64: 16, 8>}, {transform_indices = @transform_2, window_bounds = array<i64: 16, 1>}, {transform_indices = @transform_3, window_bounds = array<i64: 16, 16>}, {transform_indices = @transform_4, window_bounds = array<i64: 16, 16>}, {pipeline_mode = #tpu.pipeline_mode<synchronous>, transform_indices = @transform_5, window_bounds = array<i64: 2, 16>}, {pipeline_mode = #tpu.pipeline_mode<synchronous>, transform_indices = @transform_6, window_bounds = array<i64: 4, 128>}, {pipeline_mode = #tpu.pipeline_mode<synchronous>, transform_indices = @transform_7, window_bounds = array<i64: 8, 128>}, {pipeline_mode = #tpu.pipeline_mode<synchronous>, transform_indices = @transform_8, window_bounds = array<i64: 1, 128>}, {transform_indices = @transform_9, window_bounds = array<i64: 1, 128, 128>}, {transform_indices = @transform_10, window_bounds = array<i64: 1, 128, 128>}, {transform_indices = @transform_11, window_bounds = array<i64: 1, 1, 128>}, {transform_indices = @transform_12, window_bounds = array<i64: 1, 1, 128>}, {transform_indices = @transform_13, window_bounds = array<i64: 1, 128, 128>}, {transform_indices = @transform_14, window_bounds = array<i64: 1, 1, 128>}, {transform_indices = @transform_15, window_bounds = array<i64: 1, 128, 128>}, {transform_indices = @transform_16, window_bounds = array<i64: 1, 128, 128>}, {transform_indices = @transform_17, window_bounds = array<i64: 1, 1, 128>}, {transform_indices = @transform_18, window_bounds = array<i64: 1, 128, 128>}, {transform_indices = @transform_19, window_bounds = array<i64: 1, 1, 128>}, {pipeline_mode = #tpu.pipeline_mode<synchronous>, transform_indices = @transform_20, window_bounds = array<i64: 128, 128>}, {pipeline_mode = #tpu.pipeline_mode<synchronous>, transform_indices = @transform_21, window_bounds = array<i64: 1, 128>}, {pipeline_mode = #tpu.pipeline_mode<synchronous>, transform_indices = @transform_22, window_bounds = array<i64: 128, 128>}, {pipeline_mode = #tpu.pipeline_mode<synchronous>, transform_indices = @transform_23, window_bounds = array<i64: 1, 128>}, {pipeline_mode = #tpu.pipeline_mode<synchronous>, transform_indices = @transform_24, window_bounds = array<i64: 128, 128>}, {pipeline_mode = #tpu.pipeline_mode<synchronous>, transform_indices = @transform_25, window_bounds = array<i64: 1, 128>}, {pipeline_mode = #tpu.pipeline_mode<synchronous>, transform_indices = @transform_26, window_bounds = array<i64: 128, 128>}, {pipeline_mode = #tpu.pipeline_mode<synchronous>, transform_indices = @transform_27, window_bounds = array<i64: 1, 128>}, {pipeline_mode = #tpu.pipeline_mode<synchronous>, transform_indices = @transform_28, window_bounds = array<i64: 2, 128>}]} {
    %c0_i32 = arith.constant 0 : i32
    %0 = arith.cmpi eq, %arg0, %c0_i32 : i32
    %c0_i32_0 = arith.constant 0 : i32
    %1 = arith.cmpi eq, %arg1, %c0_i32_0 : i32
    %2 = arith.andi %0, %1 : i1
    %3 = arith.extui %2 : i1 to i32
    %c0_i32_1 = arith.constant 0 : i32
    %4 = arith.cmpi ne, %3, %c0_i32_1 : i32
    scf.if %4 {
      %c0_46 = arith.constant 0 : index
      %c0_47 = arith.constant 0 : index
      %65 = vector.load %arg2[%c0_46, %c0_47] : memref<16x4xf32, #tpu.memory_space<vmem>>, vector<16x4xf32>
      %c0_48 = arith.constant 0 : index
      %c0_49 = arith.constant 0 : index
      %66 = vector.load %arg8[%c0_48, %c0_49] : memref<4x128xf32, #tpu.memory_space<vmem>>, vector<4x128xf32>
      %cst_50 = arith.constant dense<0.000000e+00> : vector<16x128xf32>
      %67 = tpu.matmul %65, %66, %cst_50 {dimension_numbers = #tpu.dot_dimension_numbers<[1], [0], [0], [1], [0, 0, 1, 1], [], []>} : vector<16x4xf32>, vector<4x128xf32>, vector<16x128xf32> -> vector<16x128xf32>
      %c0_51 = arith.constant 0 : index
      %c0_52 = arith.constant 0 : index
      %68 = vector.load %arg3[%c0_51, %c0_52] : memref<16x8xf32, #tpu.memory_space<vmem>>, vector<16x8xf32>
      %c0_53 = arith.constant 0 : index
      %c0_54 = arith.constant 0 : index
      %69 = vector.load %arg9[%c0_53, %c0_54] : memref<8x128xf32, #tpu.memory_space<vmem>>, vector<8x128xf32>
      %cst_55 = arith.constant dense<0.000000e+00> : vector<16x128xf32>
      %70 = tpu.matmul %68, %69, %cst_55 {dimension_numbers = #tpu.dot_dimension_numbers<[1], [0], [0], [1], [0, 0, 1, 1], [], []>} : vector<16x8xf32>, vector<8x128xf32>, vector<16x128xf32> -> vector<16x128xf32>
      %71 = arith.addf %67, %70 : vector<16x128xf32>
      %c0_56 = arith.constant 0 : index
      %c0_57 = arith.constant 0 : index
      %72 = vector.load %arg10[%c0_56, %c0_57] : memref<1x128xf32, #tpu.memory_space<vmem>>, vector<1x128xf32>
      %73 = vector.broadcast %72 : vector<1x128xf32> to vector<16x128xf32>
      %74 = arith.addf %71, %73 : vector<16x128xf32>
      %c0_58 = arith.constant 0 : index
      %c0_59 = arith.constant 0 : index
      %75 = vector.load %arg31[%c0_58, %c0_59] : memref<16x128xf32, #tpu.memory_space<vmem>>, vector<16x128xf32>
      tpu.vector_store %arg31[%c0_58, %c0_59], %74 {strides = array<i32>} : memref<16x128xf32, #tpu.memory_space<vmem>>, vector<16x128xf32>,
    } else {
    }
    %c0_i32_2 = arith.constant 0 : i32
    %5 = arith.cmpi eq, %arg1, %c0_i32_2 : i32
    %6 = arith.extui %5 : i1 to i32
    %c0_i32_3 = arith.constant 0 : i32
    %7 = arith.cmpi ne, %6, %c0_i32_3 : i32
    scf.if %7 {
      %cst_46 = arith.constant 0.000000e+00 : f32
      %65 = vector.broadcast %cst_46 : f32 to vector<16x128xf32>
      %c0_47 = arith.constant 0 : index
      %c0_48 = arith.constant 0 : index
      %66 = vector.load %arg32[%c0_47, %c0_48] : memref<16x128xf32, #tpu.memory_space<vmem>>, vector<16x128xf32>
      tpu.vector_store %arg32[%c0_47, %c0_48], %65 {strides = array<i32>} : memref<16x128xf32, #tpu.memory_space<vmem>>, vector<16x128xf32>,
    } else {
    }
    %c0 = arith.constant 0 : index
    %c0_4 = arith.constant 0 : index
    %8 = vector.load %arg31[%c0, %c0_4] : memref<16x128xf32, #tpu.memory_space<vmem>>, vector<16x128xf32>
    %9 = arith.truncf %8 : vector<16x128xf32> to vector<16x128xbf16>
    %c0_5 = arith.constant 0 : index
    %c0_6 = arith.constant 0 : index
    %10 = vector.load %arg5[%c0_5, %c0_6] : memref<16x16xbf16, #tpu.memory_space<vmem>>, vector<16x16xbf16>
    %cst = arith.constant dense<0.000000e+00> : vector<16x128xf32>
    %11 = tpu.matmul %10, %9, %cst {dimension_numbers = #tpu.dot_dimension_numbers<[1], [0], [0], [1], [0, 0, 1, 1], [], []>} : vector<16x16xbf16>, vector<16x128xbf16>, vector<16x128xf32> -> vector<16x128xf32>
    %c0_7 = arith.constant 0 : index
    %c0_8 = arith.constant 0 : index
    %12 = vector.load %arg6[%c0_7, %c0_8] : memref<16x16xbf16, #tpu.memory_space<vmem>>, vector<16x16xbf16>
    %cst_9 = arith.constant dense<0.000000e+00> : vector<16x128xf32>
    %13 = tpu.matmul %12, %9, %cst_9 {dimension_numbers = #tpu.dot_dimension_numbers<[1], [0], [0], [1], [0, 0, 1, 1], [], []>} : vector<16x16xbf16>, vector<16x128xbf16>, vector<16x128xf32> -> vector<16x128xf32>
    %c0_10 = arith.constant 0 : index
    %c0_11 = arith.constant 0 : index
    %c0_12 = arith.constant 0 : index
    %14 = vector.load %arg11[%c0_10, %c0_11, %c0_12] : memref<1x128x128xf32, #tpu.memory_space<vmem>>, vector<1x128x128xf32>
    %15 = vector.shape_cast %14 : vector<1x128x128xf32> to vector<128x128xf32>
    %cst_13 = arith.constant dense<0.000000e+00> : vector<16x128xf32>
    %16 = tpu.matmul %11, %15, %cst_13 {dimension_numbers = #tpu.dot_dimension_numbers<[1], [0], [0], [1], [0, 0, 1, 1], [], []>} : vector<16x128xf32>, vector<128x128xf32>, vector<16x128xf32> -> vector<16x128xf32>
    %c0_14 = arith.constant 0 : index
    %c0_15 = arith.constant 0 : index
    %c0_16 = arith.constant 0 : index
    %17 = vector.load %arg12[%c0_14, %c0_15, %c0_16] : memref<1x128x128xf32, #tpu.memory_space<vmem>>, vector<1x128x128xf32>
    %18 = vector.shape_cast %17 : vector<1x128x128xf32> to vector<128x128xf32>
    %cst_17 = arith.constant dense<0.000000e+00> : vector<16x128xf32>
    %19 = tpu.matmul %13, %18, %cst_17 {dimension_numbers = #tpu.dot_dimension_numbers<[1], [0], [0], [1], [0, 0, 1, 1], [], []>} : vector<16x128xf32>, vector<128x128xf32>, vector<16x128xf32> -> vector<16x128xf32>
    %20 = arith.addf %16, %19 : vector<16x128xf32>
    %c0_18 = arith.constant 0 : index
    %c0_19 = arith.constant 0 : index
    %21 = vector.load %arg4[%c0_18, %c0_19] : memref<16x1xf32, #tpu.memory_space<vmem>>, vector<16x1xf32>
    %c0_20 = arith.constant 0 : index
    %c0_21 = arith.constant 0 : index
    %c0_22 = arith.constant 0 : index
    %22 = vector.load %arg13[%c0_20, %c0_21, %c0_22] : memref<1x1x128xf32, #tpu.memory_space<vmem>>, vector<1x1x128xf32>
    %23 = vector.shape_cast %22 : vector<1x1x128xf32> to vector<1x128xf32>
    %24 = vector.broadcast %21 : vector<16x1xf32> to vector<16x128xf32>
    %25 = vector.broadcast %23 : vector<1x128xf32> to vector<16x128xf32>
    %26 = arith.mulf %24, %25 : vector<16x128xf32>
    %27 = arith.addf %20, %26 : vector<16x128xf32>
    %c0_23 = arith.constant 0 : index
    %c0_24 = arith.constant 0 : index
    %c0_25 = arith.constant 0 : index
    %28 = vector.load %arg14[%c0_23, %c0_24, %c0_25] : memref<1x1x128xf32, #tpu.memory_space<vmem>>, vector<1x1x128xf32>
    %29 = vector.shape_cast %28 : vector<1x1x128xf32> to vector<1x128xf32>
    %30 = vector.broadcast %29 : vector<1x128xf32> to vector<16x128xf32>
    %31 = arith.addf %27, %30 : vector<16x128xf32>
    %32 = arith.negf %31 : vector<16x128xf32>
    %33 = math.exp %32 : vector<16x128xf32>
    %cst_26 = arith.constant 1.000000e+00 : f32
    %34 = vector.broadcast %cst_26 : f32 to vector<16x128xf32>
    %35 = arith.addf %34, %33 : vector<16x128xf32>
    %36 = arith.divf %34, %35 : vector<16x128xf32>
    %37 = arith.mulf %31, %36 : vector<16x128xf32>
    %c0_27 = arith.constant 0 : index
    %c0_28 = arith.constant 0 : index
    %c0_29 = arith.constant 0 : index
    %38 = vector.load %arg15[%c0_27, %c0_28, %c0_29] : memref<1x128x128xf32, #tpu.memory_space<vmem>>, vector<1x128x128xf32>
    %39 = vector.shape_cast %38 : vector<1x128x128xf32> to vector<128x128xf32>
    %cst_30 = arith.constant dense<0.000000e+00> : vector<16x128xf32>
    %40 = tpu.matmul %37, %39, %cst_30 {dimension_numbers = #tpu.dot_dimension_numbers<[1], [0], [0], [1], [0, 0, 1, 1], [], []>} : vector<16x128xf32>, vector<128x128xf32>, vector<16x128xf32> -> vector<16x128xf32>
    %c0_31 = arith.constant 0 : index
    %c0_32 = arith.constant 0 : index
    %c0_33 = arith.constant 0 : index
    %41 = vector.load %arg16[%c0_31, %c0_32, %c0_33] : memref<1x1x128xf32, #tpu.memory_space<vmem>>, vector<1x1x128xf32>
    %42 = vector.shape_cast %41 : vector<1x1x128xf32> to vector<1x128xf32>
    %43 = vector.broadcast %42 : vector<1x128xf32> to vector<16x128xf32>
    %44 = arith.addf %40, %43 : vector<16x128xf32>
    %45 = arith.negf %44 : vector<16x128xf32>
    %46 = math.exp %45 : vector<16x128xf32>
    %cst_34 = arith.constant 1.000000e+00 : f32
    %47 = vector.broadcast %cst_34 : f32 to vector<16x128xf32>
    %48 = arith.addf %47, %46 : vector<16x128xf32>
    %49 = arith.divf %47, %48 : vector<16x128xf32>
    %50 = arith.mulf %44, %49 : vector<16x128xf32>
    %c0_35 = arith.constant 0 : index
    %c0_36 = arith.constant 0 : index
    %51 = vector.load %arg32[%c0_35, %c0_36] : memref<16x128xf32, #tpu.memory_space<vmem>>, vector<16x128xf32>
    %c0_37 = arith.constant 0 : index
    %c0_38 = arith.constant 0 : index
    %52 = vector.load %arg6[%c0_37, %c0_38] : memref<16x16xbf16, #tpu.memory_space<vmem>>, vector<16x16xbf16>
    %53 = arith.truncf %50 : vector<16x128xf32> to vector<16x128xbf16>
    %cst_39 = arith.constant dense<0.000000e+00> : vector<16x128xf32>
    %54 = tpu.matmul %52, %53, %cst_39 {dimension_numbers = #tpu.dot_dimension_numbers<[0], [0], [1], [1], [0, 1, 1, 1], [], []>} : vector<16x16xbf16>, vector<16x128xbf16>, vector<16x128xf32> -> vector<16x128xf32>
    %55 = arith.addf %51, %54 : vector<16x128xf32>
    %c0_40 = arith.constant 0 : index
    %c0_41 = arith.constant 0 : index
    %56 = vector.load %arg32[%c0_40, %c0_41] : memref<16x128xf32, #tpu.memory_space<vmem>>, vector<16x128xf32>
    tpu.vector_store %arg32[%c0_40, %c0_41], %55 {strides = array<i32>} : memref<16x128xf32, #tpu.memory_space<vmem>>, vector<16x128xf32>,
    %c1_i32 = arith.constant 1 : i32
    %57 = arith.cmpi eq, %arg1, %c1_i32 : i32
    %58 = arith.extui %57 : i1 to i32
    %c0_i32_42 = arith.constant 0 : i32
    %59 = arith.cmpi ne, %58, %c0_i32_42 : i32
    scf.if %59 {
      %c0_46 = arith.constant 0 : index
      %c0_47 = arith.constant 0 : index
      %65 = vector.load %arg31[%c0_46, %c0_47] : memref<16x128xf32, #tpu.memory_space<vmem>>, vector<16x128xf32>
      %c0_48 = arith.constant 0 : index
      %c0_49 = arith.constant 0 : index
      %c0_50 = arith.constant 0 : index
      %66 = vector.load %arg17[%c0_48, %c0_49, %c0_50] : memref<1x128x128xf32, #tpu.memory_space<vmem>>, vector<1x128x128xf32>
      %67 = vector.shape_cast %66 : vector<1x128x128xf32> to vector<128x128xf32>
      %cst_51 = arith.constant dense<0.000000e+00> : vector<16x128xf32>
      %68 = tpu.matmul %65, %67, %cst_51 {dimension_numbers = #tpu.dot_dimension_numbers<[1], [0], [0], [1], [0, 0, 1, 1], [], []>} : vector<16x128xf32>, vector<128x128xf32>, vector<16x128xf32> -> vector<16x128xf32>
      %c0_52 = arith.constant 0 : index
      %c0_53 = arith.constant 0 : index
      %69 = vector.load %arg32[%c0_52, %c0_53] : memref<16x128xf32, #tpu.memory_space<vmem>>, vector<16x128xf32>
      %c0_54 = arith.constant 0 : index
      %c0_55 = arith.constant 0 : index
      %c0_56 = arith.constant 0 : index
      %70 = vector.load %arg18[%c0_54, %c0_55, %c0_56] : memref<1x128x128xf32, #tpu.memory_space<vmem>>, vector<1x128x128xf32>
      %71 = vector.shape_cast %70 : vector<1x128x128xf32> to vector<128x128xf32>
      %cst_57 = arith.constant dense<0.000000e+00> : vector<16x128xf32>
      %72 = tpu.matmul %69, %71, %cst_57 {dimension_numbers = #tpu.dot_dimension_numbers<[1], [0], [0], [1], [0, 0, 1, 1], [], []>} : vector<16x128xf32>, vector<128x128xf32>, vector<16x128xf32> -> vector<16x128xf32>
      %73 = arith.addf %68, %72 : vector<16x128xf32>
      %c0_58 = arith.constant 0 : index
      %c0_59 = arith.constant 0 : index
      %c0_60 = arith.constant 0 : index
      %74 = vector.load %arg19[%c0_58, %c0_59, %c0_60] : memref<1x1x128xf32, #tpu.memory_space<vmem>>, vector<1x1x128xf32>
      %75 = vector.shape_cast %74 : vector<1x1x128xf32> to vector<1x128xf32>
      %76 = vector.broadcast %75 : vector<1x128xf32> to vector<16x128xf32>
      %77 = arith.addf %73, %76 : vector<16x128xf32>
      %78 = arith.negf %77 : vector<16x128xf32>
      %79 = math.exp %78 : vector<16x128xf32>
      %cst_61 = arith.constant 1.000000e+00 : f32
      %80 = vector.broadcast %cst_61 : f32 to vector<16x128xf32>
      %81 = arith.addf %80, %79 : vector<16x128xf32>
      %82 = arith.divf %80, %81 : vector<16x128xf32>
      %83 = arith.mulf %77, %82 : vector<16x128xf32>
      %c0_62 = arith.constant 0 : index
      %c0_63 = arith.constant 0 : index
      %c0_64 = arith.constant 0 : index
      %84 = vector.load %arg20[%c0_62, %c0_63, %c0_64] : memref<1x128x128xf32, #tpu.memory_space<vmem>>, vector<1x128x128xf32>
      %85 = vector.shape_cast %84 : vector<1x128x128xf32> to vector<128x128xf32>
      %cst_65 = arith.constant dense<0.000000e+00> : vector<16x128xf32>
      %86 = tpu.matmul %83, %85, %cst_65 {dimension_numbers = #tpu.dot_dimension_numbers<[1], [0], [0], [1], [0, 0, 1, 1], [], []>} : vector<16x128xf32>, vector<128x128xf32>, vector<16x128xf32> -> vector<16x128xf32>
      %87 = arith.addf %65, %86 : vector<16x128xf32>
      %c0_66 = arith.constant 0 : index
      %c0_67 = arith.constant 0 : index
      %c0_68 = arith.constant 0 : index
      %88 = vector.load %arg21[%c0_66, %c0_67, %c0_68] : memref<1x1x128xf32, #tpu.memory_space<vmem>>, vector<1x1x128xf32>
      %89 = vector.shape_cast %88 : vector<1x1x128xf32> to vector<1x128xf32>
      %90 = vector.broadcast %89 : vector<1x128xf32> to vector<16x128xf32>
      %91 = arith.addf %87, %90 : vector<16x128xf32>
      %c0_69 = arith.constant 0 : index
      %c0_70 = arith.constant 0 : index
      %92 = vector.load %arg31[%c0_69, %c0_70] : memref<16x128xf32, #tpu.memory_space<vmem>>, vector<16x128xf32>
      tpu.vector_store %arg31[%c0_69, %c0_70], %91 {strides = array<i32>} : memref<16x128xf32, #tpu.memory_space<vmem>>, vector<16x128xf32>,
    } else {
    }
    %c1_i32_43 = arith.constant 1 : i32
    %60 = arith.cmpi eq, %arg0, %c1_i32_43 : i32
    %c1_i32_44 = arith.constant 1 : i32
    %61 = arith.cmpi eq, %arg1, %c1_i32_44 : i32
    %62 = arith.andi %60, %61 : i1
    %63 = arith.extui %62 : i1 to i32
    %c0_i32_45 = arith.constant 0 : i32
    %64 = arith.cmpi ne, %63, %c0_i32_45 : i32
    scf.if %64 {
      %c0_46 = arith.constant 0 : index
      %c0_47 = arith.constant 0 : index
      %65 = vector.load %arg31[%c0_46, %c0_47] : memref<16x128xf32, #tpu.memory_space<vmem>>, vector<16x128xf32>
      %c0_48 = arith.constant 0 : index
      %c0_49 = arith.constant 0 : index
      %66 = vector.load %arg22[%c0_48, %c0_49] : memref<128x128xf32, #tpu.memory_space<vmem>>, vector<128x128xf32>
      %cst_50 = arith.constant dense<0.000000e+00> : vector<16x128xf32>
      %67 = tpu.matmul %65, %66, %cst_50 {dimension_numbers = #tpu.dot_dimension_numbers<[1], [0], [0], [1], [0, 0, 1, 1], [], []>} : vector<16x128xf32>, vector<128x128xf32>, vector<16x128xf32> -> vector<16x128xf32>
      %c0_51 = arith.constant 0 : index
      %c0_52 = arith.constant 0 : index
      %68 = vector.load %arg23[%c0_51, %c0_52] : memref<1x128xf32, #tpu.memory_space<vmem>>, vector<1x128xf32>
      %69 = vector.broadcast %68 : vector<1x128xf32> to vector<16x128xf32>
      %70 = arith.addf %67, %69 : vector<16x128xf32>
      %71 = arith.negf %70 : vector<16x128xf32>
      %72 = math.exp %71 : vector<16x128xf32>
      %cst_53 = arith.constant 1.000000e+00 : f32
      %73 = vector.broadcast %cst_53 : f32 to vector<16x128xf32>
      %74 = arith.addf %73, %72 : vector<16x128xf32>
      %75 = arith.divf %73, %74 : vector<16x128xf32>
      %76 = arith.mulf %70, %75 : vector<16x128xf32>
      %c0_54 = arith.constant 0 : index
      %c0_55 = arith.constant 0 : index
      %77 = vector.load %arg24[%c0_54, %c0_55] : memref<128x128xf32, #tpu.memory_space<vmem>>, vector<128x128xf32>
      %cst_56 = arith.constant dense<0.000000e+00> : vector<16x128xf32>
      %78 = tpu.matmul %76, %77, %cst_56 {dimension_numbers = #tpu.dot_dimension_numbers<[1], [0], [0], [1], [0, 0, 1, 1], [], []>} : vector<16x128xf32>, vector<128x128xf32>, vector<16x128xf32> -> vector<16x128xf32>
      %c0_57 = arith.constant 0 : index
      %c0_58 = arith.constant 0 : index
      %79 = vector.load %arg25[%c0_57, %c0_58] : memref<1x128xf32, #tpu.memory_space<vmem>>, vector<1x128xf32>
      %80 = vector.broadcast %79 : vector<1x128xf32> to vector<16x128xf32>
      %81 = arith.addf %78, %80 : vector<16x128xf32>
      %c0_59 = arith.constant 0 : index
      %c0_60 = arith.constant 0 : index
      %82 = vector.load %arg7[%c0_59, %c0_60] : memref<2x16xbf16, #tpu.memory_space<vmem>>, vector<2x16xbf16>
      %cst_61 = arith.constant dense<0.000000e+00> : vector<2x128xf32>
      %83 = tpu.matmul %82, %81, %cst_61 {dimension_numbers = #tpu.dot_dimension_numbers<[1], [0], [0], [1], [0, 0, 1, 1], [], []>} : vector<2x16xbf16>, vector<16x128xf32>, vector<2x128xf32> -> vector<2x128xf32>
      %c0_62 = arith.constant 0 : index
      %c0_63 = arith.constant 0 : index
      %84 = vector.load %arg26[%c0_62, %c0_63] : memref<128x128xf32, #tpu.memory_space<vmem>>, vector<128x128xf32>
      %cst_64 = arith.constant dense<0.000000e+00> : vector<2x128xf32>
      %85 = tpu.matmul %83, %84, %cst_64 {dimension_numbers = #tpu.dot_dimension_numbers<[1], [0], [0], [1], [0, 0, 1, 1], [], []>} : vector<2x128xf32>, vector<128x128xf32>, vector<2x128xf32> -> vector<2x128xf32>
      %c0_65 = arith.constant 0 : index
      %c0_66 = arith.constant 0 : index
      %86 = vector.load %arg27[%c0_65, %c0_66] : memref<1x128xf32, #tpu.memory_space<vmem>>, vector<1x128xf32>
      %87 = vector.broadcast %86 : vector<1x128xf32> to vector<2x128xf32>
      %88 = arith.addf %85, %87 : vector<2x128xf32>
      %89 = arith.negf %88 : vector<2x128xf32>
      %90 = math.exp %89 : vector<2x128xf32>
      %cst_67 = arith.constant 1.000000e+00 : f32
      %91 = vector.broadcast %cst_67 : f32 to vector<2x128xf32>
      %92 = arith.addf %91, %90 : vector<2x128xf32>
      %93 = arith.divf %91, %92 : vector<2x128xf32>
      %94 = arith.mulf %88, %93 : vector<2x128xf32>
      %c0_68 = arith.constant 0 : index
      %c0_69 = arith.constant 0 : index
      %95 = vector.load %arg28[%c0_68, %c0_69] : memref<128x128xf32, #tpu.memory_space<vmem>>, vector<128x128xf32>
      %cst_70 = arith.constant dense<0.000000e+00> : vector<2x128xf32>
      %96 = tpu.matmul %94, %95, %cst_70 {dimension_numbers = #tpu.dot_dimension_numbers<[1], [0], [0], [1], [0, 0, 1, 1], [], []>} : vector<2x128xf32>, vector<128x128xf32>, vector<2x128xf32> -> vector<2x128xf32>
      %c0_71 = arith.constant 0 : index
      %c0_72 = arith.constant 0 : index
      %97 = vector.load %arg29[%c0_71, %c0_72] : memref<1x128xf32, #tpu.memory_space<vmem>>, vector<1x128xf32>
      %98 = vector.broadcast %97 : vector<1x128xf32> to vector<2x128xf32>
      %99 = arith.addf %96, %98 : vector<2x128xf32>
      %c0_73 = arith.constant 0 : index
      %c0_74 = arith.constant 0 : index
      %100 = vector.load %arg30[%c0_73, %c0_74] : memref<2x128xf32, #tpu.memory_space<vmem>>, vector<2x128xf32>
      tpu.vector_store %arg30[%c0_73, %c0_74], %99 {strides = array<i32>} : memref<2x128xf32, #tpu.memory_space<vmem>>, vector<2x128xf32>,
    } else {
    }
    return
  }
  func.func @transform_0(%arg0: i32, %arg1: i32) -> (i32, i32) {
    %c0_i32 = arith.constant 0 : i32
    %c0_i32_0 = arith.constant 0 : i32
    %c0_i32_1 = arith.constant 0 : i32
    return %c0_i32, %c0_i32_0 : i32, i32
  }
  func.func @transform_1(%arg0: i32, %arg1: i32) -> (i32, i32) {
    %c0_i32 = arith.constant 0 : i32
    %c0_i32_0 = arith.constant 0 : i32
    %c0_i32_1 = arith.constant 0 : i32
    return %c0_i32, %c0_i32_0 : i32, i32
  }
  func.func @transform_2(%arg0: i32, %arg1: i32) -> (i32, i32) {
    %c0_i32 = arith.constant 0 : i32
    %c0_i32_0 = arith.constant 0 : i32
    return %arg1, %c0_i32 : i32, i32
  }
  func.func @transform_3(%arg0: i32, %arg1: i32) -> (i32, i32) {
    %c0_i32 = arith.constant 0 : i32
    %c0_i32_0 = arith.constant 0 : i32
    return %arg1, %c0_i32 : i32, i32
  }
  func.func @transform_4(%arg0: i32, %arg1: i32) -> (i32, i32) {
    %c0_i32 = arith.constant 0 : i32
    %c0_i32_0 = arith.constant 0 : i32
    return %arg1, %c0_i32 : i32, i32
  }
  func.func @transform_5(%arg0: i32, %arg1: i32) -> (i32, i32) {
    %c0_i32 = arith.constant 0 : i32
    %c0_i32_0 = arith.constant 0 : i32
    %c0_i32_1 = arith.constant 0 : i32
    return %c0_i32, %c0_i32_0 : i32, i32
  }
  func.func @transform_6(%arg0: i32, %arg1: i32) -> (i32, i32) {
    %c0_i32 = arith.constant 0 : i32
    %c0_i32_0 = arith.constant 0 : i32
    %c0_i32_1 = arith.constant 0 : i32
    return %c0_i32, %c0_i32_0 : i32, i32
  }
  func.func @transform_7(%arg0: i32, %arg1: i32) -> (i32, i32) {
    %c0_i32 = arith.constant 0 : i32
    %c0_i32_0 = arith.constant 0 : i32
    %c0_i32_1 = arith.constant 0 : i32
    return %c0_i32, %c0_i32_0 : i32, i32
  }
  func.func @transform_8(%arg0: i32, %arg1: i32) -> (i32, i32) {
    %c0_i32 = arith.constant 0 : i32
    %c0_i32_0 = arith.constant 0 : i32
    %c0_i32_1 = arith.constant 0 : i32
    return %c0_i32, %c0_i32_0 : i32, i32
  }
  func.func @transform_9(%arg0: i32, %arg1: i32) -> (i32, i32, i32) {
    %c0_i32 = arith.constant 0 : i32
    %c0_i32_0 = arith.constant 0 : i32
    %c0_i32_1 = arith.constant 0 : i32
    return %arg0, %c0_i32, %c0_i32_0 : i32, i32, i32
  }
  func.func @transform_10(%arg0: i32, %arg1: i32) -> (i32, i32, i32) {
    %c0_i32 = arith.constant 0 : i32
    %c0_i32_0 = arith.constant 0 : i32
    %c0_i32_1 = arith.constant 0 : i32
    return %arg0, %c0_i32, %c0_i32_0 : i32, i32, i32
  }
  func.func @transform_11(%arg0: i32, %arg1: i32) -> (i32, i32, i32) {
    %c0_i32 = arith.constant 0 : i32
    %c0_i32_0 = arith.constant 0 : i32
    %c0_i32_1 = arith.constant 0 : i32
    return %arg0, %c0_i32, %c0_i32_0 : i32, i32, i32
  }
  func.func @transform_12(%arg0: i32, %arg1: i32) -> (i32, i32, i32) {
    %c0_i32 = arith.constant 0 : i32
    %c0_i32_0 = arith.constant 0 : i32
    %c0_i32_1 = arith.constant 0 : i32
    return %arg0, %c0_i32, %c0_i32_0 : i32, i32, i32
  }
  func.func @transform_13(%arg0: i32, %arg1: i32) -> (i32, i32, i32) {
    %c0_i32 = arith.constant 0 : i32
    %c0_i32_0 = arith.constant 0 : i32
    %c0_i32_1 = arith.constant 0 : i32
    return %arg0, %c0_i32, %c0_i32_0 : i32, i32, i32
  }
  func.func @transform_14(%arg0: i32, %arg1: i32) -> (i32, i32, i32) {
    %c0_i32 = arith.constant 0 : i32
    %c0_i32_0 = arith.constant 0 : i32
    %c0_i32_1 = arith.constant 0 : i32
    return %arg0, %c0_i32, %c0_i32_0 : i32, i32, i32
  }
  func.func @transform_15(%arg0: i32, %arg1: i32) -> (i32, i32, i32) {
    %c0_i32 = arith.constant 0 : i32
    %c0_i32_0 = arith.constant 0 : i32
    %c0_i32_1 = arith.constant 0 : i32
    return %arg0, %c0_i32, %c0_i32_0 : i32, i32, i32
  }
  func.func @transform_16(%arg0: i32, %arg1: i32) -> (i32, i32, i32) {
    %c0_i32 = arith.constant 0 : i32
    %c0_i32_0 = arith.constant 0 : i32
    %c0_i32_1 = arith.constant 0 : i32
    return %arg0, %c0_i32, %c0_i32_0 : i32, i32, i32
  }
  func.func @transform_17(%arg0: i32, %arg1: i32) -> (i32, i32, i32) {
    %c0_i32 = arith.constant 0 : i32
    %c0_i32_0 = arith.constant 0 : i32
    %c0_i32_1 = arith.constant 0 : i32
    return %arg0, %c0_i32, %c0_i32_0 : i32, i32, i32
  }
  func.func @transform_18(%arg0: i32, %arg1: i32) -> (i32, i32, i32) {
    %c0_i32 = arith.constant 0 : i32
    %c0_i32_0 = arith.constant 0 : i32
    %c0_i32_1 = arith.constant 0 : i32
    return %arg0, %c0_i32, %c0_i32_0 : i32, i32, i32
  }
  func.func @transform_19(%arg0: i32, %arg1: i32) -> (i32, i32, i32) {
    %c0_i32 = arith.constant 0 : i32
    %c0_i32_0 = arith.constant 0 : i32
    %c0_i32_1 = arith.constant 0 : i32
    return %arg0, %c0_i32, %c0_i32_0 : i32, i32, i32
  }
  func.func @transform_20(%arg0: i32, %arg1: i32) -> (i32, i32) {
    %c0_i32 = arith.constant 0 : i32
    %c0_i32_0 = arith.constant 0 : i32
    %c0_i32_1 = arith.constant 0 : i32
    return %c0_i32, %c0_i32_0 : i32, i32
  }
  func.func @transform_21(%arg0: i32, %arg1: i32) -> (i32, i32) {
    %c0_i32 = arith.constant 0 : i32
    %c0_i32_0 = arith.constant 0 : i32
    %c0_i32_1 = arith.constant 0 : i32
    return %c0_i32, %c0_i32_0 : i32, i32
  }
  func.func @transform_22(%arg0: i32, %arg1: i32) -> (i32, i32) {
    %c0_i32 = arith.constant 0 : i32
    %c0_i32_0 = arith.constant 0 : i32
    %c0_i32_1 = arith.constant 0 : i32
    return %c0_i32, %c0_i32_0 : i32, i32
  }
  func.func @transform_23(%arg0: i32, %arg1: i32) -> (i32, i32) {
    %c0_i32 = arith.constant 0 : i32
    %c0_i32_0 = arith.constant 0 : i32
    %c0_i32_1 = arith.constant 0 : i32
    return %c0_i32, %c0_i32_0 : i32, i32
  }
  func.func @transform_24(%arg0: i32, %arg1: i32) -> (i32, i32) {
    %c0_i32 = arith.constant 0 : i32
    %c0_i32_0 = arith.constant 0 : i32
    %c0_i32_1 = arith.constant 0 : i32
    return %c0_i32, %c0_i32_0 : i32, i32
  }
  func.func @transform_25(%arg0: i32, %arg1: i32) -> (i32, i32) {
    %c0_i32 = arith.constant 0 : i32
    %c0_i32_0 = arith.constant 0 : i32
    %c0_i32_1 = arith.constant 0 : i32
    return %c0_i32, %c0_i32_0 : i32, i32
  }
  func.func @transform_26(%arg0: i32, %arg1: i32) -> (i32, i32) {
    %c0_i32 = arith.constant 0 : i32
    %c0_i32_0 = arith.constant 0 : i32
    %c0_i32_1 = arith.constant 0 : i32
    return %c0_i32, %c0_i32_0 : i32, i32
  }
  func.func @transform_27(%arg0: i32, %arg1: i32) -> (i32, i32) {
    %c0_i32 = arith.constant 0 : i32
    %c0_i32_0 = arith.constant 0 : i32
    %c0_i32_1 = arith.constant 0 : i32
    return %c0_i32, %c0_i32_0 : i32, i32
  }
  func.func @transform_28(%arg0: i32, %arg1: i32) -> (i32, i32) {
    %c0_i32 = arith.constant 0 : i32
    %c0_i32_0 = arith.constant 0 : i32
    %c0_i32_1 = arith.constant 0 : i32
    return %c0_i32, %c0_i32_0 : i32, i32
  }
}

</mosaic_0001>

<llo_original>
// kernel: mpnn_forward.1
$region0: #{mpnn_forward.1}
  #allocation0 [shape = 'u32[]', space=smem, size = 0x4, offset = 0x4, fixed_abs, tag = 'smem constant byte address 0x4 - core index']
  #allocation1 [shape = 'u32[144,128]{1,0:T(1,128)}', space=vmem, size = 0x12000, scoped, tag = 'internal scratch']
  #allocation2 [shape = 'f32[16,128]{1,0:T(8,128)}', space=vmem, size = 0x2000, scoped, tag = 'scratch operand']
  #allocation3 [shape = 'f32[16,128]{1,0:T(8,128)}', space=vmem, size = 0x2000, scoped, tag = 'scratch operand']
  %s0 = inlined_call_operand.vmem [shape: f32[16,4], index: 0, kind: input, shape index: {}]
  %s1 = inlined_call_operand.vmem [shape: f32[16,8], index: 1, kind: input, shape index: {}]
  %s2 = inlined_call_operand.vmem [shape: f32[32,1], index: 2, kind: input, shape index: {}]
  %s3 = inlined_call_operand.vmem [shape: bf16[32,16], index: 3, kind: input, shape index: {}]
  %s4 = inlined_call_operand.vmem [shape: bf16[32,16], index: 4, kind: input, shape index: {}]
  %s5 = inlined_call_operand.vmem [shape: bf16[2,16], index: 5, kind: input, shape index: {}]
  %s6 = inlined_call_operand.vmem [shape: f32[4,128], index: 6, kind: input, shape index: {}]
  %s7 = inlined_call_operand.vmem [shape: f32[8,128], index: 7, kind: input, shape index: {}]
  %s8 = inlined_call_operand.vmem [shape: f32[1,128], index: 8, kind: input, shape index: {}]
  %s9 = inlined_call_operand.vmem [shape: f32[2,128,128], index: 9, kind: input, shape index: {}]
  %s10 = inlined_call_operand.vmem [shape: f32[2,128,128], index: 10, kind: input, shape index: {}]
  %s11 = inlined_call_operand.vmem [shape: f32[2,1,128], index: 11, kind: input, shape index: {}]
  %s12 = inlined_call_operand.vmem [shape: f32[2,1,128], index: 12, kind: input, shape index: {}]
  %s13 = inlined_call_operand.vmem [shape: f32[2,128,128], index: 13, kind: input, shape index: {}]
  %s14 = inlined_call_operand.vmem [shape: f32[2,1,128], index: 14, kind: input, shape index: {}]
  %s15 = inlined_call_operand.hbm [shape: f32[2,128,128], index: 15, kind: input, shape index: {}]
  %s16 = inlined_call_operand.hbm [shape: f32[2,128,128], index: 16, kind: input, shape index: {}]
  %s17 = inlined_call_operand.vmem [shape: f32[2,1,128], index: 17, kind: input, shape index: {}]
  %s18 = inlined_call_operand.hbm [shape: f32[2,128,128], index: 18, kind: input, shape index: {}]
  %s19 = inlined_call_operand.vmem [shape: f32[2,1,128], index: 19, kind: input, shape index: {}]
  %s20 = inlined_call_operand.hbm [shape: f32[128,128], index: 20, kind: input, shape index: {}]
  %s21 = inlined_call_operand.vmem [shape: f32[1,128], index: 21, kind: input, shape index: {}]
  %s22 = inlined_call_operand.hbm [shape: f32[128,128], index: 22, kind: input, shape index: {}]
  %s23 = inlined_call_operand.vmem [shape: f32[1,128], index: 23, kind: input, shape index: {}]
  %s24 = inlined_call_operand.hbm [shape: f32[128,128], index: 24, kind: input, shape index: {}]
  %s25 = inlined_call_operand.vmem [shape: f32[1,128], index: 25, kind: input, shape index: {}]
  %s26 = inlined_call_operand.hbm [shape: f32[128,128], index: 26, kind: input, shape index: {}]
  %s27 = inlined_call_operand.hbm [shape: f32[1,128], index: 27, kind: input, shape index: {}]
  %s28 = inlined_call_operand.hbm [shape: f32[2,128], index: 28, kind: output, shape index: {}]
  %s29 = sld [smem:[#allocation0]]
  $region193: #{mpnn_forward.1} parent=0
    _
  %s31 = ssub.s32 1, %s29
  %s32 = scalar_select 0, %s31, %s29
  $region1: #{mpnn_forward.1} parent=0
    #allocation4 [shape = 'u8[131072]{0}', space=vmem, size = 0x20000, scoped, tag = 'input window, operand 15']
    #allocation5 [shape = 's32[2]{0}', space=sflag, size = 0x8, scoped, tag = 'scoped memory for mpnn_forward.1']
    #allocation6 [shape = 's32[2]{0}', space=sflag, size = 0x8, scoped, tag = 'scoped memory for mpnn_forward.1']
    #allocation7 [shape = 'u8[131072]{0}', space=vmem, size = 0x20000, scoped, tag = 'input window, operand 16']
    #allocation8 [shape = 's32[2]{0}', space=sflag, size = 0x8, scoped, tag = 'scoped memory for mpnn_forward.1']
    #allocation9 [shape = 'u8[131072]{0}', space=vmem, size = 0x20000, scoped, tag = 'input window, operand 18']
    #allocation10 [shape = 'u8[65536]{0}', space=vmem, size = 0x10000, scoped, tag = 'input window, operand 20, single buffered']
    #allocation11 [shape = 's32[1]{0}', space=sflag, size = 0x4, scoped, tag = 'scoped memory for mpnn_forward.1']
    #allocation12 [shape = 'u8[65536]{0}', space=vmem, size = 0x10000, scoped, tag = 'input window, operand 22, single buffered']
    #allocation13 [shape = 'u8[65536]{0}', space=vmem, size = 0x10000, scoped, tag = 'input window, operand 24, single buffered']
    #allocation14 [shape = 's32[1]{0}', space=sflag, size = 0x4, scoped, tag = 'scoped memory for mpnn_forward.1']
    #allocation15 [shape = 'u8[65536]{0}', space=vmem, size = 0x10000, scoped, tag = 'input window, operand 26, single buffered']
    #allocation16 [shape = 'u8[512]{0}', space=vmem, size = 0x400, scoped, tag = 'input window, operand 27, single buffered']
    #allocation17 [shape = 's32[1]{0}', space=sflag, size = 0x4, scoped, tag = 'scoped memory for mpnn_forward.1']
    #allocation18 [shape = 'u8[1024]{0}', space=vmem, size = 0x400, scoped, tag = 'output window, operand 0, single buffered']
    %33 = vsyncpa [#allocation5], 0
    %s34 = scalar_lea.sflag [#allocation5], 1
    %35 = vsyncpa %s34, 0
    %36 = vsyncpa [#allocation8], 0
    %s37 = scalar_lea.sflag [#allocation8], 1
    %38 = vsyncpa %s37, 0
    %39 = vsyncpa [#allocation11], 0
    %40 = vsyncpa [#allocation14], 0
    %41 = vsyncpa [#allocation17], 0
    %42 = vsyncpa [#allocation6], 0
    loop: start=0, step=1, limit=6
    $region2: #{mpnn_forward.1} parent=1 // loop_pre_header
      _
    $region3: #{mpnn_forward.1} parent=1 // loop_header
      %s44 = sphi 0, %s48
      %p45 = scmp.ge.s32.totalorder %s44, 6
      %s51 = sphi 0, %s63
      %s52 = sphi 0, %s59
      %s53 = sphi 0, %s51
      %s54 = sphi 0, %s52
      %s55 = sphi 0, %s53
      %s56 = sphi 0, %s54
      %s64 = sphi 0, %s64
      %s66 = sphi 0, %s64
      %s67 = sphi 0, %s66
      %s81 = sphi 0, %s67
      %s85 = sphi 0, %s85
      %s87 = sphi 0, %s85
      %s88 = sphi 0, %s87
      %s102 = sphi 0, %s88
      %s108 = sphi 0, %s110
      %s111 = sphi 0, %s108
      %s112 = sphi 0, %s111
      %s128 = sphi 0, %s112
      %s134 = sphi 0, %s136
      %s137 = sphi 0, %s134
      %s138 = sphi 0, %s137
      %s154 = sphi 0, %s138
      %s160 = sphi 0, %s162
      %s163 = sphi 0, %s160
      %s164 = sphi 0, %s163
      %s180 = sphi 0, %s164
      %s184 = sphi 0, %s184
      %s186 = sphi 0, %s184
      %s187 = sphi 0, %s186
      %s201 = sphi 0, %s187
      %s205 = sphi 0, %s205
      %s207 = sphi 0, %s205
      %s208 = sphi 0, %s207
      %s222 = sphi 0, %s208
      %s226 = sphi 0, %s226
      %s228 = sphi 0, %s226
      %s229 = sphi 0, %s228
      %s243 = sphi 0, %s229
      %s247 = sphi 0, %s247
      %s249 = sphi 0, %s247
      %s250 = sphi 0, %s249
      %s264 = sphi 0, %s250
      %s270 = sphi 0, %s272
      %s273 = sphi 0, %s270
      %s274 = sphi 0, %s273
      %s290 = sphi 0, %s274
      %s296 = sphi 0, %s298
      %s299 = sphi 0, %s296
      %s300 = sphi 0, %s299
      %s316 = sphi 0, %s300
      %s322 = sphi 0, %s324
      %s325 = sphi 0, %s322
      %s326 = sphi 0, %s325
      %s342 = sphi 0, %s326
      %s348 = sphi 0, %s350
      %s351 = sphi 0, %s348
      %s352 = sphi 0, %s351
      %s368 = sphi 0, %s352
      %s374 = sphi 0, %s376
      %s377 = sphi 0, %s374
      %s378 = sphi 0, %s377
      %s394 = sphi 0, %s378
      %s400 = sphi 0, %s402
      %s403 = sphi 0, %s400
      %s404 = sphi 0, %s403
      %s420 = sphi 0, %s404
      %s426 = sphi 0, %s428
      %s429 = sphi 0, %s426
      %s430 = sphi 0, %s429
      %s446 = sphi 0, %s430
      %s452 = sphi 0, %s454
      %s455 = sphi 0, %s452
      %s456 = sphi 0, %s455
      %s472 = sphi 0, %s456
      %s478 = sphi 0, %s480
      %s481 = sphi 0, %s478
      %s482 = sphi 0, %s481
      %s498 = sphi 0, %s482
      %s504 = sphi 0, %s506
      %s507 = sphi 0, %s504
      %s508 = sphi 0, %s507
      %s524 = sphi 0, %s508
      %s530 = sphi 0, %s532
      %s533 = sphi 0, %s530
      %s534 = sphi 0, %s533
      %s550 = sphi 0, %s534
      %s554 = sphi 0, %s554
      %s556 = sphi 0, %s554
      %s557 = sphi 0, %s556
      %s571 = sphi 0, %s557
      %s575 = sphi 0, %s575
      %s577 = sphi 0, %s575
      %s578 = sphi 0, %s577
      %s592 = sphi 0, %s578
      %s596 = sphi 0, %s596
      %s598 = sphi 0, %s596
      %s599 = sphi 0, %s598
      %s613 = sphi 0, %s599
      %s617 = sphi 0, %s617
      %s619 = sphi 0, %s617
      %s620 = sphi 0, %s619
      %s634 = sphi 0, %s620
      %s638 = sphi 0, %s638
      %s640 = sphi 0, %s638
      %s641 = sphi 0, %s640
      %s655 = sphi 0, %s641
      %s659 = sphi 0, %s659
      %s661 = sphi 0, %s659
      %s662 = sphi 0, %s661
      %s676 = sphi 0, %s662
      %s680 = sphi 0, %s680
      %s682 = sphi 0, %s680
      %s683 = sphi 0, %s682
      %s697 = sphi 0, %s683
      %s701 = sphi 0, %s701
      %s703 = sphi 0, %s701
      %s704 = sphi 0, %s703
      %s718 = sphi 0, %s704
      %s722 = sphi 0, %s722
      %s724 = sphi 0, %s722
      %s725 = sphi 0, %s724
      %s739 = sphi 0, %s725
    $region4: #{mpnn_forward.1} parent=1 // loop_header_branch
      %47 = sbr.rel (%p45) target = $region8
    $region5: #{mpnn_forward.1} parent=1 // loop_body
      %s49 = ssub.s32 %s44, 1
      %s50 = ssub.s32 %s44, 2
      %s57 = sadd.s32 1, %s52
      %p58 = scmp.ge.s32.totalorder %s57, 2
      %s59 = scalar_select %p58, 0, %s57
      %s60 = sadd.s32 1, %s51
      %s61 = scalar_select %p58, %s60, %s51
      %p62 = scmp.ge.s32.totalorder %s61, 2
      %s63 = scalar_select %p62, 0, %s61
      %s65 = sadd.s32 %s64, 1
      %p68 = scmp.eq.s32.totalorder %s44, 3
      %p69 = scmp.ne.s32.totalorder %s64, %s66
      %p70 = scmp.eq.s32.totalorder %s44, 0
      %p71 = por %p69, %p70
      %p72 = scmp.ne.s32.totalorder %s64, %s66
      %p73 = scmp.eq.s32.totalorder %s49, 3
      %p74 = por %p72, %p73
      %p75 = scmp.ne.s32.totalorder %s66, %s67
      %p76 = scmp.eq.s32.totalorder %s49, 0
      %p77 = por %p75, %p76
      %p78 = scmp.ne.s32.totalorder %s66, %s67
      %p79 = scmp.eq.s32.totalorder %s50, 3
      %p80 = por %p78, %p79
      %p82 = scmp.ne.s32.totalorder %s67, %s81
      %p83 = scmp.eq.s32.totalorder %s50, 0
      %p84 = por %p82, %p83
      %s86 = sadd.s32 %s85, 1
      %p89 = scmp.eq.s32.totalorder %s44, 3
      %p90 = scmp.ne.s32.totalorder %s85, %s87
      %p91 = scmp.eq.s32.totalorder %s44, 0
      %p92 = por %p90, %p91
      %p93 = scmp.ne.s32.totalorder %s85, %s87
      %p94 = scmp.eq.s32.totalorder %s49, 3
      %p95 = por %p93, %p94
      %p96 = scmp.ne.s32.totalorder %s87, %s88
      %p97 = scmp.eq.s32.totalorder %s49, 0
      %p98 = por %p96, %p97
      %p99 = scmp.ne.s32.totalorder %s87, %s88
      %p100 = scmp.eq.s32.totalorder %s50, 3
      %p101 = por %p99, %p100
      %p103 = scmp.ne.s32.totalorder %s88, %s102
      %p104 = scmp.eq.s32.totalorder %s50, 0
      %p105 = por %p103, %p104
      %s106 = ssub.s32 %s52, %s59
      %p107 = scmp.eq.s32.totalorder %s106, 0
      %s109 = sadd.s32 %s108, 1
      %s110 = scalar_select %p107, %s108, %s109
      %p113 = pneg %p107
      %p114 = scmp.eq.s32.totalorder %s44, 3
      %p115 = por %p113, %p114
      %p116 = scmp.ne.s32.totalorder %s108, %s111
      %p117 = scmp.eq.s32.totalorder %s44, 0
      %p118 = por %p116, %p117
      %p119 = scmp.ne.s32.totalorder %s108, %s111
      %p120 = scmp.eq.s32.totalorder %s49, 3
      %p121 = por %p119, %p120
      %p122 = scmp.ne.s32.totalorder %s111, %s112
      %p123 = scmp.eq.s32.totalorder %s49, 0
      %p124 = por %p122, %p123
      %p125 = scmp.ne.s32.totalorder %s111, %s112
      %p126 = scmp.eq.s32.totalorder %s50, 3
      %p127 = por %p125, %p126
      %p129 = scmp.ne.s32.totalorder %s112, %s128
      %p130 = scmp.eq.s32.totalorder %s50, 0
      %p131 = por %p129, %p130
      %s132 = ssub.s32 %s52, %s59
      %p133 = scmp.eq.s32.totalorder %s132, 0
      %s135 = sadd.s32 %s134, 1
      %s136 = scalar_select %p133, %s134, %s135
      %p139 = pneg %p133
      %p140 = scmp.eq.s32.totalorder %s44, 3
      %p141 = por %p139, %p140
      %p142 = scmp.ne.s32.totalorder %s134, %s137
      %p143 = scmp.eq.s32.totalorder %s44, 0
      %p144 = por %p142, %p143
      %p145 = scmp.ne.s32.totalorder %s134, %s137
      %p146 = scmp.eq.s32.totalorder %s49, 3
      %p147 = por %p145, %p146
      %p148 = scmp.ne.s32.totalorder %s137, %s138
      %p149 = scmp.eq.s32.totalorder %s49, 0
      %p150 = por %p148, %p149
      %p151 = scmp.ne.s32.totalorder %s137, %s138
      %p152 = scmp.eq.s32.totalorder %s50, 3
      %p153 = por %p151, %p152
      %p155 = scmp.ne.s32.totalorder %s138, %s154
      %p156 = scmp.eq.s32.totalorder %s50, 0
      %p157 = por %p155, %p156
      %s158 = ssub.s32 %s52, %s59
      %p159 = scmp.eq.s32.totalorder %s158, 0
      %s161 = sadd.s32 %s160, 1
      %s162 = scalar_select %p159, %s160, %s161
      %p165 = pneg %p159
      %p166 = scmp.eq.s32.totalorder %s44, 3
      %p167 = por %p165, %p166
      %p168 = scmp.ne.s32.totalorder %s160, %s163
      %p169 = scmp.eq.s32.totalorder %s44, 0
      %p170 = por %p168, %p169
      %p171 = scmp.ne.s32.totalorder %s160, %s163
      %p172 = scmp.eq.s32.totalorder %s49, 3
      %p173 = por %p171, %p172
      %p174 = scmp.ne.s32.totalorder %s163, %s164
      %p175 = scmp.eq.s32.totalorder %s49, 0
      %p176 = por %p174, %p175
      %p177 = scmp.ne.s32.totalorder %s163, %s164
      %p178 = scmp.eq.s32.totalorder %s50, 3
      %p179 = por %p177, %p178
      %p181 = scmp.ne.s32.totalorder %s164, %s180
      %p182 = scmp.eq.s32.totalorder %s50, 0
      %p183 = por %p181, %p182
      %s185 = sadd.s32 %s184, 1
      %p188 = scmp.eq.s32.totalorder %s44, 3
      %p189 = scmp.ne.s32.totalorder %s184, %s186
      %p190 = scmp.eq.s32.totalorder %s44, 0
      %p191 = por %p189, %p190
      %p192 = scmp.ne.s32.totalorder %s184, %s186
      %p193 = scmp.eq.s32.totalorder %s49, 3
      %p194 = por %p192, %p193
      %p195 = scmp.ne.s32.totalorder %s186, %s187
      %p196 = scmp.eq.s32.totalorder %s49, 0
      %p197 = por %p195, %p196
      %p198 = scmp.ne.s32.totalorder %s186, %s187
      %p199 = scmp.eq.s32.totalorder %s50, 3
      %p200 = por %p198, %p199
      %p202 = scmp.ne.s32.totalorder %s187, %s201
      %p203 = scmp.eq.s32.totalorder %s50, 0
      %p204 = por %p202, %p203
      %s206 = sadd.s32 %s205, 1
      %p209 = scmp.eq.s32.totalorder %s44, 3
      %p210 = scmp.ne.s32.totalorder %s205, %s207
      %p211 = scmp.eq.s32.totalorder %s44, 0
      %p212 = por %p210, %p211
      %p213 = scmp.ne.s32.totalorder %s205, %s207
      %p214 = scmp.eq.s32.totalorder %s49, 3
      %p215 = por %p213, %p214
      %p216 = scmp.ne.s32.totalorder %s207, %s208
      %p217 = scmp.eq.s32.totalorder %s49, 0
      %p218 = por %p216, %p217
      %p219 = scmp.ne.s32.totalorder %s207, %s208
      %p220 = scmp.eq.s32.totalorder %s50, 3
      %p221 = por %p219, %p220
      %p223 = scmp.ne.s32.totalorder %s208, %s222
      %p224 = scmp.eq.s32.totalorder %s50, 0
      %p225 = por %p223, %p224
      %s227 = sadd.s32 %s226, 1
      %p230 = scmp.eq.s32.totalorder %s44, 3
      %p231 = scmp.ne.s32.totalorder %s226, %s228
      %p232 = scmp.eq.s32.totalorder %s44, 0
      %p233 = por %p231, %p232
      %p234 = scmp.ne.s32.totalorder %s226, %s228
      %p235 = scmp.eq.s32.totalorder %s49, 3
      %p236 = por %p234, %p235
      %p237 = scmp.ne.s32.totalorder %s228, %s229
      %p238 = scmp.eq.s32.totalorder %s49, 0
      %p239 = por %p237, %p238
      %p240 = scmp.ne.s32.totalorder %s228, %s229
      %p241 = scmp.eq.s32.totalorder %s50, 3
      %p242 = por %p240, %p241
      %p244 = scmp.ne.s32.totalorder %s229, %s243
      %p245 = scmp.eq.s32.totalorder %s50, 0
      %p246 = por %p244, %p245
      %s248 = sadd.s32 %s247, 1
      %p251 = scmp.eq.s32.totalorder %s44, 3
      %p252 = scmp.ne.s32.totalorder %s247, %s249
      %p253 = scmp.eq.s32.totalorder %s44, 0
      %p254 = por %p252, %p253
      %p255 = scmp.ne.s32.totalorder %s247, %s249
      %p256 = scmp.eq.s32.totalorder %s49, 3
      %p257 = por %p255, %p256
      %p258 = scmp.ne.s32.totalorder %s249, %s250
      %p259 = scmp.eq.s32.totalorder %s49, 0
      %p260 = por %p258, %p259
      %p261 = scmp.ne.s32.totalorder %s249, %s250
      %p262 = scmp.eq.s32.totalorder %s50, 3
      %p263 = por %p261, %p262
      %p265 = scmp.ne.s32.totalorder %s250, %s264
      %p266 = scmp.eq.s32.totalorder %s50, 0
      %p267 = por %p265, %p266
      %s268 = ssub.s32 %s51, %s63
      %p269 = scmp.eq.s32.totalorder %s268, 0
      %s271 = sadd.s32 %s270, 1
      %s272 = scalar_select %p269, %s270, %s271
      %p275 = pneg %p269
      %p276 = scmp.eq.s32.totalorder %s44, 3
      %p277 = por %p275, %p276
      %p278 = scmp.ne.s32.totalorder %s270, %s273
      %p279 = scmp.eq.s32.totalorder %s44, 0
      %p280 = por %p278, %p279
      %p281 = scmp.ne.s32.totalorder %s270, %s273
      %p282 = scmp.eq.s32.totalorder %s49, 3
      %p283 = por %p281, %p282
      %p284 = scmp.ne.s32.totalorder %s273, %s274
      %p285 = scmp.eq.s32.totalorder %s49, 0
      %p286 = por %p284, %p285
      %p287 = scmp.ne.s32.totalorder %s273, %s274
      %p288 = scmp.eq.s32.totalorder %s50, 3
      %p289 = por %p287, %p288
      %p291 = scmp.ne.s32.totalorder %s274, %s290
      %p292 = scmp.eq.s32.totalorder %s50, 0
      %p293 = por %p291, %p292
      %s294 = ssub.s32 %s51, %s63
      %p295 = scmp.eq.s32.totalorder %s294, 0
      %s297 = sadd.s32 %s296, 1
      %s298 = scalar_select %p295, %s296, %s297
      %p301 = pneg %p295
      %p302 = scmp.eq.s32.totalorder %s44, 3
      %p303 = por %p301, %p302
      %p304 = scmp.ne.s32.totalorder %s296, %s299
      %p305 = scmp.eq.s32.totalorder %s44, 0
      %p306 = por %p304, %p305
      %p307 = scmp.ne.s32.totalorder %s296, %s299
      %p308 = scmp.eq.s32.totalorder %s49, 3
      %p309 = por %p307, %p308
      %p310 = scmp.ne.s32.totalorder %s299, %s300
      %p311 = scmp.eq.s32.totalorder %s49, 0
      %p312 = por %p310, %p311
      %p313 = scmp.ne.s32.totalorder %s299, %s300
      %p314 = scmp.eq.s32.totalorder %s50, 3
      %p315 = por %p313, %p314
      %p317 = scmp.ne.s32.totalorder %s300, %s316
      %p318 = scmp.eq.s32.totalorder %s50, 0
      %p319 = por %p317, %p318
      %s320 = ssub.s32 %s51, %s63
      %p321 = scmp.eq.s32.totalorder %s320, 0
      %s323 = sadd.s32 %s322, 1
      %s324 = scalar_select %p321, %s322, %s323
      %p327 = pneg %p321
      %p328 = scmp.eq.s32.totalorder %s44, 3
      %p329 = por %p327, %p328
      %p330 = scmp.ne.s32.totalorder %s322, %s325
      %p331 = scmp.eq.s32.totalorder %s44, 0
      %p332 = por %p330, %p331
      %p333 = scmp.ne.s32.totalorder %s322, %s325
      %p334 = scmp.eq.s32.totalorder %s49, 3
      %p335 = por %p333, %p334
      %p336 = scmp.ne.s32.totalorder %s325, %s326
      %p337 = scmp.eq.s32.totalorder %s49, 0
      %p338 = por %p336, %p337
      %p339 = scmp.ne.s32.totalorder %s325, %s326
      %p340 = scmp.eq.s32.totalorder %s50, 3
      %p341 = por %p339, %p340
      %p343 = scmp.ne.s32.totalorder %s326, %s342
      %p344 = scmp.eq.s32.totalorder %s50, 0
      %p345 = por %p343, %p344
      %s346 = ssub.s32 %s51, %s63
      %p347 = scmp.eq.s32.totalorder %s346, 0
      %s349 = sadd.s32 %s348, 1
      %s350 = scalar_select %p347, %s348, %s349
      %p353 = pneg %p347
      %p354 = scmp.eq.s32.totalorder %s44, 3
      %p355 = por %p353, %p354
      %p356 = scmp.ne.s32.totalorder %s348, %s351
      %p357 = scmp.eq.s32.totalorder %s44, 0
      %p358 = por %p356, %p357
      %p359 = scmp.ne.s32.totalorder %s348, %s351
      %p360 = scmp.eq.s32.totalorder %s49, 3
      %p361 = por %p359, %p360
      %p362 = scmp.ne.s32.totalorder %s351, %s352
      %p363 = scmp.eq.s32.totalorder %s49, 0
      %p364 = por %p362, %p363
      %p365 = scmp.ne.s32.totalorder %s351, %s352
      %p366 = scmp.eq.s32.totalorder %s50, 3
      %p367 = por %p365, %p366
      %p369 = scmp.ne.s32.totalorder %s352, %s368
      %p370 = scmp.eq.s32.totalorder %s50, 0
      %p371 = por %p369, %p370
      %s372 = ssub.s32 %s51, %s63
      %p373 = scmp.eq.s32.totalorder %s372, 0
      %s375 = sadd.s32 %s374, 1
      %s376 = scalar_select %p373, %s374, %s375
      %p379 = pneg %p373
      %p380 = scmp.eq.s32.totalorder %s44, 3
      %p381 = por %p379, %p380
      %p382 = scmp.ne.s32.totalorder %s374, %s377
      %p383 = scmp.eq.s32.totalorder %s44, 0
      %p384 = por %p382, %p383
      %p385 = scmp.ne.s32.totalorder %s374, %s377
      %p386 = scmp.eq.s32.totalorder %s49, 3
      %p387 = por %p385, %p386
      %p388 = scmp.ne.s32.totalorder %s377, %s378
      %p389 = scmp.eq.s32.totalorder %s49, 0
      %p390 = por %p388, %p389
      %p391 = scmp.ne.s32.totalorder %s377, %s378
      %p392 = scmp.eq.s32.totalorder %s50, 3
      %p393 = por %p391, %p392
      %p395 = scmp.ne.s32.totalorder %s378, %s394
      %p396 = scmp.eq.s32.totalorder %s50, 0
      %p397 = por %p395, %p396
      %s398 = ssub.s32 %s51, %s63
      %p399 = scmp.eq.s32.totalorder %s398, 0
      %s401 = sadd.s32 %s400, 1
      %s402 = scalar_select %p399, %s400, %s401
      %p405 = pneg %p399
      %p406 = scmp.eq.s32.totalorder %s44, 3
      %p407 = por %p405, %p406
      %p408 = scmp.ne.s32.totalorder %s400, %s403
      %p409 = scmp.eq.s32.totalorder %s44, 0
      %p410 = por %p408, %p409
      %p411 = scmp.ne.s32.totalorder %s400, %s403
      %p412 = scmp.eq.s32.totalorder %s49, 3
      %p413 = por %p411, %p412
      %p414 = scmp.ne.s32.totalorder %s403, %s404
      %p415 = scmp.eq.s32.totalorder %s49, 0
      %p416 = por %p414, %p415
      %p417 = scmp.ne.s32.totalorder %s403, %s404
      %p418 = scmp.eq.s32.totalorder %s50, 3
      %p419 = por %p417, %p418
      %p421 = scmp.ne.s32.totalorder %s404, %s420
      %p422 = scmp.eq.s32.totalorder %s50, 0
      %p423 = por %p421, %p422
      %s424 = ssub.s32 %s51, %s63
      %p425 = scmp.eq.s32.totalorder %s424, 0
      %s427 = sadd.s32 %s426, 1
      %s428 = scalar_select %p425, %s426, %s427
      %p431 = pneg %p425
      %p432 = scmp.eq.s32.totalorder %s44, 3
      %p433 = por %p431, %p432
      %p434 = scmp.ne.s32.totalorder %s426, %s429
      %p435 = scmp.eq.s32.totalorder %s44, 0
      %p436 = por %p434, %p435
      %p437 = scmp.ne.s32.totalorder %s426, %s429
      %p438 = scmp.eq.s32.totalorder %s49, 3
      %p439 = por %p437, %p438
      %p440 = scmp.ne.s32.totalorder %s429, %s430
      %p441 = scmp.eq.s32.totalorder %s49, 0
      %p442 = por %p440, %p441
      %p443 = scmp.ne.s32.totalorder %s429, %s430
      %p444 = scmp.eq.s32.totalorder %s50, 3
      %p445 = por %p443, %p444
      %p447 = scmp.ne.s32.totalorder %s430, %s446
      %p448 = scmp.eq.s32.totalorder %s50, 0
      %p449 = por %p447, %p448
      %s450 = ssub.s32 %s51, %s63
      %p451 = scmp.eq.s32.totalorder %s450, 0
      %s453 = sadd.s32 %s452, 1
      %s454 = scalar_select %p451, %s452, %s453
      %p457 = pneg %p451
      %p458 = scmp.eq.s32.totalorder %s44, 3
      %p459 = por %p457, %p458
      %p460 = scmp.ne.s32.totalorder %s452, %s455
      %p461 = scmp.eq.s32.totalorder %s44, 0
      %p462 = por %p460, %p461
      %p463 = scmp.ne.s32.totalorder %s452, %s455
      %p464 = scmp.eq.s32.totalorder %s49, 3
      %p465 = por %p463, %p464
      %p466 = scmp.ne.s32.totalorder %s455, %s456
      %p467 = scmp.eq.s32.totalorder %s49, 0
      %p468 = por %p466, %p467
      %p469 = scmp.ne.s32.totalorder %s455, %s456
      %p470 = scmp.eq.s32.totalorder %s50, 3
      %p471 = por %p469, %p470
      %p473 = scmp.ne.s32.totalorder %s456, %s472
      %p474 = scmp.eq.s32.totalorder %s50, 0
      %p475 = por %p473, %p474
      %s476 = ssub.s32 %s51, %s63
      %p477 = scmp.eq.s32.totalorder %s476, 0
      %s479 = sadd.s32 %s478, 1
      %s480 = scalar_select %p477, %s478, %s479
      %p483 = pneg %p477
      %p484 = scmp.eq.s32.totalorder %s44, 3
      %p485 = por %p483, %p484
      %p486 = scmp.ne.s32.totalorder %s478, %s481
      %p487 = scmp.eq.s32.totalorder %s44, 0
      %p488 = por %p486, %p487
      %p489 = scmp.ne.s32.totalorder %s478, %s481
      %p490 = scmp.eq.s32.totalorder %s49, 3
      %p491 = por %p489, %p490
      %p492 = scmp.ne.s32.totalorder %s481, %s482
      %p493 = scmp.eq.s32.totalorder %s49, 0
      %p494 = por %p492, %p493
      %p495 = scmp.ne.s32.totalorder %s481, %s482
      %p496 = scmp.eq.s32.totalorder %s50, 3
      %p497 = por %p495, %p496
      %p499 = scmp.ne.s32.totalorder %s482, %s498
      %p500 = scmp.eq.s32.totalorder %s50, 0
      %p501 = por %p499, %p500
      %s502 = ssub.s32 %s51, %s63
      %p503 = scmp.eq.s32.totalorder %s502, 0
      %s505 = sadd.s32 %s504, 1
      %s506 = scalar_select %p503, %s504, %s505
      %p509 = pneg %p503
      %p510 = scmp.eq.s32.totalorder %s44, 3
      %p511 = por %p509, %p510
      %p512 = scmp.ne.s32.totalorder %s504, %s507
      %p513 = scmp.eq.s32.totalorder %s44, 0
      %p514 = por %p512, %p513
      %p515 = scmp.ne.s32.totalorder %s504, %s507
      %p516 = scmp.eq.s32.totalorder %s49, 3
      %p517 = por %p515, %p516
      %p518 = scmp.ne.s32.totalorder %s507, %s508
      %p519 = scmp.eq.s32.totalorder %s49, 0
      %p520 = por %p518, %p519
      %p521 = scmp.ne.s32.totalorder %s507, %s508
      %p522 = scmp.eq.s32.totalorder %s50, 3
      %p523 = por %p521, %p522
      %p525 = scmp.ne.s32.totalorder %s508, %s524
      %p526 = scmp.eq.s32.totalorder %s50, 0
      %p527 = por %p525, %p526
      %s528 = ssub.s32 %s51, %s63
      %p529 = scmp.eq.s32.totalorder %s528, 0
      %s531 = sadd.s32 %s530, 1
      %s532 = scalar_select %p529, %s530, %s531
      %p535 = pneg %p529
      %p536 = scmp.eq.s32.totalorder %s44, 3
      %p537 = por %p535, %p536
      %p538 = scmp.ne.s32.totalorder %s530, %s533
      %p539 = scmp.eq.s32.totalorder %s44, 0
      %p540 = por %p538, %p539
      %p541 = scmp.ne.s32.totalorder %s530, %s533
      %p542 = scmp.eq.s32.totalorder %s49, 3
      %p543 = por %p541, %p542
      %p544 = scmp.ne.s32.totalorder %s533, %s534
      %p545 = scmp.eq.s32.totalorder %s49, 0
      %p546 = por %p544, %p545
      %p547 = scmp.ne.s32.totalorder %s533, %s534
      %p548 = scmp.eq.s32.totalorder %s50, 3
      %p549 = por %p547, %p548
      %p551 = scmp.ne.s32.totalorder %s534, %s550
      %p552 = scmp.eq.s32.totalorder %s50, 0
      %p553 = por %p551, %p552
      %s555 = sadd.s32 %s554, 1
      %p558 = scmp.eq.s32.totalorder %s44, 3
      %p559 = scmp.ne.s32.totalorder %s554, %s556
      %p560 = scmp.eq.s32.totalorder %s44, 0
      %p561 = por %p559, %p560
      %p562 = scmp.ne.s32.totalorder %s554, %s556
      %p563 = scmp.eq.s32.totalorder %s49, 3
      %p564 = por %p562, %p563
      %p565 = scmp.ne.s32.totalorder %s556, %s557
      %p566 = scmp.eq.s32.totalorder %s49, 0
      %p567 = por %p565, %p566
      %p568 = scmp.ne.s32.totalorder %s556, %s557
      %p569 = scmp.eq.s32.totalorder %s50, 3
      %p570 = por %p568, %p569
      %p572 = scmp.ne.s32.totalorder %s557, %s571
      %p573 = scmp.eq.s32.totalorder %s50, 0
      %p574 = por %p572, %p573
      %s576 = sadd.s32 %s575, 1
      %p579 = scmp.eq.s32.totalorder %s44, 3
      %p580 = scmp.ne.s32.totalorder %s575, %s577
      %p581 = scmp.eq.s32.totalorder %s44, 0
      %p582 = por %p580, %p581
      %p583 = scmp.ne.s32.totalorder %s575, %s577
      %p584 = scmp.eq.s32.totalorder %s49, 3
      %p585 = por %p583, %p584
      %p586 = scmp.ne.s32.totalorder %s577, %s578
      %p587 = scmp.eq.s32.totalorder %s49, 0
      %p588 = por %p586, %p587
      %p589 = scmp.ne.s32.totalorder %s577, %s578
      %p590 = scmp.eq.s32.totalorder %s50, 3
      %p591 = por %p589, %p590
      %p593 = scmp.ne.s32.totalorder %s578, %s592
      %p594 = scmp.eq.s32.totalorder %s50, 0
      %p595 = por %p593, %p594
      %s597 = sadd.s32 %s596, 1
      %p600 = scmp.eq.s32.totalorder %s44, 3
      %p601 = scmp.ne.s32.totalorder %s596, %s598
      %p602 = scmp.eq.s32.totalorder %s44, 0
      %p603 = por %p601, %p602
      %p604 = scmp.ne.s32.totalorder %s596, %s598
      %p605 = scmp.eq.s32.totalorder %s49, 3
      %p606 = por %p604, %p605
      %p607 = scmp.ne.s32.totalorder %s598, %s599
      %p608 = scmp.eq.s32.totalorder %s49, 0
      %p609 = por %p607, %p608
      %p610 = scmp.ne.s32.totalorder %s598, %s599
      %p611 = scmp.eq.s32.totalorder %s50, 3
      %p612 = por %p610, %p611
      %p614 = scmp.ne.s32.totalorder %s599, %s613
      %p615 = scmp.eq.s32.totalorder %s50, 0
      %p616 = por %p614, %p615
      %s618 = sadd.s32 %s617, 1
      %p621 = scmp.eq.s32.totalorder %s44, 3
      %p622 = scmp.ne.s32.totalorder %s617, %s619
      %p623 = scmp.eq.s32.totalorder %s44, 0
      %p624 = por %p622, %p623
      %p625 = scmp.ne.s32.totalorder %s617, %s619
      %p626 = scmp.eq.s32.totalorder %s49, 3
      %p627 = por %p625, %p626
      %p628 = scmp.ne.s32.totalorder %s619, %s620
      %p629 = scmp.eq.s32.totalorder %s49, 0
      %p630 = por %p628, %p629
      %p631 = scmp.ne.s32.totalorder %s619, %s620
      %p632 = scmp.eq.s32.totalorder %s50, 3
      %p633 = por %p631, %p632
      %p635 = scmp.ne.s32.totalorder %s620, %s634
      %p636 = scmp.eq.s32.totalorder %s50, 0
      %p637 = por %p635, %p636
      %s639 = sadd.s32 %s638, 1
      %p642 = scmp.eq.s32.totalorder %s44, 3
      %p643 = scmp.ne.s32.totalorder %s638, %s640
      %p644 = scmp.eq.s32.totalorder %s44, 0
      %p645 = por %p643, %p644
      %p646 = scmp.ne.s32.totalorder %s638, %s640
      %p647 = scmp.eq.s32.totalorder %s49, 3
      %p648 = por %p646, %p647
      %p649 = scmp.ne.s32.totalorder %s640, %s641
      %p650 = scmp.eq.s32.totalorder %s49, 0
      %p651 = por %p649, %p650
      %p652 = scmp.ne.s32.totalorder %s640, %s641
      %p653 = scmp.eq.s32.totalorder %s50, 3
      %p654 = por %p652, %p653
      %p656 = scmp.ne.s32.totalorder %s641, %s655
      %p657 = scmp.eq.s32.totalorder %s50, 0
      %p658 = por %p656, %p657
      %s660 = sadd.s32 %s659, 1
      %p663 = scmp.eq.s32.totalorder %s44, 3
      %p664 = scmp.ne.s32.totalorder %s659, %s661
      %p665 = scmp.eq.s32.totalorder %s44, 0
      %p666 = por %p664, %p665
      %p667 = scmp.ne.s32.totalorder %s659, %s661
      %p668 = scmp.eq.s32.totalorder %s49, 3
      %p669 = por %p667, %p668
      %p670 = scmp.ne.s32.totalorder %s661, %s662
      %p671 = scmp.eq.s32.totalorder %s49, 0
      %p672 = por %p670, %p671
      %p673 = scmp.ne.s32.totalorder %s661, %s662
      %p674 = scmp.eq.s32.totalorder %s50, 3
      %p675 = por %p673, %p674
      %p677 = scmp.ne.s32.totalorder %s662, %s676
      %p678 = scmp.eq.s32.totalorder %s50, 0
      %p679 = por %p677, %p678
      %s681 = sadd.s32 %s680, 1
      %p684 = scmp.eq.s32.totalorder %s44, 3
      %p685 = scmp.ne.s32.totalorder %s680, %s682
      %p686 = scmp.eq.s32.totalorder %s44, 0
      %p687 = por %p685, %p686
      %p688 = scmp.ne.s32.totalorder %s680, %s682
      %p689 = scmp.eq.s32.totalorder %s49, 3
      %p690 = por %p688, %p689
      %p691 = scmp.ne.s32.totalorder %s682, %s683
      %p692 = scmp.eq.s32.totalorder %s49, 0
      %p693 = por %p691, %p692
      %p694 = scmp.ne.s32.totalorder %s682, %s683
      %p695 = scmp.eq.s32.totalorder %s50, 3
      %p696 = por %p694, %p695
      %p698 = scmp.ne.s32.totalorder %s683, %s697
      %p699 = scmp.eq.s32.totalorder %s50, 0
      %p700 = por %p698, %p699
      %s702 = sadd.s32 %s701, 1
      %p705 = scmp.eq.s32.totalorder %s44, 3
      %p706 = scmp.ne.s32.totalorder %s701, %s703
      %p707 = scmp.eq.s32.totalorder %s44, 0
      %p708 = por %p706, %p707
      %p709 = scmp.ne.s32.totalorder %s701, %s703
      %p710 = scmp.eq.s32.totalorder %s49, 3
      %p711 = por %p709, %p710
      %p712 = scmp.ne.s32.totalorder %s703, %s704
      %p713 = scmp.eq.s32.totalorder %s49, 0
      %p714 = por %p712, %p713
      %p715 = scmp.ne.s32.totalorder %s703, %s704
      %p716 = scmp.eq.s32.totalorder %s50, 3
      %p717 = por %p715, %p716
      %p719 = scmp.ne.s32.totalorder %s704, %s718
      %p720 = scmp.eq.s32.totalorder %s50, 0
      %p721 = por %p719, %p720
      %s723 = sadd.s32 %s722, 1
      %p726 = scmp.eq.s32.totalorder %s44, 3
      %p727 = scmp.ne.s32.totalorder %s722, %s724
      %p728 = scmp.eq.s32.totalorder %s44, 0
      %p729 = por %p727, %p728
      %p730 = scmp.ne.s32.totalorder %s722, %s724
      %p731 = scmp.eq.s32.totalorder %s49, 3
      %p732 = por %p730, %p731
      %p733 = scmp.ne.s32.totalorder %s724, %s725
      %p734 = scmp.eq.s32.totalorder %s49, 0
      %p735 = por %p733, %p734
      %p736 = scmp.ne.s32.totalorder %s724, %s725
      %p737 = scmp.eq.s32.totalorder %s50, 3
      %p738 = por %p736, %p737
      %p740 = scmp.ne.s32.totalorder %s725, %s739
      %p741 = scmp.eq.s32.totalorder %s50, 0
      %p742 = por %p740, %p741
      %p743 = scmp.le.s32.totalorder 1, %s44
      %p744 = scmp.lt.s32.totalorder %s44, 5
      %p745 = pnand %p743, %p744
      %p746 = pneg %p745
      // Predicated region
      $region9: #{mpnn_forward.1} parent=5 // pred_check
        _
      $region10: #{mpnn_forward.1} parent=5 // pred_check_branch
        %748 = sbr.rel (%p745) target = $region12
      $region11: #{mpnn_forward.1} parent=5 // pred_region
        %s749 = ssub.s32 %s44, 1
        // Predicated region
        $region13: #{mpnn_forward.1} parent=11 // pred_check
          %p750 = pneg %p77
        $region14: #{mpnn_forward.1} parent=11 // pred_check_branch
          %752 = sbr.rel (%p750) target = $region16
        $region15: #{mpnn_forward.1} parent=11 // pred_region
          _
        $region16: #{mpnn_forward.1} parent=11 // pred_fallthru
          _
        // Predicated region
        $region17: #{mpnn_forward.1} parent=11 // pred_check
          %p753 = pneg %p98
        $region18: #{mpnn_forward.1} parent=11 // pred_check_branch
          %755 = sbr.rel (%p753) target = $region20
        $region19: #{mpnn_forward.1} parent=11 // pred_region
          _
        $region20: #{mpnn_forward.1} parent=11 // pred_fallthru
          _
        // Predicated region
        $region21: #{mpnn_forward.1} parent=11 // pred_check
          %p756 = pneg %p197
        $region22: #{mpnn_forward.1} parent=11 // pred_check_branch
          %758 = sbr.rel (%p756) target = $region24
        $region23: #{mpnn_forward.1} parent=11 // pred_region
          _
        $region24: #{mpnn_forward.1} parent=11 // pred_fallthru
          _
        // Predicated region
        $region25: #{mpnn_forward.1} parent=11 // pred_check
          %p759 = pneg %p218
        $region26: #{mpnn_forward.1} parent=11 // pred_check_branch
          %761 = sbr.rel (%p759) target = $region28
        $region27: #{mpnn_forward.1} parent=11 // pred_region
          _
        $region28: #{mpnn_forward.1} parent=11 // pred_fallthru
          _
        // Predicated region
        $region29: #{mpnn_forward.1} parent=11 // pred_check
          %p762 = pneg %p239
        $region30: #{mpnn_forward.1} parent=11 // pred_check_branch
          %764 = sbr.rel (%p762) target = $region32
        $region31: #{mpnn_forward.1} parent=11 // pred_region
          _
        $region32: #{mpnn_forward.1} parent=11 // pred_fallthru
          _
        // Predicated region
        $region33: #{mpnn_forward.1} parent=11 // pred_check
          %p765 = pneg %p260
        $region34: #{mpnn_forward.1} parent=11 // pred_check_branch
          %767 = sbr.rel (%p765) target = $region36
        $region35: #{mpnn_forward.1} parent=11 // pred_region
          _
        $region36: #{mpnn_forward.1} parent=11 // pred_fallthru
          _
        // Predicated region
        $region37: #{mpnn_forward.1} parent=11 // pred_check
          %p768 = pneg %p567
        $region38: #{mpnn_forward.1} parent=11 // pred_check_branch
          %770 = sbr.rel (%p768) target = $region40
        $region39: #{mpnn_forward.1} parent=11 // pred_region
          %s772 = ssub.s32 2048, 2048
          %773 = vsyncadd [#allocation11], %s772
          %s774 = sshll.u32 [#allocation10], 4
          %s775 = int_to_ptr.vmem [resolvable:$true] %s774
          %780 = dma.hbm_to_vmem [thread:$0]  %s20, 2048, %s775, [#allocation11], 128, 128, 8
        $region40: #{mpnn_forward.1} parent=11 // pred_fallthru
          _
        // Predicated region
        $region41: #{mpnn_forward.1} parent=11 // pred_check
          %p781 = pneg %p588
        $region42: #{mpnn_forward.1} parent=11 // pred_check_branch
          %783 = sbr.rel (%p781) target = $region44
        $region43: #{mpnn_forward.1} parent=11 // pred_region
          _
        $region44: #{mpnn_forward.1} parent=11 // pred_fallthru
          _
        // Predicated region
        $region45: #{mpnn_forward.1} parent=11 // pred_check
          %p784 = pneg %p609
        $region46: #{mpnn_forward.1} parent=11 // pred_check_branch
          %786 = sbr.rel (%p784) target = $region48
        $region47: #{mpnn_forward.1} parent=11 // pred_region
          %s788 = ssub.s32 2048, 2048
          %789 = vsyncadd [#allocation11], %s788
          %s790 = sshll.u32 [#allocation12], 4
          %s791 = int_to_ptr.vmem [resolvable:$true] %s790
          %796 = dma.hbm_to_vmem [thread:$0]  %s22, 2048, %s791, [#allocation11], 128, 128, 8
        $region48: #{mpnn_forward.1} parent=11 // pred_fallthru
          _
        // Predicated region
        $region49: #{mpnn_forward.1} parent=11 // pred_check
          %p797 = pneg %p630
        $region50: #{mpnn_forward.1} parent=11 // pred_check_branch
          %799 = sbr.rel (%p797) target = $region52
        $region51: #{mpnn_forward.1} parent=11 // pred_region
          _
        $region52: #{mpnn_forward.1} parent=11 // pred_fallthru
          _
        // Predicated region
        $region53: #{mpnn_forward.1} parent=11 // pred_check
          %p800 = pneg %p651
        $region54: #{mpnn_forward.1} parent=11 // pred_check_branch
          %802 = sbr.rel (%p800) target = $region56
        $region55: #{mpnn_forward.1} parent=11 // pred_region
          %s804 = ssub.s32 2048, 2048
          %805 = vsyncadd [#allocation14], %s804
          %s806 = sshll.u32 [#allocation13], 4
          %s807 = int_to_ptr.vmem [resolvable:$true] %s806
          %812 = dma.hbm_to_vmem [thread:$0]  %s24, 2048, %s807, [#allocation14], 128, 128, 8
        $region56: #{mpnn_forward.1} parent=11 // pred_fallthru
          _
        // Predicated region
        $region57: #{mpnn_forward.1} parent=11 // pred_check
          %p813 = pneg %p672
        $region58: #{mpnn_forward.1} parent=11 // pred_check_branch
          %815 = sbr.rel (%p813) target = $region60
        $region59: #{mpnn_forward.1} parent=11 // pred_region
          _
        $region60: #{mpnn_forward.1} parent=11 // pred_fallthru
          _
        // Predicated region
        $region61: #{mpnn_forward.1} parent=11 // pred_check
          %p816 = pneg %p693
        $region62: #{mpnn_forward.1} parent=11 // pred_check_branch
          %818 = sbr.rel (%p816) target = $region64
        $region63: #{mpnn_forward.1} parent=11 // pred_region
          %s820 = ssub.s32 2048, 2048
          %821 = vsyncadd [#allocation14], %s820
          %s822 = sshll.u32 [#allocation15], 4
          %s823 = int_to_ptr.vmem [resolvable:$true] %s822
          %828 = dma.hbm_to_vmem [thread:$0]  %s26, 2048, %s823, [#allocation14], 128, 128, 8
        $region64: #{mpnn_forward.1} parent=11 // pred_fallthru
          _
        // Predicated region
        $region65: #{mpnn_forward.1} parent=11 // pred_check
          %p829 = pneg %p714
        $region66: #{mpnn_forward.1} parent=11 // pred_check_branch
          %831 = sbr.rel (%p829) target = $region68
        $region67: #{mpnn_forward.1} parent=11 // pred_region
          %s833 = ssub.s32 16, 16
          %834 = vsyncadd [#allocation17], %s833
          %s836 = sshll.u32 [#allocation16], 4
          %s837 = int_to_ptr.vmem [resolvable:$true] %s836
          %839 = dma.hbm_to_vmem [thread:$0]  %s27, 16, %s837, [#allocation17]
        $region68: #{mpnn_forward.1} parent=11 // pred_fallthru
          _
      $region12: #{mpnn_forward.1} parent=5 // pred_fallthru
        _
      %p840 = scmp.lt.s32.totalorder %s44, 4
      // Predicated region
      $region69: #{mpnn_forward.1} parent=5 // pred_check
        %p841 = pneg %p840
      $region70: #{mpnn_forward.1} parent=5 // pred_check_branch
        %843 = sbr.rel (%p841) target = $region72
      $region71: #{mpnn_forward.1} parent=5 // pred_region
        // Predicated region
        $region73: #{mpnn_forward.1} parent=71 // pred_check
          %p844 = pneg %p118
        $region74: #{mpnn_forward.1} parent=71 // pred_check_branch
          %846 = sbr.rel (%p844) target = $region76
        $region75: #{mpnn_forward.1} parent=71 // pred_region
          %s847 = smul.u32 2, %s52
          %p848 = scmp.lt.s32.totalorder %s847, 3
          %s849 = scalar_select %p848, %s847, 3
          %s850 = smul.addr %s849, 8
          %s851 = scalar_lea.vmem %s2, %s850
          %s852 = smul.u32 2, %s52
        $region76: #{mpnn_forward.1} parent=71 // pred_fallthru
          _
        // Predicated region
        $region77: #{mpnn_forward.1} parent=71 // pred_check
          %p853 = pneg %p144
        $region78: #{mpnn_forward.1} parent=71 // pred_check_branch
          %855 = sbr.rel (%p853) target = $region80
        $region79: #{mpnn_forward.1} parent=71 // pred_region
          %s856 = smul.u32 2, %s52
          %p857 = scmp.lt.s32.totalorder %s856, 3
          %s858 = scalar_select %p857, %s856, 3
          %s859 = smul.addr %s858, 4
          %s860 = scalar_lea.vmem %s3, %s859
          %s861 = smul.u32 2, %s52
        $region80: #{mpnn_forward.1} parent=71 // pred_fallthru
          _
        // Predicated region
        $region81: #{mpnn_forward.1} parent=71 // pred_check
          %p862 = pneg %p170
        $region82: #{mpnn_forward.1} parent=71 // pred_check_branch
          %864 = sbr.rel (%p862) target = $region84
        $region83: #{mpnn_forward.1} parent=71 // pred_region
          %s865 = smul.u32 2, %s52
          %p866 = scmp.lt.s32.totalorder %s865, 3
          %s867 = scalar_select %p866, %s865, 3
          %s868 = smul.addr %s867, 4
          %s869 = scalar_lea.vmem %s4, %s868
          %s870 = smul.u32 2, %s52
        $region84: #{mpnn_forward.1} parent=71 // pred_fallthru
          _
        // Predicated region
        $region85: #{mpnn_forward.1} parent=71 // pred_check
          %p871 = pneg %p280
        $region86: #{mpnn_forward.1} parent=71 // pred_check_branch
          %873 = sbr.rel (%p871) target = $region88
        $region87: #{mpnn_forward.1} parent=71 // pred_region
          %p874 = scmp.lt.s32.totalorder %s51, 1
          %s875 = scalar_select %p874, %s51, 1
          %s876 = smul.addr %s875, 16
          %s877 = smul.addr %s876, 8
          %s878 = scalar_lea.vmem %s9, %s877
        $region88: #{mpnn_forward.1} parent=71 // pred_fallthru
          _
        // Predicated region
        $region89: #{mpnn_forward.1} parent=71 // pred_check
          %p879 = pneg %p306
        $region90: #{mpnn_forward.1} parent=71 // pred_check_branch
          %881 = sbr.rel (%p879) target = $region92
        $region91: #{mpnn_forward.1} parent=71 // pred_region
          %p882 = scmp.lt.s32.totalorder %s51, 1
          %s883 = scalar_select %p882, %s51, 1
          %s884 = smul.addr %s883, 16
          %s885 = smul.addr %s884, 8
          %s886 = scalar_lea.vmem %s10, %s885
        $region92: #{mpnn_forward.1} parent=71 // pred_fallthru
          _
        // Predicated region
        $region93: #{mpnn_forward.1} parent=71 // pred_check
          %p887 = pneg %p332
        $region94: #{mpnn_forward.1} parent=71 // pred_check_branch
          %889 = sbr.rel (%p887) target = $region96
        $region95: #{mpnn_forward.1} parent=71 // pred_region
          %p890 = scmp.lt.s32.totalorder %s51, 1
          %s891 = scalar_select %p890, %s51, 1
          %s892 = scalar_lea.vmem %s11, %s891
        $region96: #{mpnn_forward.1} parent=71 // pred_fallthru
          _
        // Predicated region
        $region97: #{mpnn_forward.1} parent=71 // pred_check
          %p893 = pneg %p358
        $region98: #{mpnn_forward.1} parent=71 // pred_check_branch
          %895 = sbr.rel (%p893) target = $region100
        $region99: #{mpnn_forward.1} parent=71 // pred_region
          %p896 = scmp.lt.s32.totalorder %s51, 1
          %s897 = scalar_select %p896, %s51, 1
          %s898 = scalar_lea.vmem %s12, %s897
        $region100: #{mpnn_forward.1} parent=71 // pred_fallthru
          _
        // Predicated region
        $region101: #{mpnn_forward.1} parent=71 // pred_check
          %p899 = pneg %p384
        $region102: #{mpnn_forward.1} parent=71 // pred_check_branch
          %901 = sbr.rel (%p899) target = $region104
        $region103: #{mpnn_forward.1} parent=71 // pred_region
          %p902 = scmp.lt.s32.totalorder %s51, 1
          %s903 = scalar_select %p902, %s51, 1
          %s904 = smul.addr %s903, 16
          %s905 = smul.addr %s904, 8
          %s906 = scalar_lea.vmem %s13, %s905
        $region104: #{mpnn_forward.1} parent=71 // pred_fallthru
          _
        // Predicated region
        $region105: #{mpnn_forward.1} parent=71 // pred_check
          %p907 = pneg %p410
        $region106: #{mpnn_forward.1} parent=71 // pred_check_branch
          %909 = sbr.rel (%p907) target = $region108
        $region107: #{mpnn_forward.1} parent=71 // pred_region
          %p910 = scmp.lt.s32.totalorder %s51, 1
          %s911 = scalar_select %p910, %s51, 1
          %s912 = scalar_lea.vmem %s14, %s911
        $region108: #{mpnn_forward.1} parent=71 // pred_fallthru
          _
        // Predicated region
        $region109: #{mpnn_forward.1} parent=71 // pred_check
          %p913 = pneg %p436
        $region110: #{mpnn_forward.1} parent=71 // pred_check_branch
          %915 = sbr.rel (%p913) target = $region112
        $region111: #{mpnn_forward.1} parent=71 // pred_region
          %s916 = sand.u32 %s426, 1
          %s917 = scalar_lea.sflag [#allocation5], %s916
          %s918 = sand.u32 %s426, 1
          %s919 = smul.addr %s918, 128
          %s920 = scalar_lea.vmem [#allocation4], %s919
          %s922 = ssub.s32 2048, 2048
          %923 = vsyncadd %s917, %s922
          %s924 = smul.addr %s51, 16
          %s925 = smul.addr %s924, 128
          %s926 = scalar_lea.hbm %s15, %s925
          %s927 = sshll.u32 %s920, 4
          %s928 = int_to_ptr.vmem [resolvable:$true] %s927
          %933 = dma.hbm_to_vmem [thread:$0]  %s926, 2048, %s928, %s917, 128, 128, 8
        $region112: #{mpnn_forward.1} parent=71 // pred_fallthru
          _
        // Predicated region
        $region113: #{mpnn_forward.1} parent=71 // pred_check
          %p934 = pneg %p462
        $region114: #{mpnn_forward.1} parent=71 // pred_check_branch
          %936 = sbr.rel (%p934) target = $region116
        $region115: #{mpnn_forward.1} parent=71 // pred_region
          %s937 = sand.u32 %s44, 1
          %s938 = scalar_lea.sflag [#allocation8], %s937
          %s939 = sand.u32 %s452, 1
          %s940 = smul.addr %s939, 128
          %s941 = scalar_lea.vmem [#allocation7], %s940
          %s943 = ssub.s32 2048, 2048
          %944 = vsyncadd %s938, %s943
          %s945 = smul.addr %s51, 16
          %s946 = smul.addr %s945, 128
          %s947 = scalar_lea.hbm %s16, %s946
          %s948 = sshll.u32 %s941, 4
          %s949 = int_to_ptr.vmem [resolvable:$true] %s948
          %954 = dma.hbm_to_vmem [thread:$0]  %s947, 2048, %s949, %s938, 128, 128, 8
        $region116: #{mpnn_forward.1} parent=71 // pred_fallthru
          _
        // Predicated region
        $region117: #{mpnn_forward.1} parent=71 // pred_check
          %p955 = pneg %p488
        $region118: #{mpnn_forward.1} parent=71 // pred_check_branch
          %957 = sbr.rel (%p955) target = $region120
        $region119: #{mpnn_forward.1} parent=71 // pred_region
          %p958 = scmp.lt.s32.totalorder %s51, 1
          %s959 = scalar_select %p958, %s51, 1
          %s960 = scalar_lea.vmem %s17, %s959
        $region120: #{mpnn_forward.1} parent=71 // pred_fallthru
          _
        // Predicated region
        $region121: #{mpnn_forward.1} parent=71 // pred_check
          %p961 = pneg %p514
        $region122: #{mpnn_forward.1} parent=71 // pred_check_branch
          %963 = sbr.rel (%p961) target = $region124
        $region123: #{mpnn_forward.1} parent=71 // pred_region
          %s964 = sand.u32 %s44, 1
          %s965 = scalar_lea.sflag [#allocation8], %s964
          %s966 = sand.u32 %s504, 1
          %s967 = smul.addr %s966, 128
          %s968 = scalar_lea.vmem [#allocation9], %s967
          %s970 = ssub.s32 2048, 2048
          %971 = vsyncadd %s965, %s970
          %s972 = smul.addr %s51, 16
          %s973 = smul.addr %s972, 128
          %s974 = scalar_lea.hbm %s18, %s973
          %s975 = sshll.u32 %s968, 4
          %s976 = int_to_ptr.vmem [resolvable:$true] %s975
          %981 = dma.hbm_to_vmem [thread:$0]  %s974, 2048, %s976, %s965, 128, 128, 8
        $region124: #{mpnn_forward.1} parent=71 // pred_fallthru
          _
        // Predicated region
        $region125: #{mpnn_forward.1} parent=71 // pred_check
          %p982 = pneg %p540
        $region126: #{mpnn_forward.1} parent=71 // pred_check_branch
          %984 = sbr.rel (%p982) target = $region128
        $region127: #{mpnn_forward.1} parent=71 // pred_region
          %p985 = scmp.lt.s32.totalorder %s51, 1
          %s986 = scalar_select %p985, %s51, 1
          %s987 = scalar_lea.vmem %s19, %s986
        $region128: #{mpnn_forward.1} parent=71 // pred_fallthru
          _
      $region72: #{mpnn_forward.1} parent=5 // pred_fallthru
        _
      %p988 = scmp.le.s32.totalorder 1, %s44
      %p989 = scmp.lt.s32.totalorder %s44, 5
      %p990 = pnand %p988, %p989
      %p991 = pneg %p990
      // Predicated region
      $region129: #{mpnn_forward.1} parent=5 // pred_check
        _
      $region130: #{mpnn_forward.1} parent=5 // pred_check_branch
        %993 = sbr.rel (%p990) target = $region132
      $region131: #{mpnn_forward.1} parent=5 // pred_region
        %s994 = ssub.s32 %s44, 1
        %s995 = sand.u32 %s429, 1
        %s996 = scalar_lea.sflag [#allocation5], %s995
        %s997 = sand.u32 %s429, 1
        %s998 = smul.addr %s997, 128
        %s999 = scalar_lea.vmem [#allocation4], %s998
        // Predicated region
        $region133: #{mpnn_forward.1} parent=131 // pred_check
          %p1000 = pneg %p442
        $region134: #{mpnn_forward.1} parent=131 // pred_check_branch
          %1002 = sbr.rel (%p1000) target = $region136
        $region135: #{mpnn_forward.1} parent=131 // pred_region
          %1003 = dma.done %s996, 2048
        $region136: #{mpnn_forward.1} parent=131 // pred_fallthru
          _
        %s1004 = sand.u32 %s49, 1
        %s1005 = scalar_lea.sflag [#allocation8], %s1004
        %s1006 = sand.u32 %s455, 1
        %s1007 = smul.addr %s1006, 128
        %s1008 = scalar_lea.vmem [#allocation7], %s1007
        // Predicated region
        $region137: #{mpnn_forward.1} parent=131 // pred_check
          %p1009 = pneg %p468
        $region138: #{mpnn_forward.1} parent=131 // pred_check_branch
          %1011 = sbr.rel (%p1009) target = $region140
        $region139: #{mpnn_forward.1} parent=131 // pred_region
          %1012 = dma.done %s1005, 2048
        $region140: #{mpnn_forward.1} parent=131 // pred_fallthru
          _
        %s1013 = sand.u32 %s49, 1
        %s1014 = scalar_lea.sflag [#allocation8], %s1013
        %s1015 = sand.u32 %s507, 1
        %s1016 = smul.addr %s1015, 128
        %s1017 = scalar_lea.vmem [#allocation9], %s1016
        // Predicated region
        $region141: #{mpnn_forward.1} parent=131 // pred_check
          %p1018 = pneg %p520
        $region142: #{mpnn_forward.1} parent=131 // pred_check_branch
          %1020 = sbr.rel (%p1018) target = $region144
        $region143: #{mpnn_forward.1} parent=131 // pred_region
          %1021 = dma.done %s1014, 2048
        $region144: #{mpnn_forward.1} parent=131 // pred_fallthru
          _
        // Predicated region
        $region145: #{mpnn_forward.1} parent=131 // pred_check
          %p1022 = pneg %p567
        $region146: #{mpnn_forward.1} parent=131 // pred_check_branch
          %1024 = sbr.rel (%p1022) target = $region148
        $region147: #{mpnn_forward.1} parent=131 // pred_region
          %1025 = dma.done [#allocation11], 2048
        $region148: #{mpnn_forward.1} parent=131 // pred_fallthru
          _
        // Predicated region
        $region149: #{mpnn_forward.1} parent=131 // pred_check
          %p1026 = pneg %p609
        $region150: #{mpnn_forward.1} parent=131 // pred_check_branch
          %1028 = sbr.rel (%p1026) target = $region152
        $region151: #{mpnn_forward.1} parent=131 // pred_region
          %1029 = dma.done [#allocation11], 2048
        $region152: #{mpnn_forward.1} parent=131 // pred_fallthru
          _
        // Predicated region
        $region153: #{mpnn_forward.1} parent=131 // pred_check
          %p1030 = pneg %p651
        $region154: #{mpnn_forward.1} parent=131 // pred_check_branch
          %1032 = sbr.rel (%p1030) target = $region156
        $region155: #{mpnn_forward.1} parent=131 // pred_region
          %1033 = dma.done [#allocation14], 2048
        $region156: #{mpnn_forward.1} parent=131 // pred_fallthru
          _
        // Predicated region
        $region157: #{mpnn_forward.1} parent=131 // pred_check
          %p1034 = pneg %p693
        $region158: #{mpnn_forward.1} parent=131 // pred_check_branch
          %1036 = sbr.rel (%p1034) target = $region160
        $region159: #{mpnn_forward.1} parent=131 // pred_region
          %1037 = dma.done [#allocation14], 2048
        $region160: #{mpnn_forward.1} parent=131 // pred_fallthru
          _
        // Predicated region
        $region161: #{mpnn_forward.1} parent=131 // pred_check
          %p1038 = pneg %p714
        $region162: #{mpnn_forward.1} parent=131 // pred_check_branch
          %1040 = sbr.rel (%p1038) target = $region164
        $region163: #{mpnn_forward.1} parent=131 // pred_region
          %1041 = dma.done [#allocation17], 16
        $region164: #{mpnn_forward.1} parent=131 // pred_fallthru
          _
        %p1042 = pneg %p77
        %p1043 = pneg %p74
        %p1044 = pneg %p98
        %p1045 = pneg %p95
        %s1046 = smul.u32 2, %s54
        %p1047 = scmp.lt.s32.totalorder %s1046, 3
        %s1048 = scalar_select %p1047, %s1046, 3
        %s1049 = smul.addr %s1048, 8
        %s1050 = scalar_lea.vmem %s2, %s1049
        %p1051 = pneg %p124
        %p1052 = pneg %p121
        %s1053 = smul.u32 2, %s54
        %p1054 = scmp.lt.s32.totalorder %s1053, 3
        %s1055 = scalar_select %p1054, %s1053, 3
        %s1056 = smul.addr %s1055, 4
        %s1057 = scalar_lea.vmem %s3, %s1056
        %p1058 = pneg %p150
        %p1059 = pneg %p147
        %s1060 = smul.u32 2, %s54
        %p1061 = scmp.lt.s32.totalorder %s1060, 3
        %s1062 = scalar_select %p1061, %s1060, 3
        %s1063 = smul.addr %s1062, 4
        %s1064 = scalar_lea.vmem %s4, %s1063
        %p1065 = pneg %p176
        %p1066 = pneg %p173
        %p1067 = pneg %p197
        %p1068 = pneg %p194
        %p1069 = pneg %p218
        %p1070 = pneg %p215
        %p1071 = pneg %p239
        %p1072 = pneg %p236
        %p1073 = pneg %p260
        %p1074 = pneg %p257
        %p1075 = scmp.lt.s32.totalorder %s53, 1
        %s1076 = scalar_select %p1075, %s53, 1
        %s1077 = smul.addr %s1076, 16
        %s1078 = smul.addr %s1077, 8
        %s1079 = scalar_lea.vmem %s9, %s1078
        %p1080 = pneg %p286
        %p1081 = pneg %p283
        %p1082 = scmp.lt.s32.totalorder %s53, 1
        %s1083 = scalar_select %p1082, %s53, 1
        %s1084 = smul.addr %s1083, 16
        %s1085 = smul.addr %s1084, 8
        %s1086 = scalar_lea.vmem %s10, %s1085
        %p1087 = pneg %p312
        %p1088 = pneg %p309
        %p1089 = scmp.lt.s32.totalorder %s53, 1
        %s1090 = scalar_select %p1089, %s53, 1
        %s1091 = scalar_lea.vmem %s11, %s1090
        %p1092 = pneg %p338
        %p1093 = pneg %p335
        %p1094 = scmp.lt.s32.totalorder %s53, 1
        %s1095 = scalar_select %p1094, %s53, 1
        %s1096 = scalar_lea.vmem %s12, %s1095
        %p1097 = pneg %p364
        %p1098 = pneg %p361
        %p1099 = scmp.lt.s32.totalorder %s53, 1
        %s1100 = scalar_select %p1099, %s53, 1
        %s1101 = smul.addr %s1100, 16
        %s1102 = smul.addr %s1101, 8
        %s1103 = scalar_lea.vmem %s13, %s1102
        %p1104 = pneg %p390
        %p1105 = pneg %p387
        %p1106 = scmp.lt.s32.totalorder %s53, 1
        %s1107 = scalar_select %p1106, %s53, 1
        %s1108 = scalar_lea.vmem %s14, %s1107
        %p1109 = pneg %p416
        %p1110 = pneg %p413
        %s1111 = sand.u32 %s429, 1
        %s1112 = scalar_lea.sflag [#allocation5], %s1111
        %s1113 = sand.u32 %s429, 1
        %s1114 = smul.addr %s1113, 128
        %s1115 = scalar_lea.vmem [#allocation4], %s1114
        %p1116 = pneg %p442
        %p1117 = pneg %p439
        %s1118 = sand.u32 %s49, 1
        %s1119 = scalar_lea.sflag [#allocation8], %s1118
        %s1120 = sand.u32 %s455, 1
        %s1121 = smul.addr %s1120, 128
        %s1122 = scalar_lea.vmem [#allocation7], %s1121
        %p1123 = pneg %p468
        %p1124 = pneg %p465
        %p1125 = scmp.lt.s32.totalorder %s53, 1
        %s1126 = scalar_select %p1125, %s53, 1
        %s1127 = scalar_lea.vmem %s17, %s1126
        %p1128 = pneg %p494
        %p1129 = pneg %p491
        %s1130 = sand.u32 %s49, 1
        %s1131 = scalar_lea.sflag [#allocation8], %s1130
        %s1132 = sand.u32 %s507, 1
        %s1133 = smul.addr %s1132, 128
        %s1134 = scalar_lea.vmem [#allocation9], %s1133
        %p1135 = pneg %p520
        %p1136 = pneg %p517
        %p1137 = scmp.lt.s32.totalorder %s53, 1
        %s1138 = scalar_select %p1137, %s53, 1
        %s1139 = scalar_lea.vmem %s19, %s1138
        %p1140 = pneg %p546
        %p1141 = pneg %p543
        %p1142 = pneg %p567
        %p1143 = pneg %p564
        %p1144 = pneg %p588
        %p1145 = pneg %p585
        %p1146 = pneg %p609
        %p1147 = pneg %p606
        %p1148 = pneg %p630
        %p1149 = pneg %p627
        %p1150 = pneg %p651
        %p1151 = pneg %p648
        %p1152 = pneg %p672
        %p1153 = pneg %p669
        %p1154 = pneg %p693
        %p1155 = pneg %p690
        %p1156 = pneg %p714
        %p1157 = pneg %p711
        %p1158 = pneg %p735
        %p1159 = pneg %p732
        %s1160 = smul.u32 2, %s54
        %p1161 = scmp.lt.s32.totalorder %s1160, 3
        %s1162 = scalar_select %p1161, %s1160, 3
        %s1163 = smul.addr %s1162, 8
        %s1164 = scalar_lea.vmem %s2, %s1163
        %s1165 = smul.u32 2, %s54
        %s1166 = smul.u32 2, %s54
        %p1167 = scmp.lt.s32.totalorder %s1166, 3
        %s1168 = scalar_select %p1167, %s1166, 3
        %s1169 = smul.addr %s1168, 4
        %s1170 = scalar_lea.vmem %s3, %s1169
        %s1171 = smul.u32 2, %s54
        %s1172 = smul.u32 2, %s54
        %p1173 = scmp.lt.s32.totalorder %s1172, 3
        %s1174 = scalar_select %p1173, %s1172, 3
        %s1175 = smul.addr %s1174, 4
        %s1176 = scalar_lea.vmem %s4, %s1175
        %s1177 = smul.u32 2, %s54
        %p1178 = scmp.lt.s32.totalorder %s53, 1
        %s1179 = scalar_select %p1178, %s53, 1
        %s1180 = smul.addr %s1179, 16
        %s1181 = smul.addr %s1180, 8
        %s1182 = scalar_lea.vmem %s9, %s1181
        %p1183 = scmp.lt.s32.totalorder %s53, 1
        %s1184 = scalar_select %p1183, %s53, 1
        %s1185 = smul.addr %s1184, 16
        %s1186 = smul.addr %s1185, 8
        %s1187 = scalar_lea.vmem %s10, %s1186
        %p1188 = scmp.lt.s32.totalorder %s53, 1
        %s1189 = scalar_select %p1188, %s53, 1
        %s1190 = scalar_lea.vmem %s11, %s1189
        %p1191 = scmp.lt.s32.totalorder %s53, 1
        %s1192 = scalar_select %p1191, %s53, 1
        %s1193 = scalar_lea.vmem %s12, %s1192
        %p1194 = scmp.lt.s32.totalorder %s53, 1
        %s1195 = scalar_select %p1194, %s53, 1
        %s1196 = smul.addr %s1195, 16
        %s1197 = smul.addr %s1196, 8
        %s1198 = scalar_lea.vmem %s13, %s1197
        %p1199 = scmp.lt.s32.totalorder %s53, 1
        %s1200 = scalar_select %p1199, %s53, 1
        %s1201 = scalar_lea.vmem %s14, %s1200
        %p1202 = scmp.lt.s32.totalorder %s53, 1
        %s1203 = scalar_select %p1202, %s53, 1
        %s1204 = scalar_lea.vmem %s17, %s1203
        %p1205 = scmp.lt.s32.totalorder %s53, 1
        %s1206 = scalar_select %p1205, %s53, 1
        %s1207 = scalar_lea.vmem %s19, %s1206
        %p1209 = scmp.eq.s32.totalorder %s53, 0
        %p1210 = scmp.eq.s32.totalorder %s54, 0
        %p1211 = pnand %p1209, %p1210
        %p1212 = pneg %p1211
        // Predicated region
        $region165: #{mpnn_forward.1} parent=131 // pred_check
          _
        $region166: #{mpnn_forward.1} parent=131 // pred_check_branch
          %1214 = sbr.rel (%p1211) target = $region168
        $region167: #{mpnn_forward.1} parent=131 // pred_region
          %v1215 = vld [vmem:[%s0] sm:$0xff]
          %v1216 = vld [vmem:[%s0 + $0x8] sm:$0xff]
          %v1217 = vld [vmem:[%s6] sm:$0xf]
          %v1218 = vld [vmem:[%s1] sm:$0xff]
          %v1219 = vld [vmem:[%s1 + $0x8] sm:$0xff]
          %v1220 = vld [vmem:[%s7] sm:$0xff]
          %vm1221 = vcmask 64512
          %v1223 = vsel %vm1221, %v1218, 0
          %v1226 = vsel %vm1221, %v1219, 0
          %1228 = vmatprep.subr.mxu0 0.0
          %1229 = vmatpush1.msra.mxu0 0.0
          %1230 = vmatprep.subr.mxu0 0.0
          %1231 = vmatpush1.msra.mxu0 0.0
          %1232 = vmatprep.subr.mxu0 0.0
          %1233 = vmatpush1.msra.mxu0 0.0
          %1234 = vmatprep.subr.mxu0 0.0
          %1235 = vmatpush1.msra.mxu0 0.0
          %1236 = vmatprep.subr.mxu0 0.0
          %1237 = vmatpush1.msra.mxu0 0.0
          %1238 = vmatprep.subr.mxu0 0.0
          %1239 = vmatpush1.msra.mxu0 0.0
          %1240 = vmatprep.subr.mxu0 0.0
          %1241 = vmatpush1.msra.mxu0 0.0
          %1242 = vmatprep.subr.mxu0 0.0
          %1243 = vmatpush1.msra.mxu0 0.0
          %1244 = vmatprep.subr.mxu0 0.0
          %1245 = vmatpush1.msra.mxu0 0.0
          %1246 = vmatprep.subr.mxu0 0.0
          %1247 = vmatpush1.msra.mxu0 0.0
          %1248 = vmatprep.subr.mxu0 0.0
          %1249 = vmatpush1.msra.mxu0 0.0
          %1250 = vmatprep.subr.mxu0 0.0
          %1251 = vmatpush1.msra.mxu0 0.0
          %1252 = vmatprep.subr.mxu0 0.0
          %1253 = vmatpush1.msra.mxu0 0.0
          %1254 = vmatprep.subr.mxu0 0.0
          %1255 = vmatpush1.msra.mxu0 0.0
          %1256 = vmatprep.subr.mxu0 0.0
          %1257 = vmatpush1.msra.mxu0 0.0
          %1258 = vmatprep.subr.mxu0 0.0
          %1259 = vmatpush1.msra.mxu0 %v1220
          %1260 = vmatprep.subr.mxu0 0.0
          %1261 = vmatpush2.msra.mxu0 0.0
          %1262 = vmatprep.subr.mxu0 0.0
          %1263 = vmatpush2.msra.mxu0 0.0
          %1264 = vmatprep.subr.mxu0 0.0
          %1265 = vmatpush2.msra.mxu0 0.0
          %1266 = vmatprep.subr.mxu0 0.0
          %1267 = vmatpush2.msra.mxu0 0.0
          %1268 = vmatprep.subr.mxu0 0.0
          %1269 = vmatpush2.msra.mxu0 0.0
          %1270 = vmatprep.subr.mxu0 0.0
          %1271 = vmatpush2.msra.mxu0 0.0
          %1272 = vmatprep.subr.mxu0 0.0
          %1273 = vmatpush2.msra.mxu0 0.0
          %1274 = vmatprep.subr.mxu0 0.0
          %1275 = vmatpush2.msra.mxu0 0.0
          %1276 = vmatprep.subr.mxu0 0.0
          %1277 = vmatpush2.msra.mxu0 0.0
          %1278 = vmatprep.subr.mxu0 0.0
          %1279 = vmatpush2.msra.mxu0 0.0
          %1280 = vmatprep.subr.mxu0 0.0
          %1281 = vmatpush2.msra.mxu0 0.0
          %1282 = vmatprep.subr.mxu0 0.0
          %1283 = vmatpush2.msra.mxu0 0.0
          %1284 = vmatprep.subr.mxu0 0.0
          %1285 = vmatpush2.msra.mxu0 0.0
          %1286 = vmatprep.subr.mxu0 0.0
          %1287 = vmatpush2.msra.mxu0 0.0
          %1288 = vmatprep.subr.mxu0 0.0
          %1289 = vmatpush2.msra.mxu0 0.0
          %1290 = vmatprep.subr.mxu0 0.0
          %1291 = vmatpush2.msra.mxu0 0.0
          %1292 = vmatprep.mubr.f32.mxu0 0.0
          %1293 = vmatmul.mubr.f32.gmra.mxu0 %v1223
          %v1294 = vpop.f32.mrf.mxu0
          %v1295 = vadd.f32 0.0, %v1294
          %v1296 = vpop.f32.mrf.mxu0
          %1297 = vmatprep.mubr.f32.mxu0 0.0
          %1298 = vmatmul.mubr.f32.gmra.mxu0 %v1226
          %v1299 = vpop.f32.mrf.mxu0
          %v1300 = vadd.f32 0.0, %v1299
          %v1301 = vpop.f32.mrf.mxu0
          %1302 = vdwg.mxu0
          %vm1303 = vcmask 31744
          %v1305 = vsel %vm1303, %v1215, 0
          %v1308 = vsel %vm1303, %v1216, 0
          %vm1310 = vcmask 1043456
          %v1312 = vsel %vm1310, %v1217, 0
          %1314 = vmatprep.subr.mxu0 0.0
          %1315 = vmatpush1.msra.mxu0 0.0
          %1316 = vmatprep.subr.mxu0 0.0
          %1317 = vmatpush1.msra.mxu0 0.0
          %1318 = vmatprep.subr.mxu0 0.0
          %1319 = vmatpush1.msra.mxu0 0.0
          %1320 = vmatprep.subr.mxu0 0.0
          %1321 = vmatpush1.msra.mxu0 0.0
          %1322 = vmatprep.subr.mxu0 0.0
          %1323 = vmatpush1.msra.mxu0 0.0
          %1324 = vmatprep.subr.mxu0 0.0
          %1325 = vmatpush1.msra.mxu0 0.0
          %1326 = vmatprep.subr.mxu0 0.0
          %1327 = vmatpush1.msra.mxu0 0.0
          %1328 = vmatprep.subr.mxu0 0.0
          %1329 = vmatpush1.msra.mxu0 0.0
          %1330 = vmatprep.subr.mxu0 0.0
          %1331 = vmatpush1.msra.mxu0 0.0
          %1332 = vmatprep.subr.mxu0 0.0
          %1333 = vmatpush1.msra.mxu0 0.0
          %1334 = vmatprep.subr.mxu0 0.0
          %1335 = vmatpush1.msra.mxu0 0.0
          %1336 = vmatprep.subr.mxu0 0.0
          %1337 = vmatpush1.msra.mxu0 0.0
          %1338 = vmatprep.subr.mxu0 0.0
          %1339 = vmatpush1.msra.mxu0 0.0
          %1340 = vmatprep.subr.mxu0 0.0
          %1341 = vmatpush1.msra.mxu0 0.0
          %1342 = vmatprep.subr.mxu0 0.0
          %1343 = vmatpush1.msra.mxu0 0.0
          %1344 = vmatprep.subr.mxu0 0.0
          %1345 = vmatpush1.msra.mxu0 %v1312
          %1346 = vmatprep.subr.mxu0 0.0
          %1347 = vmatpush2.msra.mxu0 0.0
          %1348 = vmatprep.subr.mxu0 0.0
          %1349 = vmatpush2.msra.mxu0 0.0
          %1350 = vmatprep.subr.mxu0 0.0
          %1351 = vmatpush2.msra.mxu0 0.0
          %1352 = vmatprep.subr.mxu0 0.0
          %1353 = vmatpush2.msra.mxu0 0.0
          %1354 = vmatprep.subr.mxu0 0.0
          %1355 = vmatpush2.msra.mxu0 0.0
          %1356 = vmatprep.subr.mxu0 0.0
          %1357 = vmatpush2.msra.mxu0 0.0
          %1358 = vmatprep.subr.mxu0 0.0
          %1359 = vmatpush2.msra.mxu0 0.0
          %1360 = vmatprep.subr.mxu0 0.0
          %1361 = vmatpush2.msra.mxu0 0.0
          %1362 = vmatprep.subr.mxu0 0.0
          %1363 = vmatpush2.msra.mxu0 0.0
          %1364 = vmatprep.subr.mxu0 0.0
          %1365 = vmatpush2.msra.mxu0 0.0
          %1366 = vmatprep.subr.mxu0 0.0
          %1367 = vmatpush2.msra.mxu0 0.0
          %1368 = vmatprep.subr.mxu0 0.0
          %1369 = vmatpush2.msra.mxu0 0.0
          %1370 = vmatprep.subr.mxu0 0.0
          %1371 = vmatpush2.msra.mxu0 0.0
          %1372 = vmatprep.subr.mxu0 0.0
          %1373 = vmatpush2.msra.mxu0 0.0
          %1374 = vmatprep.subr.mxu0 0.0
          %1375 = vmatpush2.msra.mxu0 0.0
          %1376 = vmatprep.subr.mxu0 0.0
          %1377 = vmatpush2.msra.mxu0 0.0
          %1378 = vmatprep.mubr.f32.mxu0 0.0
          %1379 = vmatmul.mubr.f32.gmra.mxu0 %v1305
          %v1380 = vpop.f32.mrf.mxu0
          %v1381 = vadd.f32 %v1295, %v1380
          %v1382 = vpop.f32.mrf.mxu0
          %1383 = vmatprep.mubr.f32.mxu0 0.0
          %1384 = vmatmul.mubr.f32.gmra.mxu0 %v1308
          %v1385 = vpop.f32.mrf.mxu0
          %v1386 = vadd.f32 %v1300, %v1385
          %v1387 = vpop.f32.mrf.mxu0
          %1388 = vdwg.mxu0
          %v1389 = vld [vmem:[%s8] sm:$0x1]
          %v1391 = vlaneseq
          %v1392 = vshrl.u32 %v1391, 7
          %v1393 = vsub.s32 0, %v1392
          %v1394 = vrot.slane %v1389, %v1393
          %v1396 = vadd.f32 %v1381, %v1394
          %v1397 = vadd.f32 %v1386, %v1394
          %1398 = vst [vmem:[#allocation2] sm:$0xff] %v1396
          %1399 = vst [vmem:[#allocation2 + $0x8] sm:$0xff] %v1397
        $region168: #{mpnn_forward.1} parent=131 // pred_fallthru
          _
        // Predicated region
        $region169: #{mpnn_forward.1} parent=131 // pred_check
          %p1400 = pneg %p1210
        $region170: #{mpnn_forward.1} parent=131 // pred_check_branch
          %1402 = sbr.rel (%p1400) target = $region172
        $region171: #{mpnn_forward.1} parent=131 // pred_region
          %1403 = vst [vmem:[#allocation3] sm:$0xff] 0.0
          %1404 = vst [vmem:[#allocation3 + $0x8] sm:$0xff] 0.0
        $region172: #{mpnn_forward.1} parent=131 // pred_fallthru
          _
        %v1405 = vld [vmem:[#allocation2] sm:$0xff]
        %v1406 = vld [vmem:[#allocation2 + $0x8] sm:$0xff]
        %v1407 = vpack.c.bf16 %v1406, %v1405
        %v1408 = vld [vmem:[%s1170] sm:$0xf]
        %v1409 = vld [vmem:[%s1170 + $0x4] sm:$0xf]
        %v1412 = vunpack.c.l.b16 %v1408
        %v1413 = vunpack.c.l.b16 %v1409
        %v1414 = vpack.c.b16 %v1413, %v1412
        %vm1415 = vcmask 130048
        %v1417 = vsel %vm1415, %v1414, 0
        %1419 = vmatprep.subr.bf16.mxu0 0
        %1420 = vmatpush1.bf16.msra.mxu0 0
        %1421 = vmatprep.subr.bf16.mxu0 0
        %1422 = vmatpush1.bf16.msra.mxu0 0
        %1423 = vmatprep.subr.bf16.mxu0 0
        %1424 = vmatpush1.bf16.msra.mxu0 0
        %1425 = vmatprep.subr.bf16.mxu0 0
        %1426 = vmatpush1.bf16.msra.mxu0 0
        %1427 = vmatprep.subr.bf16.mxu0 0
        %1428 = vmatpush1.bf16.msra.mxu0 0
        %1429 = vmatprep.subr.bf16.mxu0 0
        %1430 = vmatpush1.bf16.msra.mxu0 0
        %1431 = vmatprep.subr.bf16.mxu0 0
        %1432 = vmatpush1.bf16.msra.mxu0 0
        %1433 = vmatprep.subr.bf16.mxu0 0
        %1434 = vmatpush1.bf16.msra.mxu0 %v1407
        %1435 = vmatprep.subr.bf16.mxu0 0
        %1436 = vmatpush2.bf16.msra.mxu0 0
        %1437 = vmatprep.subr.bf16.mxu0 0
        %1438 = vmatpush2.bf16.msra.mxu0 0
        %1439 = vmatprep.subr.bf16.mxu0 0
        %1440 = vmatpush2.bf16.msra.mxu0 0
        %1441 = vmatprep.subr.bf16.mxu0 0
        %1442 = vmatpush2.bf16.msra.mxu0 0
        %1443 = vmatprep.subr.bf16.mxu0 0
        %1444 = vmatpush2.bf16.msra.mxu0 0
        %1445 = vmatprep.subr.bf16.mxu0 0
        %1446 = vmatpush2.bf16.msra.mxu0 0
        %1447 = vmatprep.subr.bf16.mxu0 0
        %1448 = vmatpush2.bf16.msra.mxu0 0
        %1449 = vmatprep.subr.bf16.mxu0 0
        %1450 = vmatpush2.bf16.msra.mxu0 0
        %1451 = vmatprep.mubr.bf16.mxu0 0
        %1452 = vmatmul.mubr.bf16.gmra.mxu0 %v1417
        %v1453 = vpop.f32.mrf.mxu0
        %v1454 = vadd.f32 0.0, %v1453
        %v1455 = vpop.f32.mrf.mxu0
        %v1456 = vpop.f32.mrf.mxu0
        %v1457 = vadd.f32 0.0, %v1456
        %v1458 = vpop.f32.mrf.mxu0
        %1459 = vdwg.mxu0
        %v1460 = vld [vmem:[%s1176] sm:$0xf]
        %v1461 = vld [vmem:[%s1176 + $0x4] sm:$0xf]
        %v1464 = vunpack.c.l.b16 %v1460
        %v1465 = vunpack.c.l.b16 %v1461
        %v1466 = vpack.c.b16 %v1465, %v1464
        %v1468 = vsel %vm1415, %v1466, 0
        %1470 = vmatprep.subr.bf16.mxu0 0
        %1471 = vmatpush1.bf16.msra.mxu0 0
        %1472 = vmatprep.subr.bf16.mxu0 0
        %1473 = vmatpush1.bf16.msra.mxu0 0
        %1474 = vmatprep.subr.bf16.mxu0 0
        %1475 = vmatpush1.bf16.msra.mxu0 0
        %1476 = vmatprep.subr.bf16.mxu0 0
        %1477 = vmatpush1.bf16.msra.mxu0 0
        %1478 = vmatprep.subr.bf16.mxu0 0
        %1479 = vmatpush1.bf16.msra.mxu0 0
        %1480 = vmatprep.subr.bf16.mxu0 0
        %1481 = vmatpush1.bf16.msra.mxu0 0
        %1482 = vmatprep.subr.bf16.mxu0 0
        %1483 = vmatpush1.bf16.msra.mxu0 0
        %1484 = vmatprep.subr.bf16.mxu0 0
        %1485 = vmatpush1.bf16.msra.mxu0 %v1407
        %1486 = vmatprep.subr.bf16.mxu0 0
        %1487 = vmatpush2.bf16.msra.mxu0 0
        %1488 = vmatprep.subr.bf16.mxu0 0
        %1489 = vmatpush2.bf16.msra.mxu0 0
        %1490 = vmatprep.subr.bf16.mxu0 0
        %1491 = vmatpush2.bf16.msra.mxu0 0
        %1492 = vmatprep.subr.bf16.mxu0 0
        %1493 = vmatpush2.bf16.msra.mxu0 0
        %1494 = vmatprep.subr.bf16.mxu0 0
        %1495 = vmatpush2.bf16.msra.mxu0 0
        %1496 = vmatprep.subr.bf16.mxu0 0
        %1497 = vmatpush2.bf16.msra.mxu0 0
        %1498 = vmatprep.subr.bf16.mxu0 0
        %1499 = vmatpush2.bf16.msra.mxu0 0
        %1500 = vmatprep.subr.bf16.mxu0 0
        %1501 = vmatpush2.bf16.msra.mxu0 0
        %1502 = vmatprep.mubr.bf16.mxu0 0
        %1503 = vmatmul.mubr.bf16.gmra.mxu0 %v1468
        %v1504 = vpop.f32.mrf.mxu0
        %v1505 = vadd.f32 0.0, %v1504
        %v1506 = vpop.f32.mrf.mxu0
        %v1507 = vpop.f32.mrf.mxu0
        %v1508 = vadd.f32 0.0, %v1507
        %v1509 = vpop.f32.mrf.mxu0
        %1510 = vdwg.mxu0
        %v1511 = vld [vmem:[%s1182] sm:$0xff]
        %v1512 = vld [vmem:[%s1182 + $0x8] sm:$0xff]
        %v1513 = vld [vmem:[%s1182 + $0x10] sm:$0xff]
        %v1514 = vld [vmem:[%s1182 + $0x18] sm:$0xff]
        %v1515 = vld [vmem:[%s1182 + $0x20] sm:$0xff]
        %v1516 = vld [vmem:[%s1182 + $0x28] sm:$0xff]
        %v1517 = vld [vmem:[%s1182 + $0x30] sm:$0xff]
        %v1518 = vld [vmem:[%s1182 + $0x38] sm:$0xff]
        %v1519 = vld [vmem:[%s1182 + $0x40] sm:$0xff]
        %v1520 = vld [vmem:[%s1182 + $0x48] sm:$0xff]
        %v1521 = vld [vmem:[%s1182 + $0x50] sm:$0xff]
        %v1522 = vld [vmem:[%s1182 + $0x58] sm:$0xff]
        %v1523 = vld [vmem:[%s1182 + $0x60] sm:$0xff]
        %v1524 = vld [vmem:[%s1182 + $0x68] sm:$0xff]
        %v1525 = vld [vmem:[%s1182 + $0x70] sm:$0xff]
        %v1526 = vld [vmem:[%s1182 + $0x78] sm:$0xff]
        %v1527 = vld [vmem:[%s1187] sm:$0xff]
        %v1528 = vld [vmem:[%s1187 + $0x8] sm:$0xff]
        %v1529 = vld [vmem:[%s1187 + $0x10] sm:$0xff]
        %v1530 = vld [vmem:[%s1187 + $0x18] sm:$0xff]
        %v1531 = vld [vmem:[%s1187 + $0x20] sm:$0xff]
        %v1532 = vld [vmem:[%s1187 + $0x28] sm:$0xff]
        %v1533 = vld [vmem:[%s1187 + $0x30] sm:$0xff]
        %v1534 = vld [vmem:[%s1187 + $0x38] sm:$0xff]
        %v1535 = vld [vmem:[%s1187 + $0x40] sm:$0xff]
        %v1536 = vld [vmem:[%s1187 + $0x48] sm:$0xff]
        %v1537 = vld [vmem:[%s1187 + $0x50] sm:$0xff]
        %v1538 = vld [vmem:[%s1187 + $0x58] sm:$0xff]
        %v1539 = vld [vmem:[%s1187 + $0x60] sm:$0xff]
        %v1540 = vld [vmem:[%s1187 + $0x68] sm:$0xff]
        %v1541 = vld [vmem:[%s1187 + $0x70] sm:$0xff]
        %v1542 = vld [vmem:[%s1187 + $0x78] sm:$0xff]
        %1543 = vmatprep.subr.mxu0 0.0
        %1544 = vmatpush1.msra.mxu0 %v1542
        %1545 = vmatprep.subr.mxu0 0.0
        %1546 = vmatpush1.msra.mxu0 %v1541
        %1547 = vmatprep.subr.mxu0 0.0
        %1548 = vmatpush1.msra.mxu0 %v1540
        %1549 = vmatprep.subr.mxu0 0.0
        %1550 = vmatpush1.msra.mxu0 %v1539
        %1551 = vmatprep.subr.mxu0 0.0
        %1552 = vmatpush1.msra.mxu0 %v1538
        %1553 = vmatprep.subr.mxu0 0.0
        %1554 = vmatpush1.msra.mxu0 %v1537
        %1555 = vmatprep.subr.mxu0 0.0
        %1556 = vmatpush1.msra.mxu0 %v1536
        %1557 = vmatprep.subr.mxu0 0.0
        %1558 = vmatpush1.msra.mxu0 %v1535
        %1559 = vmatprep.subr.mxu0 0.0
        %1560 = vmatpush1.msra.mxu0 %v1534
        %1561 = vmatprep.subr.mxu0 0.0
        %1562 = vmatpush1.msra.mxu0 %v1533
        %1563 = vmatprep.subr.mxu0 0.0
        %1564 = vmatpush1.msra.mxu0 %v1532
        %1565 = vmatprep.subr.mxu0 0.0
        %1566 = vmatpush1.msra.mxu0 %v1531
        %1567 = vmatprep.subr.mxu0 0.0
        %1568 = vmatpush1.msra.mxu0 %v1530
        %1569 = vmatprep.subr.mxu0 0.0
        %1570 = vmatpush1.msra.mxu0 %v1529
        %1571 = vmatprep.subr.mxu0 0.0
        %1572 = vmatpush1.msra.mxu0 %v1528
        %1573 = vmatprep.subr.mxu0 0.0
        %1574 = vmatpush1.msra.mxu0 %v1527
        %1575 = vmatprep.subr.mxu0 0.0
        %1576 = vmatpush2.msra.mxu0 0.0
        %1577 = vmatprep.subr.mxu0 0.0
        %1578 = vmatpush2.msra.mxu0 0.0
        %1579 = vmatprep.subr.mxu0 0.0
        %1580 = vmatpush2.msra.mxu0 0.0
        %1581 = vmatprep.subr.mxu0 0.0
        %1582 = vmatpush2.msra.mxu0 0.0
        %1583 = vmatprep.subr.mxu0 0.0
        %1584 = vmatpush2.msra.mxu0 0.0
        %1585 = vmatprep.subr.mxu0 0.0
        %1586 = vmatpush2.msra.mxu0 0.0
        %1587 = vmatprep.subr.mxu0 0.0
        %1588 = vmatpush2.msra.mxu0 0.0
        %1589 = vmatprep.subr.mxu0 0.0
        %1590 = vmatpush2.msra.mxu0 0.0
        %1591 = vmatprep.subr.mxu0 0.0
        %1592 = vmatpush2.msra.mxu0 0.0
        %1593 = vmatprep.subr.mxu0 0.0
        %1594 = vmatpush2.msra.mxu0 0.0
        %1595 = vmatprep.subr.mxu0 0.0
        %1596 = vmatpush2.msra.mxu0 0.0
        %1597 = vmatprep.subr.mxu0 0.0
        %1598 = vmatpush2.msra.mxu0 0.0
        %1599 = vmatprep.subr.mxu0 0.0
        %1600 = vmatpush2.msra.mxu0 0.0
        %1601 = vmatprep.subr.mxu0 0.0
        %1602 = vmatpush2.msra.mxu0 0.0
        %1603 = vmatprep.subr.mxu0 0.0
        %1604 = vmatpush2.msra.mxu0 0.0
        %1605 = vmatprep.subr.mxu0 0.0
        %1606 = vmatpush2.msra.mxu0 0.0
        %1607 = vmatprep.mubr.f32.mxu0 0.0
        %1608 = vmatmul.mubr.f32.gmra.mxu0 %v1505
        %v1609 = vpop.f32.mrf.mxu0
        %v1610 = vadd.f32 0.0, %v1609
        %v1611 = vpop.f32.mrf.mxu0
        %1612 = vmatprep.mubr.f32.mxu0 0.0
        %1613 = vmatmul.mubr.f32.gmra.mxu0 %v1508
        %v1614 = vpop.f32.mrf.mxu0
        %v1615 = vadd.f32 0.0, %v1614
        %v1616 = vpop.f32.mrf.mxu0
        %1617 = vdwg.mxu0
        %1618 = vmatprep.subr.mxu0 0.0
        %1619 = vmatpush1.msra.mxu0 %v1526
        %1620 = vmatprep.subr.mxu0 0.0
        %1621 = vmatpush1.msra.mxu0 %v1525
        %1622 = vmatprep.subr.mxu0 0.0
        %1623 = vmatpush1.msra.mxu0 %v1524
        %1624 = vmatprep.subr.mxu0 0.0
        %1625 = vmatpush1.msra.mxu0 %v1523
        %1626 = vmatprep.subr.mxu0 0.0
        %1627 = vmatpush1.msra.mxu0 %v1522
        %1628 = vmatprep.subr.mxu0 0.0
        %1629 = vmatpush1.msra.mxu0 %v1521
        %1630 = vmatprep.subr.mxu0 0.0
        %1631 = vmatpush1.msra.mxu0 %v1520
        %1632 = vmatprep.subr.mxu0 0.0
        %1633 = vmatpush1.msra.mxu0 %v1519
        %1634 = vmatprep.subr.mxu0 0.0
        %1635 = vmatpush1.msra.mxu0 %v1518
        %1636 = vmatprep.subr.mxu0 0.0
        %1637 = vmatpush1.msra.mxu0 %v1517
        %1638 = vmatprep.subr.mxu0 0.0
        %1639 = vmatpush1.msra.mxu0 %v1516
        %1640 = vmatprep.subr.mxu0 0.0
        %1641 = vmatpush1.msra.mxu0 %v1515
        %1642 = vmatprep.subr.mxu0 0.0
        %1643 = vmatpush1.msra.mxu0 %v1514
        %1644 = vmatprep.subr.mxu0 0.0
        %1645 = vmatpush1.msra.mxu0 %v1513
        %1646 = vmatprep.subr.mxu0 0.0
        %1647 = vmatpush1.msra.mxu0 %v1512
        %1648 = vmatprep.subr.mxu0 0.0
        %1649 = vmatpush1.msra.mxu0 %v1511
        %1650 = vmatprep.subr.mxu0 0.0
        %1651 = vmatpush2.msra.mxu0 0.0
        %1652 = vmatprep.subr.mxu0 0.0
        %1653 = vmatpush2.msra.mxu0 0.0
        %1654 = vmatprep.subr.mxu0 0.0
        %1655 = vmatpush2.msra.mxu0 0.0
        %1656 = vmatprep.subr.mxu0 0.0
        %1657 = vmatpush2.msra.mxu0 0.0
        %1658 = vmatprep.subr.mxu0 0.0
        %1659 = vmatpush2.msra.mxu0 0.0
        %1660 = vmatprep.subr.mxu0 0.0
        %1661 = vmatpush2.msra.mxu0 0.0
        %1662 = vmatprep.subr.mxu0 0.0
        %1663 = vmatpush2.msra.mxu0 0.0
        %1664 = vmatprep.subr.mxu0 0.0
        %1665 = vmatpush2.msra.mxu0 0.0
        %1666 = vmatprep.subr.mxu0 0.0
        %1667 = vmatpush2.msra.mxu0 0.0
        %1668 = vmatprep.subr.mxu0 0.0
        %1669 = vmatpush2.msra.mxu0 0.0
        %1670 = vmatprep.subr.mxu0 0.0
        %1671 = vmatpush2.msra.mxu0 0.0
        %1672 = vmatprep.subr.mxu0 0.0
        %1673 = vmatpush2.msra.mxu0 0.0
        %1674 = vmatprep.subr.mxu0 0.0
        %1675 = vmatpush2.msra.mxu0 0.0
        %1676 = vmatprep.subr.mxu0 0.0
        %1677 = vmatpush2.msra.mxu0 0.0
        %1678 = vmatprep.subr.mxu0 0.0
        %1679 = vmatpush2.msra.mxu0 0.0
        %1680 = vmatprep.subr.mxu0 0.0
        %1681 = vmatpush2.msra.mxu0 0.0
        %1682 = vmatprep.mubr.f32.mxu0 0.0
        %1683 = vmatmul.mubr.f32.gmra.mxu0 %v1454
        %v1684 = vpop.f32.mrf.mxu0
        %v1685 = vadd.f32 %v1610, %v1684
        %v1686 = vpop.f32.mrf.mxu0
        %1687 = vmatprep.mubr.f32.mxu0 0.0
        %1688 = vmatmul.mubr.f32.gmra.mxu0 %v1457
        %v1689 = vpop.f32.mrf.mxu0
        %v1690 = vadd.f32 %v1615, %v1689
        %v1691 = vpop.f32.mrf.mxu0
        %1692 = vdwg.mxu0
        %v1693 = vld [vmem:[%s1164] sm:$0xff]
        %v1694 = vld [vmem:[%s1164 + $0x8] sm:$0xff]
        %v1695 = vld [vmem:[%s1190] sm:$0x1]
        %1697 = vset.pattern.permute.xlu0 0
        %1698 = vperm.xlu0 %1697, %v1693
        %v1699 = vpop.permute.xlu0 %1698
        %1702 = vset.pattern.permute.xlu0 0
        %1703 = vperm.xlu0 %1702, %v1694
        %v1704 = vpop.permute.xlu0 %1703
        %v1707 = vlaneseq
        %v1708 = vshrl.u32 %v1707, 7
        %v1709 = vsub.s32 0, %v1708
        %v1710 = vrot.slane %v1695, %v1709
        %v1712 = vmul.f32 %v1699, %v1710
        %v1713 = vmul.f32 %v1704, %v1710
        %v1714 = vadd.f32 %v1685, %v1712
        %v1715 = vadd.f32 %v1690, %v1713
        %v1716 = vld [vmem:[%s1193] sm:$0x1]
        %v1718 = vlaneseq
        %v1719 = vshrl.u32 %v1718, 7
        %v1720 = vsub.s32 0, %v1719
        %v1721 = vrot.slane %v1716, %v1720
        %v1723 = vadd.f32 %v1714, %v1721
        %v1724 = vadd.f32 %v1715, %v1721
        %v1725 = vxor.u32 %v1723, 2147483648
        %v1726 = vxor.u32 %v1724, 2147483648
        %v1727 = vmul.f32 %v1725, 1.442695
        %v1728 = vpow.pop %v1727
        %v1729 = vmul.f32 %v1726, 1.442695
        %v1730 = vpow.pop %v1729
        %v1731 = vadd.f32 %v1728, 1.0
        %v1732 = vadd.f32 %v1730, 1.0
        %v1733 = vrcp.pop %v1731
        %v1734 = vmul.f32 1.0, %v1733
        %v1735 = vrcp.pop %v1732
        %v1736 = vmul.f32 1.0, %v1735
        %v1737 = vmul.f32 %v1723, %v1734
        %v1738 = vmul.f32 %v1724, %v1736
        %v1739 = vld [vmem:[%s1198] sm:$0xff]
        %v1740 = vld [vmem:[%s1198 + $0x8] sm:$0xff]
        %v1741 = vld [vmem:[%s1198 + $0x10] sm:$0xff]
        %v1742 = vld [vmem:[%s1198 + $0x18] sm:$0xff]
        %v1743 = vld [vmem:[%s1198 + $0x20] sm:$0xff]
        %v1744 = vld [vmem:[%s1198 + $0x28] sm:$0xff]
        %v1745 = vld [vmem:[%s1198 + $0x30] sm:$0xff]
        %v1746 = vld [vmem:[%s1198 + $0x38] sm:$0xff]
        %v1747 = vld [vmem:[%s1198 + $0x40] sm:$0xff]
        %v1748 = vld [vmem:[%s1198 + $0x48] sm:$0xff]
        %v1749 = vld [vmem:[%s1198 + $0x50] sm:$0xff]
        %v1750 = vld [vmem:[%s1198 + $0x58] sm:$0xff]
        %v1751 = vld [vmem:[%s1198 + $0x60] sm:$0xff]
        %v1752 = vld [vmem:[%s1198 + $0x68] sm:$0xff]
        %v1753 = vld [vmem:[%s1198 + $0x70] sm:$0xff]
        %v1754 = vld [vmem:[%s1198 + $0x78] sm:$0xff]
        %v1755 = vld [vmem:[%s1201] sm:$0x1]
        %v1757 = vlaneseq
        %v1758 = vshrl.u32 %v1757, 7
        %v1759 = vsub.s32 0, %v1758
        %v1760 = vrot.slane %v1755, %v1759
        %1762 = vmatprep.subr.mxu0 0.0
        %1763 = vmatpush1.msra.mxu0 %v1754
        %1764 = vmatprep.subr.mxu0 0.0
        %1765 = vmatpush1.msra.mxu0 %v1753
        %1766 = vmatprep.subr.mxu0 0.0
        %1767 = vmatpush1.msra.mxu0 %v1752
        %1768 = vmatprep.subr.mxu0 0.0
        %1769 = vmatpush1.msra.mxu0 %v1751
        %1770 = vmatprep.subr.mxu0 0.0
        %1771 = vmatpush1.msra.mxu0 %v1750
        %1772 = vmatprep.subr.mxu0 0.0
        %1773 = vmatpush1.msra.mxu0 %v1749
        %1774 = vmatprep.subr.mxu0 0.0
        %1775 = vmatpush1.msra.mxu0 %v1748
        %1776 = vmatprep.subr.mxu0 0.0
        %1777 = vmatpush1.msra.mxu0 %v1747
        %1778 = vmatprep.subr.mxu0 0.0
        %1779 = vmatpush1.msra.mxu0 %v1746
        %1780 = vmatprep.subr.mxu0 0.0
        %1781 = vmatpush1.msra.mxu0 %v1745
        %1782 = vmatprep.subr.mxu0 0.0
        %1783 = vmatpush1.msra.mxu0 %v1744
        %1784 = vmatprep.subr.mxu0 0.0
        %1785 = vmatpush1.msra.mxu0 %v1743
        %1786 = vmatprep.subr.mxu0 0.0
        %1787 = vmatpush1.msra.mxu0 %v1742
        %1788 = vmatprep.subr.mxu0 0.0
        %1789 = vmatpush1.msra.mxu0 %v1741
        %1790 = vmatprep.subr.mxu0 0.0
        %1791 = vmatpush1.msra.mxu0 %v1740
        %1792 = vmatprep.subr.mxu0 0.0
        %1793 = vmatpush1.msra.mxu0 %v1739
        %1794 = vmatprep.subr.mxu0 0.0
        %1795 = vmatpush2.msra.mxu0 0.0
        %1796 = vmatprep.subr.mxu0 0.0
        %1797 = vmatpush2.msra.mxu0 0.0
        %1798 = vmatprep.subr.mxu0 0.0
        %1799 = vmatpush2.msra.mxu0 0.0
        %1800 = vmatprep.subr.mxu0 0.0
        %1801 = vmatpush2.msra.mxu0 0.0
        %1802 = vmatprep.subr.mxu0 0.0
        %1803 = vmatpush2.msra.mxu0 0.0
        %1804 = vmatprep.subr.mxu0 0.0
        %1805 = vmatpush2.msra.mxu0 0.0
        %1806 = vmatprep.subr.mxu0 0.0
        %1807 = vmatpush2.msra.mxu0 0.0
        %1808 = vmatprep.subr.mxu0 0.0
        %1809 = vmatpush2.msra.mxu0 0.0
        %1810 = vmatprep.subr.mxu0 0.0
        %1811 = vmatpush2.msra.mxu0 0.0
        %1812 = vmatprep.subr.mxu0 0.0
        %1813 = vmatpush2.msra.mxu0 0.0
        %1814 = vmatprep.subr.mxu0 0.0
        %1815 = vmatpush2.msra.mxu0 0.0
        %1816 = vmatprep.subr.mxu0 0.0
        %1817 = vmatpush2.msra.mxu0 0.0
        %1818 = vmatprep.subr.mxu0 0.0
        %1819 = vmatpush2.msra.mxu0 0.0
        %1820 = vmatprep.subr.mxu0 0.0
        %1821 = vmatpush2.msra.mxu0 0.0
        %1822 = vmatprep.subr.mxu0 0.0
        %1823 = vmatpush2.msra.mxu0 0.0
        %1824 = vmatprep.subr.mxu0 0.0
        %1825 = vmatpush2.msra.mxu0 0.0
        %1826 = vmatprep.mubr.f32.mxu0 0.0
        %1827 = vmatmul.mubr.f32.gmra.mxu0 %v1737
        %v1828 = vpop.f32.mrf.mxu0
        %v1829 = vadd.f32 %v1760, %v1828
        %v1830 = vpop.f32.mrf.mxu0
        %1831 = vmatprep.mubr.f32.mxu0 0.0
        %1832 = vmatmul.mubr.f32.gmra.mxu0 %v1738
        %v1833 = vpop.f32.mrf.mxu0
        %v1834 = vadd.f32 %v1760, %v1833
        %v1835 = vpop.f32.mrf.mxu0
        %1836 = vdwg.mxu0
        %v1837 = vxor.u32 %v1829, 2147483648
        %v1838 = vxor.u32 %v1834, 2147483648
        %v1839 = vmul.f32 %v1837, 1.442695
        %v1840 = vpow.pop %v1839
        %v1841 = vmul.f32 %v1838, 1.442695
        %v1842 = vpow.pop %v1841
        %v1843 = vadd.f32 %v1840, 1.0
        %v1844 = vadd.f32 %v1842, 1.0
        %v1845 = vrcp.pop %v1843
        %v1846 = vmul.f32 1.0, %v1845
        %v1847 = vrcp.pop %v1844
        %v1848 = vmul.f32 1.0, %v1847
        %v1849 = vmul.f32 %v1829, %v1846
        %v1850 = vmul.f32 %v1834, %v1848
        %v1851 = vld [vmem:[#allocation3] sm:$0xff]
        %v1852 = vld [vmem:[#allocation3 + $0x8] sm:$0xff]
        %v1853 = vpack.c.bf16 %v1850, %v1849
        %1855 = vxpose.xlu0.c.b16.start [1/8] %v1466, 128
        %1856 = vxpose.xlu0.c.b16.cont [2/8] 0, 128
        %1857 = vxpose.xlu0.c.b16.cont [3/8] 0, 128
        %1858 = vxpose.xlu0.c.b16.cont [4/8] 0, 128
        %1859 = vxpose.xlu0.c.b16.cont [5/8] 0, 128
        %1860 = vxpose.xlu0.c.b16.cont [6/8] 0, 128
        %1861 = vxpose.xlu0.c.b16.cont [7/8] 0, 128
        %1862 = vxpose.xlu0.c.b16.end [8/8] 0, 128
        %v1863 = vpop.trf.xlu0
        %v1864 = vpop.trf.xlu0
        %v1865 = vpop.trf.xlu0
        %v1866 = vpop.trf.xlu0
        %v1867 = vpop.trf.xlu0
        %v1868 = vpop.trf.xlu0
        %v1869 = vpop.trf.xlu0
        %v1870 = vpop.trf.xlu0
        %v1872 = vsel %vm1415, %v1863, 0
        %1874 = vmatprep.subr.bf16.mxu0 0
        %1875 = vmatpush1.bf16.msra.mxu0 0
        %1876 = vmatprep.subr.bf16.mxu0 0
        %1877 = vmatpush1.bf16.msra.mxu0 0
        %1878 = vmatprep.subr.bf16.mxu0 0
        %1879 = vmatpush1.bf16.msra.mxu0 0
        %1880 = vmatprep.subr.bf16.mxu0 0
        %1881 = vmatpush1.bf16.msra.mxu0 0
        %1882 = vmatprep.subr.bf16.mxu0 0
        %1883 = vmatpush1.bf16.msra.mxu0 0
        %1884 = vmatprep.subr.bf16.mxu0 0
        %1885 = vmatpush1.bf16.msra.mxu0 0
        %1886 = vmatprep.subr.bf16.mxu0 0
        %1887 = vmatpush1.bf16.msra.mxu0 0
        %1888 = vmatprep.subr.bf16.mxu0 0
        %1889 = vmatpush1.bf16.msra.mxu0 %v1853
        %1890 = vmatprep.subr.bf16.mxu0 0
        %1891 = vmatpush2.bf16.msra.mxu0 0
        %1892 = vmatprep.subr.bf16.mxu0 0
        %1893 = vmatpush2.bf16.msra.mxu0 0
        %1894 = vmatprep.subr.bf16.mxu0 0
        %1895 = vmatpush2.bf16.msra.mxu0 0
        %1896 = vmatprep.subr.bf16.mxu0 0
        %1897 = vmatpush2.bf16.msra.mxu0 0
        %1898 = vmatprep.subr.bf16.mxu0 0
        %1899 = vmatpush2.bf16.msra.mxu0 0
        %1900 = vmatprep.subr.bf16.mxu0 0
        %1901 = vmatpush2.bf16.msra.mxu0 0
        %1902 = vmatprep.subr.bf16.mxu0 0
        %1903 = vmatpush2.bf16.msra.mxu0 0
        %1904 = vmatprep.subr.bf16.mxu0 0
        %1905 = vmatpush2.bf16.msra.mxu0 0
        %1906 = vmatprep.mubr.bf16.mxu0 0
        %1907 = vmatmul.mubr.bf16.gmra.mxu0 %v1872
        %v1908 = vpop.f32.mrf.mxu0
        %v1909 = vadd.f32 0.0, %v1908
        %v1910 = vpop.f32.mrf.mxu0
        %v1911 = vpop.f32.mrf.mxu0
        %v1912 = vadd.f32 0.0, %v1911
        %v1913 = vpop.f32.mrf.mxu0
        %1914 = vdwg.mxu0
        %v1915 = vadd.f32 %v1851, %v1909
        %v1916 = vadd.f32 %v1852, %v1912
        %1917 = vst [vmem:[#allocation3] sm:$0xff] %v1915
        %1918 = vst [vmem:[#allocation3 + $0x8] sm:$0xff] %v1916
        %p1919 = scmp.eq.s32.totalorder %s54, 1
        // Predicated region
        $region173: #{mpnn_forward.1} parent=131 // pred_check
          %p1920 = pneg %p1919
        $region174: #{mpnn_forward.1} parent=131 // pred_check_branch
          %1922 = sbr.rel (%p1920) target = $region176
        $region175: #{mpnn_forward.1} parent=131 // pred_region
          %v1923 = vld [vmem:[#allocation2] sm:$0xff]
          %v1924 = vld [vmem:[#allocation2 + $0x8] sm:$0xff]
          %v1925 = vld [vmem:[%s999] sm:$0xff]
          %v1926 = vld [vmem:[%s999 + $0x8] sm:$0xff]
          %v1927 = vld [vmem:[%s999 + $0x10] sm:$0xff]
          %v1928 = vld [vmem:[%s999 + $0x18] sm:$0xff]
          %v1929 = vld [vmem:[%s999 + $0x20] sm:$0xff]
          %v1930 = vld [vmem:[%s999 + $0x28] sm:$0xff]
          %v1931 = vld [vmem:[%s999 + $0x30] sm:$0xff]
          %v1932 = vld [vmem:[%s999 + $0x38] sm:$0xff]
          %v1933 = vld [vmem:[%s999 + $0x40] sm:$0xff]
          %v1934 = vld [vmem:[%s999 + $0x48] sm:$0xff]
          %v1935 = vld [vmem:[%s999 + $0x50] sm:$0xff]
          %v1936 = vld [vmem:[%s999 + $0x58] sm:$0xff]
          %v1937 = vld [vmem:[%s999 + $0x60] sm:$0xff]
          %v1938 = vld [vmem:[%s999 + $0x68] sm:$0xff]
          %v1939 = vld [vmem:[%s999 + $0x70] sm:$0xff]
          %v1940 = vld [vmem:[%s999 + $0x78] sm:$0xff]
          %v1941 = vld [vmem:[#allocation3] sm:$0xff]
          %v1942 = vld [vmem:[#allocation3 + $0x8] sm:$0xff]
          %v1943 = vld [vmem:[%s1008] sm:$0xff]
          %v1944 = vld [vmem:[%s1008 + $0x8] sm:$0xff]
          %v1945 = vld [vmem:[%s1008 + $0x10] sm:$0xff]
          %v1946 = vld [vmem:[%s1008 + $0x18] sm:$0xff]
          %v1947 = vld [vmem:[%s1008 + $0x20] sm:$0xff]
          %v1948 = vld [vmem:[%s1008 + $0x28] sm:$0xff]
          %v1949 = vld [vmem:[%s1008 + $0x30] sm:$0xff]
          %v1950 = vld [vmem:[%s1008 + $0x38] sm:$0xff]
          %v1951 = vld [vmem:[%s1008 + $0x40] sm:$0xff]
          %v1952 = vld [vmem:[%s1008 + $0x48] sm:$0xff]
          %v1953 = vld [vmem:[%s1008 + $0x50] sm:$0xff]
          %v1954 = vld [vmem:[%s1008 + $0x58] sm:$0xff]
          %v1955 = vld [vmem:[%s1008 + $0x60] sm:$0xff]
          %v1956 = vld [vmem:[%s1008 + $0x68] sm:$0xff]
          %v1957 = vld [vmem:[%s1008 + $0x70] sm:$0xff]
          %v1958 = vld [vmem:[%s1008 + $0x78] sm:$0xff]
          %1959 = vmatprep.subr.mxu0 0.0
          %1960 = vmatpush1.msra.mxu0 %v1958
          %1961 = vmatprep.subr.mxu0 0.0
          %1962 = vmatpush1.msra.mxu0 %v1957
          %1963 = vmatprep.subr.mxu0 0.0
          %1964 = vmatpush1.msra.mxu0 %v1956
          %1965 = vmatprep.subr.mxu0 0.0
          %1966 = vmatpush1.msra.mxu0 %v1955
          %1967 = vmatprep.subr.mxu0 0.0
          %1968 = vmatpush1.msra.mxu0 %v1954
          %1969 = vmatprep.subr.mxu0 0.0
          %1970 = vmatpush1.msra.mxu0 %v1953
          %1971 = vmatprep.subr.mxu0 0.0
          %1972 = vmatpush1.msra.mxu0 %v1952
          %1973 = vmatprep.subr.mxu0 0.0
          %1974 = vmatpush1.msra.mxu0 %v1951
          %1975 = vmatprep.subr.mxu0 0.0
          %1976 = vmatpush1.msra.mxu0 %v1950
          %1977 = vmatprep.subr.mxu0 0.0
          %1978 = vmatpush1.msra.mxu0 %v1949
          %1979 = vmatprep.subr.mxu0 0.0
          %1980 = vmatpush1.msra.mxu0 %v1948
          %1981 = vmatprep.subr.mxu0 0.0
          %1982 = vmatpush1.msra.mxu0 %v1947
          %1983 = vmatprep.subr.mxu0 0.0
          %1984 = vmatpush1.msra.mxu0 %v1946
          %1985 = vmatprep.subr.mxu0 0.0
          %1986 = vmatpush1.msra.mxu0 %v1945
          %1987 = vmatprep.subr.mxu0 0.0
          %1988 = vmatpush1.msra.mxu0 %v1944
          %1989 = vmatprep.subr.mxu0 0.0
          %1990 = vmatpush1.msra.mxu0 %v1943
          %1991 = vmatprep.subr.mxu0 0.0
          %1992 = vmatpush2.msra.mxu0 0.0
          %1993 = vmatprep.subr.mxu0 0.0
          %1994 = vmatpush2.msra.mxu0 0.0
          %1995 = vmatprep.subr.mxu0 0.0
          %1996 = vmatpush2.msra.mxu0 0.0
          %1997 = vmatprep.subr.mxu0 0.0
          %1998 = vmatpush2.msra.mxu0 0.0
          %1999 = vmatprep.subr.mxu0 0.0
          %2000 = vmatpush2.msra.mxu0 0.0
          %2001 = vmatprep.subr.mxu0 0.0
          %2002 = vmatpush2.msra.mxu0 0.0
          %2003 = vmatprep.subr.mxu0 0.0
          %2004 = vmatpush2.msra.mxu0 0.0
          %2005 = vmatprep.subr.mxu0 0.0
          %2006 = vmatpush2.msra.mxu0 0.0
          %2007 = vmatprep.subr.mxu0 0.0
          %2008 = vmatpush2.msra.mxu0 0.0
          %2009 = vmatprep.subr.mxu0 0.0
          %2010 = vmatpush2.msra.mxu0 0.0
          %2011 = vmatprep.subr.mxu0 0.0
          %2012 = vmatpush2.msra.mxu0 0.0
          %2013 = vmatprep.subr.mxu0 0.0
          %2014 = vmatpush2.msra.mxu0 0.0
          %2015 = vmatprep.subr.mxu0 0.0
          %2016 = vmatpush2.msra.mxu0 0.0
          %2017 = vmatprep.subr.mxu0 0.0
          %2018 = vmatpush2.msra.mxu0 0.0
          %2019 = vmatprep.subr.mxu0 0.0
          %2020 = vmatpush2.msra.mxu0 0.0
          %2021 = vmatprep.subr.mxu0 0.0
          %2022 = vmatpush2.msra.mxu0 0.0
          %2023 = vmatprep.mubr.f32.mxu0 0.0
          %2024 = vmatmul.mubr.f32.gmra.mxu0 %v1941
          %v2025 = vpop.f32.mrf.mxu0
          %v2026 = vadd.f32 0.0, %v2025
          %v2027 = vpop.f32.mrf.mxu0
          %2028 = vmatprep.mubr.f32.mxu0 0.0
          %2029 = vmatmul.mubr.f32.gmra.mxu0 %v1942
          %v2030 = vpop.f32.mrf.mxu0
          %v2031 = vadd.f32 0.0, %v2030
          %v2032 = vpop.f32.mrf.mxu0
          %2033 = vdwg.mxu0
          %2034 = vmatprep.subr.mxu0 0.0
          %2035 = vmatpush1.msra.mxu0 %v1940
          %2036 = vmatprep.subr.mxu0 0.0
          %2037 = vmatpush1.msra.mxu0 %v1939
          %2038 = vmatprep.subr.mxu0 0.0
          %2039 = vmatpush1.msra.mxu0 %v1938
          %2040 = vmatprep.subr.mxu0 0.0
          %2041 = vmatpush1.msra.mxu0 %v1937
          %2042 = vmatprep.subr.mxu0 0.0
          %2043 = vmatpush1.msra.mxu0 %v1936
          %2044 = vmatprep.subr.mxu0 0.0
          %2045 = vmatpush1.msra.mxu0 %v1935
          %2046 = vmatprep.subr.mxu0 0.0
          %2047 = vmatpush1.msra.mxu0 %v1934
          %2048 = vmatprep.subr.mxu0 0.0
          %2049 = vmatpush1.msra.mxu0 %v1933
          %2050 = vmatprep.subr.mxu0 0.0
          %2051 = vmatpush1.msra.mxu0 %v1932
          %2052 = vmatprep.subr.mxu0 0.0
          %2053 = vmatpush1.msra.mxu0 %v1931
          %2054 = vmatprep.subr.mxu0 0.0
          %2055 = vmatpush1.msra.mxu0 %v1930
          %2056 = vmatprep.subr.mxu0 0.0
          %2057 = vmatpush1.msra.mxu0 %v1929
          %2058 = vmatprep.subr.mxu0 0.0
          %2059 = vmatpush1.msra.mxu0 %v1928
          %2060 = vmatprep.subr.mxu0 0.0
          %2061 = vmatpush1.msra.mxu0 %v1927
          %2062 = vmatprep.subr.mxu0 0.0
          %2063 = vmatpush1.msra.mxu0 %v1926
          %2064 = vmatprep.subr.mxu0 0.0
          %2065 = vmatpush1.msra.mxu0 %v1925
          %2066 = vmatprep.subr.mxu0 0.0
          %2067 = vmatpush2.msra.mxu0 0.0
          %2068 = vmatprep.subr.mxu0 0.0
          %2069 = vmatpush2.msra.mxu0 0.0
          %2070 = vmatprep.subr.mxu0 0.0
          %2071 = vmatpush2.msra.mxu0 0.0
          %2072 = vmatprep.subr.mxu0 0.0
          %2073 = vmatpush2.msra.mxu0 0.0
          %2074 = vmatprep.subr.mxu0 0.0
          %2075 = vmatpush2.msra.mxu0 0.0
          %2076 = vmatprep.subr.mxu0 0.0
          %2077 = vmatpush2.msra.mxu0 0.0
          %2078 = vmatprep.subr.mxu0 0.0
          %2079 = vmatpush2.msra.mxu0 0.0
          %2080 = vmatprep.subr.mxu0 0.0
          %2081 = vmatpush2.msra.mxu0 0.0
          %2082 = vmatprep.subr.mxu0 0.0
          %2083 = vmatpush2.msra.mxu0 0.0
          %2084 = vmatprep.subr.mxu0 0.0
          %2085 = vmatpush2.msra.mxu0 0.0
          %2086 = vmatprep.subr.mxu0 0.0
          %2087 = vmatpush2.msra.mxu0 0.0
          %2088 = vmatprep.subr.mxu0 0.0
          %2089 = vmatpush2.msra.mxu0 0.0
          %2090 = vmatprep.subr.mxu0 0.0
          %2091 = vmatpush2.msra.mxu0 0.0
          %2092 = vmatprep.subr.mxu0 0.0
          %2093 = vmatpush2.msra.mxu0 0.0
          %2094 = vmatprep.subr.mxu0 0.0
          %2095 = vmatpush2.msra.mxu0 0.0
          %2096 = vmatprep.subr.mxu0 0.0
          %2097 = vmatpush2.msra.mxu0 0.0
          %2098 = vmatprep.mubr.f32.mxu0 0.0
          %2099 = vmatmul.mubr.f32.gmra.mxu0 %v1923
          %v2100 = vpop.f32.mrf.mxu0
          %v2101 = vadd.f32 %v2026, %v2100
          %v2102 = vpop.f32.mrf.mxu0
          %2103 = vmatprep.mubr.f32.mxu0 0.0
          %2104 = vmatmul.mubr.f32.gmra.mxu0 %v1924
          %v2105 = vpop.f32.mrf.mxu0
          %v2106 = vadd.f32 %v2031, %v2105
          %v2107 = vpop.f32.mrf.mxu0
          %2108 = vdwg.mxu0
          %v2109 = vld [vmem:[%s1204] sm:$0x1]
          %v2111 = vlaneseq
          %v2112 = vshrl.u32 %v2111, 7
          %v2113 = vsub.s32 0, %v2112
          %v2114 = vrot.slane %v2109, %v2113
          %v2116 = vadd.f32 %v2101, %v2114
          %v2117 = vadd.f32 %v2106, %v2114
          %v2118 = vxor.u32 %v2116, 2147483648
          %v2119 = vxor.u32 %v2117, 2147483648
          %v2120 = vmul.f32 %v2118, 1.442695
          %v2121 = vpow.pop %v2120
          %v2122 = vmul.f32 %v2119, 1.442695
          %v2123 = vpow.pop %v2122
          %v2124 = vadd.f32 %v2121, 1.0
          %v2125 = vadd.f32 %v2123, 1.0
          %v2126 = vrcp.pop %v2124
          %v2127 = vmul.f32 1.0, %v2126
          %v2128 = vrcp.pop %v2125
          %v2129 = vmul.f32 1.0, %v2128
          %v2130 = vmul.f32 %v2116, %v2127
          %v2131 = vmul.f32 %v2117, %v2129
          %v2132 = vld [vmem:[%s1017] sm:$0xff]
          %v2133 = vld [vmem:[%s1017 + $0x8] sm:$0xff]
          %v2134 = vld [vmem:[%s1017 + $0x10] sm:$0xff]
          %v2135 = vld [vmem:[%s1017 + $0x18] sm:$0xff]
          %v2136 = vld [vmem:[%s1017 + $0x20] sm:$0xff]
          %v2137 = vld [vmem:[%s1017 + $0x28] sm:$0xff]
          %v2138 = vld [vmem:[%s1017 + $0x30] sm:$0xff]
          %v2139 = vld [vmem:[%s1017 + $0x38] sm:$0xff]
          %v2140 = vld [vmem:[%s1017 + $0x40] sm:$0xff]
          %v2141 = vld [vmem:[%s1017 + $0x48] sm:$0xff]
          %v2142 = vld [vmem:[%s1017 + $0x50] sm:$0xff]
          %v2143 = vld [vmem:[%s1017 + $0x58] sm:$0xff]
          %v2144 = vld [vmem:[%s1017 + $0x60] sm:$0xff]
          %v2145 = vld [vmem:[%s1017 + $0x68] sm:$0xff]
          %v2146 = vld [vmem:[%s1017 + $0x70] sm:$0xff]
          %v2147 = vld [vmem:[%s1017 + $0x78] sm:$0xff]
          %2148 = vmatprep.subr.mxu0 0.0
          %2149 = vmatpush1.msra.mxu0 %v2147
          %2150 = vmatprep.subr.mxu0 0.0
          %2151 = vmatpush1.msra.mxu0 %v2146
          %2152 = vmatprep.subr.mxu0 0.0
          %2153 = vmatpush1.msra.mxu0 %v2145
          %2154 = vmatprep.subr.mxu0 0.0
          %2155 = vmatpush1.msra.mxu0 %v2144
          %2156 = vmatprep.subr.mxu0 0.0
          %2157 = vmatpush1.msra.mxu0 %v2143
          %2158 = vmatprep.subr.mxu0 0.0
          %2159 = vmatpush1.msra.mxu0 %v2142
          %2160 = vmatprep.subr.mxu0 0.0
          %2161 = vmatpush1.msra.mxu0 %v2141
          %2162 = vmatprep.subr.mxu0 0.0
          %2163 = vmatpush1.msra.mxu0 %v2140
          %2164 = vmatprep.subr.mxu0 0.0
          %2165 = vmatpush1.msra.mxu0 %v2139
          %2166 = vmatprep.subr.mxu0 0.0
          %2167 = vmatpush1.msra.mxu0 %v2138
          %2168 = vmatprep.subr.mxu0 0.0
          %2169 = vmatpush1.msra.mxu0 %v2137
          %2170 = vmatprep.subr.mxu0 0.0
          %2171 = vmatpush1.msra.mxu0 %v2136
          %2172 = vmatprep.subr.mxu0 0.0
          %2173 = vmatpush1.msra.mxu0 %v2135
          %2174 = vmatprep.subr.mxu0 0.0
          %2175 = vmatpush1.msra.mxu0 %v2134
          %2176 = vmatprep.subr.mxu0 0.0
          %2177 = vmatpush1.msra.mxu0 %v2133
          %2178 = vmatprep.subr.mxu0 0.0
          %2179 = vmatpush1.msra.mxu0 %v2132
          %2180 = vmatprep.subr.mxu0 0.0
          %2181 = vmatpush2.msra.mxu0 0.0
          %2182 = vmatprep.subr.mxu0 0.0
          %2183 = vmatpush2.msra.mxu0 0.0
          %2184 = vmatprep.subr.mxu0 0.0
          %2185 = vmatpush2.msra.mxu0 0.0
          %2186 = vmatprep.subr.mxu0 0.0
          %2187 = vmatpush2.msra.mxu0 0.0
          %2188 = vmatprep.subr.mxu0 0.0
          %2189 = vmatpush2.msra.mxu0 0.0
          %2190 = vmatprep.subr.mxu0 0.0
          %2191 = vmatpush2.msra.mxu0 0.0
          %2192 = vmatprep.subr.mxu0 0.0
          %2193 = vmatpush2.msra.mxu0 0.0
          %2194 = vmatprep.subr.mxu0 0.0
          %2195 = vmatpush2.msra.mxu0 0.0
          %2196 = vmatprep.subr.mxu0 0.0
          %2197 = vmatpush2.msra.mxu0 0.0
          %2198 = vmatprep.subr.mxu0 0.0
          %2199 = vmatpush2.msra.mxu0 0.0
          %2200 = vmatprep.subr.mxu0 0.0
          %2201 = vmatpush2.msra.mxu0 0.0
          %2202 = vmatprep.subr.mxu0 0.0
          %2203 = vmatpush2.msra.mxu0 0.0
          %2204 = vmatprep.subr.mxu0 0.0
          %2205 = vmatpush2.msra.mxu0 0.0
          %2206 = vmatprep.subr.mxu0 0.0
          %2207 = vmatpush2.msra.mxu0 0.0
          %2208 = vmatprep.subr.mxu0 0.0
          %2209 = vmatpush2.msra.mxu0 0.0
          %2210 = vmatprep.subr.mxu0 0.0
          %2211 = vmatpush2.msra.mxu0 0.0
          %2212 = vmatprep.mubr.f32.mxu0 0.0
          %2213 = vmatmul.mubr.f32.gmra.mxu0 %v2130
          %v2214 = vpop.f32.mrf.mxu0
          %v2215 = vadd.f32 0.0, %v2214
          %v2216 = vpop.f32.mrf.mxu0
          %2217 = vmatprep.mubr.f32.mxu0 0.0
          %2218 = vmatmul.mubr.f32.gmra.mxu0 %v2131
          %v2219 = vpop.f32.mrf.mxu0
          %v2220 = vadd.f32 0.0, %v2219
          %v2221 = vpop.f32.mrf.mxu0
          %2222 = vdwg.mxu0
          %v2223 = vadd.f32 %v1923, %v2215
          %v2224 = vadd.f32 %v1924, %v2220
          %v2225 = vld [vmem:[%s1207] sm:$0x1]
          %v2227 = vlaneseq
          %v2228 = vshrl.u32 %v2227, 7
          %v2229 = vsub.s32 0, %v2228
          %v2230 = vrot.slane %v2225, %v2229
          %v2232 = vadd.f32 %v2223, %v2230
          %v2233 = vadd.f32 %v2224, %v2230
          %2234 = vst [vmem:[#allocation2] sm:$0xff] %v2232
          %2235 = vst [vmem:[#allocation2 + $0x8] sm:$0xff] %v2233
        $region176: #{mpnn_forward.1} parent=131 // pred_fallthru
          _
        %p2236 = scmp.eq.s32.totalorder %s53, 1
        %p2237 = pnand %p2236, %p1919
        %p2238 = pneg %p2237
        // Predicated region
        $region177: #{mpnn_forward.1} parent=131 // pred_check
          _
        $region178: #{mpnn_forward.1} parent=131 // pred_check_branch
          %2240 = sbr.rel (%p2237) target = $region180
        $region179: #{mpnn_forward.1} parent=131 // pred_region
          %v2241 = vld [vmem:[#allocation2] sm:$0xff]
          %v2242 = vld [vmem:[#allocation2 + $0x8] sm:$0xff]
          %v2243 = vld [vmem:[#allocation10] sm:$0xff]
          %v2244 = vld [vmem:[#allocation10 + $0x8] sm:$0xff]
          %v2245 = vld [vmem:[#allocation10 + $0x10] sm:$0xff]
          %v2246 = vld [vmem:[#allocation10 + $0x18] sm:$0xff]
          %v2247 = vld [vmem:[#allocation10 + $0x20] sm:$0xff]
          %v2248 = vld [vmem:[#allocation10 + $0x28] sm:$0xff]
          %v2249 = vld [vmem:[#allocation10 + $0x30] sm:$0xff]
          %v2250 = vld [vmem:[#allocation10 + $0x38] sm:$0xff]
          %v2251 = vld [vmem:[#allocation10 + $0x40] sm:$0xff]
          %v2252 = vld [vmem:[#allocation10 + $0x48] sm:$0xff]
          %v2253 = vld [vmem:[#allocation10 + $0x50] sm:$0xff]
          %v2254 = vld [vmem:[#allocation10 + $0x58] sm:$0xff]
          %v2255 = vld [vmem:[#allocation10 + $0x60] sm:$0xff]
          %v2256 = vld [vmem:[#allocation10 + $0x68] sm:$0xff]
          %v2257 = vld [vmem:[#allocation10 + $0x70] sm:$0xff]
          %v2258 = vld [vmem:[#allocation10 + $0x78] sm:$0xff]
          %v2259 = vld [vmem:[%s21] sm:$0x1]
          %v2261 = vlaneseq
          %v2262 = vshrl.u32 %v2261, 7
          %v2263 = vsub.s32 0, %v2262
          %v2264 = vrot.slane %v2259, %v2263
          %2266 = vmatprep.subr.mxu0 0.0
          %2267 = vmatpush1.msra.mxu0 %v2258
          %2268 = vmatprep.subr.mxu0 0.0
          %2269 = vmatpush1.msra.mxu0 %v2257
          %2270 = vmatprep.subr.mxu0 0.0
          %2271 = vmatpush1.msra.mxu0 %v2256
          %2272 = vmatprep.subr.mxu0 0.0
          %2273 = vmatpush1.msra.mxu0 %v2255
          %2274 = vmatprep.subr.mxu0 0.0
          %2275 = vmatpush1.msra.mxu0 %v2254
          %2276 = vmatprep.subr.mxu0 0.0
          %2277 = vmatpush1.msra.mxu0 %v2253
          %2278 = vmatprep.subr.mxu0 0.0
          %2279 = vmatpush1.msra.mxu0 %v2252
          %2280 = vmatprep.subr.mxu0 0.0
          %2281 = vmatpush1.msra.mxu0 %v2251
          %2282 = vmatprep.subr.mxu0 0.0
          %2283 = vmatpush1.msra.mxu0 %v2250
          %2284 = vmatprep.subr.mxu0 0.0
          %2285 = vmatpush1.msra.mxu0 %v2249
          %2286 = vmatprep.subr.mxu0 0.0
          %2287 = vmatpush1.msra.mxu0 %v2248
          %2288 = vmatprep.subr.mxu0 0.0
          %2289 = vmatpush1.msra.mxu0 %v2247
          %2290 = vmatprep.subr.mxu0 0.0
          %2291 = vmatpush1.msra.mxu0 %v2246
          %2292 = vmatprep.subr.mxu0 0.0
          %2293 = vmatpush1.msra.mxu0 %v2245
          %2294 = vmatprep.subr.mxu0 0.0
          %2295 = vmatpush1.msra.mxu0 %v2244
          %2296 = vmatprep.subr.mxu0 0.0
          %2297 = vmatpush1.msra.mxu0 %v2243
          %2298 = vmatprep.subr.mxu0 0.0
          %2299 = vmatpush2.msra.mxu0 0.0
          %2300 = vmatprep.subr.mxu0 0.0
          %2301 = vmatpush2.msra.mxu0 0.0
          %2302 = vmatprep.subr.mxu0 0.0
          %2303 = vmatpush2.msra.mxu0 0.0
          %2304 = vmatprep.subr.mxu0 0.0
          %2305 = vmatpush2.msra.mxu0 0.0
          %2306 = vmatprep.subr.mxu0 0.0
          %2307 = vmatpush2.msra.mxu0 0.0
          %2308 = vmatprep.subr.mxu0 0.0
          %2309 = vmatpush2.msra.mxu0 0.0
          %2310 = vmatprep.subr.mxu0 0.0
          %2311 = vmatpush2.msra.mxu0 0.0
          %2312 = vmatprep.subr.mxu0 0.0
          %2313 = vmatpush2.msra.mxu0 0.0
          %2314 = vmatprep.subr.mxu0 0.0
          %2315 = vmatpush2.msra.mxu0 0.0
          %2316 = vmatprep.subr.mxu0 0.0
          %2317 = vmatpush2.msra.mxu0 0.0
          %2318 = vmatprep.subr.mxu0 0.0
          %2319 = vmatpush2.msra.mxu0 0.0
          %2320 = vmatprep.subr.mxu0 0.0
          %2321 = vmatpush2.msra.mxu0 0.0
          %2322 = vmatprep.subr.mxu0 0.0
          %2323 = vmatpush2.msra.mxu0 0.0
          %2324 = vmatprep.subr.mxu0 0.0
          %2325 = vmatpush2.msra.mxu0 0.0
          %2326 = vmatprep.subr.mxu0 0.0
          %2327 = vmatpush2.msra.mxu0 0.0
          %2328 = vmatprep.subr.mxu0 0.0
          %2329 = vmatpush2.msra.mxu0 0.0
          %2330 = vmatprep.mubr.f32.mxu0 0.0
          %2331 = vmatmul.mubr.f32.gmra.mxu0 %v2241
          %v2332 = vpop.f32.mrf.mxu0
          %v2333 = vadd.f32 %v2264, %v2332
          %v2334 = vpop.f32.mrf.mxu0
          %2335 = vmatprep.mubr.f32.mxu0 0.0
          %2336 = vmatmul.mubr.f32.gmra.mxu0 %v2242
          %v2337 = vpop.f32.mrf.mxu0
          %v2338 = vadd.f32 %v2264, %v2337
          %v2339 = vpop.f32.mrf.mxu0
          %2340 = vdwg.mxu0
          %v2341 = vxor.u32 %v2333, 2147483648
          %v2342 = vxor.u32 %v2338, 2147483648
          %v2343 = vmul.f32 %v2341, 1.442695
          %v2344 = vpow.pop %v2343
          %v2345 = vmul.f32 %v2342, 1.442695
          %v2346 = vpow.pop %v2345
          %v2347 = vadd.f32 %v2344, 1.0
          %v2348 = vadd.f32 %v2346, 1.0
          %v2349 = vrcp.pop %v2347
          %v2350 = vmul.f32 1.0, %v2349
          %v2351 = vrcp.pop %v2348
          %v2352 = vmul.f32 1.0, %v2351
          %v2353 = vmul.f32 %v2333, %v2350
          %v2354 = vmul.f32 %v2338, %v2352
          %v2355 = vld [vmem:[#allocation12] sm:$0xff]
          %v2356 = vld [vmem:[#allocation12 + $0x8] sm:$0xff]
          %v2357 = vld [vmem:[#allocation12 + $0x10] sm:$0xff]
          %v2358 = vld [vmem:[#allocation12 + $0x18] sm:$0xff]
          %v2359 = vld [vmem:[#allocation12 + $0x20] sm:$0xff]
          %v2360 = vld [vmem:[#allocation12 + $0x28] sm:$0xff]
          %v2361 = vld [vmem:[#allocation12 + $0x30] sm:$0xff]
          %v2362 = vld [vmem:[#allocation12 + $0x38] sm:$0xff]
          %v2363 = vld [vmem:[#allocation12 + $0x40] sm:$0xff]
          %v2364 = vld [vmem:[#allocation12 + $0x48] sm:$0xff]
          %v2365 = vld [vmem:[#allocation12 + $0x50] sm:$0xff]
          %v2366 = vld [vmem:[#allocation12 + $0x58] sm:$0xff]
          %v2367 = vld [vmem:[#allocation12 + $0x60] sm:$0xff]
          %v2368 = vld [vmem:[#allocation12 + $0x68] sm:$0xff]
          %v2369 = vld [vmem:[#allocation12 + $0x70] sm:$0xff]
          %v2370 = vld [vmem:[#allocation12 + $0x78] sm:$0xff]
          %v2371 = vld [vmem:[%s23] sm:$0x1]
          %v2373 = vlaneseq
          %v2374 = vshrl.u32 %v2373, 7
          %v2375 = vsub.s32 0, %v2374
          %v2376 = vrot.slane %v2371, %v2375
          %2378 = vmatprep.subr.mxu0 0.0
          %2379 = vmatpush1.msra.mxu0 %v2370
          %2380 = vmatprep.subr.mxu0 0.0
          %2381 = vmatpush1.msra.mxu0 %v2369
          %2382 = vmatprep.subr.mxu0 0.0
          %2383 = vmatpush1.msra.mxu0 %v2368
          %2384 = vmatprep.subr.mxu0 0.0
          %2385 = vmatpush1.msra.mxu0 %v2367
          %2386 = vmatprep.subr.mxu0 0.0
          %2387 = vmatpush1.msra.mxu0 %v2366
          %2388 = vmatprep.subr.mxu0 0.0
          %2389 = vmatpush1.msra.mxu0 %v2365
          %2390 = vmatprep.subr.mxu0 0.0
          %2391 = vmatpush1.msra.mxu0 %v2364
          %2392 = vmatprep.subr.mxu0 0.0
          %2393 = vmatpush1.msra.mxu0 %v2363
          %2394 = vmatprep.subr.mxu0 0.0
          %2395 = vmatpush1.msra.mxu0 %v2362
          %2396 = vmatprep.subr.mxu0 0.0
          %2397 = vmatpush1.msra.mxu0 %v2361
          %2398 = vmatprep.subr.mxu0 0.0
          %2399 = vmatpush1.msra.mxu0 %v2360
          %2400 = vmatprep.subr.mxu0 0.0
          %2401 = vmatpush1.msra.mxu0 %v2359
          %2402 = vmatprep.subr.mxu0 0.0
          %2403 = vmatpush1.msra.mxu0 %v2358
          %2404 = vmatprep.subr.mxu0 0.0
          %2405 = vmatpush1.msra.mxu0 %v2357
          %2406 = vmatprep.subr.mxu0 0.0
          %2407 = vmatpush1.msra.mxu0 %v2356
          %2408 = vmatprep.subr.mxu0 0.0
          %2409 = vmatpush1.msra.mxu0 %v2355
          %2410 = vmatprep.subr.mxu0 0.0
          %2411 = vmatpush2.msra.mxu0 0.0
          %2412 = vmatprep.subr.mxu0 0.0
          %2413 = vmatpush2.msra.mxu0 0.0
          %2414 = vmatprep.subr.mxu0 0.0
          %2415 = vmatpush2.msra.mxu0 0.0
          %2416 = vmatprep.subr.mxu0 0.0
          %2417 = vmatpush2.msra.mxu0 0.0
          %2418 = vmatprep.subr.mxu0 0.0
          %2419 = vmatpush2.msra.mxu0 0.0
          %2420 = vmatprep.subr.mxu0 0.0
          %2421 = vmatpush2.msra.mxu0 0.0
          %2422 = vmatprep.subr.mxu0 0.0
          %2423 = vmatpush2.msra.mxu0 0.0
          %2424 = vmatprep.subr.mxu0 0.0
          %2425 = vmatpush2.msra.mxu0 0.0
          %2426 = vmatprep.subr.mxu0 0.0
          %2427 = vmatpush2.msra.mxu0 0.0
          %2428 = vmatprep.subr.mxu0 0.0
          %2429 = vmatpush2.msra.mxu0 0.0
          %2430 = vmatprep.subr.mxu0 0.0
          %2431 = vmatpush2.msra.mxu0 0.0
          %2432 = vmatprep.subr.mxu0 0.0
          %2433 = vmatpush2.msra.mxu0 0.0
          %2434 = vmatprep.subr.mxu0 0.0
          %2435 = vmatpush2.msra.mxu0 0.0
          %2436 = vmatprep.subr.mxu0 0.0
          %2437 = vmatpush2.msra.mxu0 0.0
          %2438 = vmatprep.subr.mxu0 0.0
          %2439 = vmatpush2.msra.mxu0 0.0
          %2440 = vmatprep.subr.mxu0 0.0
          %2441 = vmatpush2.msra.mxu0 0.0
          %2442 = vmatprep.mubr.f32.mxu0 0.0
          %2443 = vmatmul.mubr.f32.gmra.mxu0 %v2353
          %v2444 = vpop.f32.mrf.mxu0
          %v2445 = vadd.f32 %v2376, %v2444
          %v2446 = vpop.f32.mrf.mxu0
          %2447 = vmatprep.mubr.f32.mxu0 0.0
          %2448 = vmatmul.mubr.f32.gmra.mxu0 %v2354
          %v2449 = vpop.f32.mrf.mxu0
          %v2450 = vadd.f32 %v2376, %v2449
          %v2451 = vpop.f32.mrf.mxu0
          %2452 = vdwg.mxu0
          %v2453 = vld [vmem:[%s5] sm:$0x1]
          %v2455 = vsel %vm1415, %v2453, 0
          %2457 = vmatprep.subr.mxu0 0.0
          %2458 = vmatpush1.msra.mxu0 0.0
          %2459 = vmatprep.subr.mxu0 0.0
          %2460 = vmatpush1.msra.mxu0 0.0
          %2461 = vmatprep.subr.mxu0 0.0
          %2462 = vmatpush1.msra.mxu0 0.0
          %2463 = vmatprep.subr.mxu0 0.0
          %2464 = vmatpush1.msra.mxu0 0.0
          %2465 = vmatprep.subr.mxu0 0.0
          %2466 = vmatpush1.msra.mxu0 0.0
          %2467 = vmatprep.subr.mxu0 0.0
          %2468 = vmatpush1.msra.mxu0 0.0
          %2469 = vmatprep.subr.mxu0 0.0
          %2470 = vmatpush1.msra.mxu0 0.0
          %2471 = vmatprep.subr.mxu0 0.0
          %2472 = vmatpush1.msra.mxu0 0.0
          %2473 = vmatprep.subr.mxu0 0.0
          %2474 = vmatpush1.msra.mxu0 0.0
          %2475 = vmatprep.subr.mxu0 0.0
          %2476 = vmatpush1.msra.mxu0 0.0
          %2477 = vmatprep.subr.mxu0 0.0
          %2478 = vmatpush1.msra.mxu0 0.0
          %2479 = vmatprep.subr.mxu0 0.0
          %2480 = vmatpush1.msra.mxu0 0.0
          %2481 = vmatprep.subr.mxu0 0.0
          %2482 = vmatpush1.msra.mxu0 0.0
          %2483 = vmatprep.subr.mxu0 0.0
          %2484 = vmatpush1.msra.mxu0 0.0
          %2485 = vmatprep.subr.mxu0 0.0
          %2486 = vmatpush1.msra.mxu0 %v2450
          %2487 = vmatprep.subr.mxu0 0.0
          %2488 = vmatpush1.msra.mxu0 %v2445
          %2489 = vmatprep.subr.mxu0 0.0
          %2490 = vmatpush2.msra.mxu0 0.0
          %2491 = vmatprep.subr.mxu0 0.0
          %2492 = vmatpush2.msra.mxu0 0.0
          %2493 = vmatprep.subr.mxu0 0.0
          %2494 = vmatpush2.msra.mxu0 0.0
          %2495 = vmatprep.subr.mxu0 0.0
          %2496 = vmatpush2.msra.mxu0 0.0
          %2497 = vmatprep.subr.mxu0 0.0
          %2498 = vmatpush2.msra.mxu0 0.0
          %2499 = vmatprep.subr.mxu0 0.0
          %2500 = vmatpush2.msra.mxu0 0.0
          %2501 = vmatprep.subr.mxu0 0.0
          %2502 = vmatpush2.msra.mxu0 0.0
          %2503 = vmatprep.subr.mxu0 0.0
          %2504 = vmatpush2.msra.mxu0 0.0
          %2505 = vmatprep.subr.mxu0 0.0
          %2506 = vmatpush2.msra.mxu0 0.0
          %2507 = vmatprep.subr.mxu0 0.0
          %2508 = vmatpush2.msra.mxu0 0.0
          %2509 = vmatprep.subr.mxu0 0.0
          %2510 = vmatpush2.msra.mxu0 0.0
          %2511 = vmatprep.subr.mxu0 0.0
          %2512 = vmatpush2.msra.mxu0 0.0
          %2513 = vmatprep.subr.mxu0 0.0
          %2514 = vmatpush2.msra.mxu0 0.0
          %2515 = vmatprep.subr.mxu0 0.0
          %2516 = vmatpush2.msra.mxu0 0.0
          %2517 = vmatprep.subr.mxu0 0.0
          %2518 = vmatpush2.msra.mxu0 0.0
          %2519 = vmatprep.subr.mxu0 0.0
          %2520 = vmatpush2.msra.mxu0 0.0
          %2521 = vmatprep.mubr.bf16.mxu0 0
          %2522 = vmatmul.mubr.bf16.gmra.mxu0 %v2455
          %v2523 = vpop.f32.mrf.mxu0
          %v2524 = vadd.f32 0.0, %v2523
          %v2525 = vpop.f32.mrf.mxu0
          %v2526 = vpop.f32.mrf.mxu0
          %v2527 = vpop.f32.mrf.mxu0
          %2528 = vdwg.mxu0
          %v2529 = vld [vmem:[#allocation13] sm:$0xff]
          %v2530 = vld [vmem:[#allocation13 + $0x8] sm:$0xff]
          %v2531 = vld [vmem:[#allocation13 + $0x10] sm:$0xff]
          %v2532 = vld [vmem:[#allocation13 + $0x18] sm:$0xff]
          %v2533 = vld [vmem:[#allocation13 + $0x20] sm:$0xff]
          %v2534 = vld [vmem:[#allocation13 + $0x28] sm:$0xff]
          %v2535 = vld [vmem:[#allocation13 + $0x30] sm:$0xff]
          %v2536 = vld [vmem:[#allocation13 + $0x38] sm:$0xff]
          %v2537 = vld [vmem:[#allocation13 + $0x40] sm:$0xff]
          %v2538 = vld [vmem:[#allocation13 + $0x48] sm:$0xff]
          %v2539 = vld [vmem:[#allocation13 + $0x50] sm:$0xff]
          %v2540 = vld [vmem:[#allocation13 + $0x58] sm:$0xff]
          %v2541 = vld [vmem:[#allocation13 + $0x60] sm:$0xff]
          %v2542 = vld [vmem:[#allocation13 + $0x68] sm:$0xff]
          %v2543 = vld [vmem:[#allocation13 + $0x70] sm:$0xff]
          %v2544 = vld [vmem:[#allocation13 + $0x78] sm:$0xff]
          %v2545 = vld [vmem:[%s25] sm:$0x1]
          %v2547 = vlaneseq
          %v2548 = vshrl.u32 %v2547, 7
          %v2549 = vsub.s32 0, %v2548
          %v2550 = vrot.slane %v2545, %v2549
          %2552 = vmatprep.subr.mxu0 0.0
          %2553 = vmatpush1.msra.mxu0 %v2544
          %2554 = vmatprep.subr.mxu0 0.0
          %2555 = vmatpush1.msra.mxu0 %v2543
          %2556 = vmatprep.subr.mxu0 0.0
          %2557 = vmatpush1.msra.mxu0 %v2542
          %2558 = vmatprep.subr.mxu0 0.0
          %2559 = vmatpush1.msra.mxu0 %v2541
          %2560 = vmatprep.subr.mxu0 0.0
          %2561 = vmatpush1.msra.mxu0 %v2540
          %2562 = vmatprep.subr.mxu0 0.0
          %2563 = vmatpush1.msra.mxu0 %v2539
          %2564 = vmatprep.subr.mxu0 0.0
          %2565 = vmatpush1.msra.mxu0 %v2538
          %2566 = vmatprep.subr.mxu0 0.0
          %2567 = vmatpush1.msra.mxu0 %v2537
          %2568 = vmatprep.subr.mxu0 0.0
          %2569 = vmatpush1.msra.mxu0 %v2536
          %2570 = vmatprep.subr.mxu0 0.0
          %2571 = vmatpush1.msra.mxu0 %v2535
          %2572 = vmatprep.subr.mxu0 0.0
          %2573 = vmatpush1.msra.mxu0 %v2534
          %2574 = vmatprep.subr.mxu0 0.0
          %2575 = vmatpush1.msra.mxu0 %v2533
          %2576 = vmatprep.subr.mxu0 0.0
          %2577 = vmatpush1.msra.mxu0 %v2532
          %2578 = vmatprep.subr.mxu0 0.0
          %2579 = vmatpush1.msra.mxu0 %v2531
          %2580 = vmatprep.subr.mxu0 0.0
          %2581 = vmatpush1.msra.mxu0 %v2530
          %2582 = vmatprep.subr.mxu0 0.0
          %2583 = vmatpush1.msra.mxu0 %v2529
          %2584 = vmatprep.subr.mxu0 0.0
          %2585 = vmatpush2.msra.mxu0 0.0
          %2586 = vmatprep.subr.mxu0 0.0
          %2587 = vmatpush2.msra.mxu0 0.0
          %2588 = vmatprep.subr.mxu0 0.0
          %2589 = vmatpush2.msra.mxu0 0.0
          %2590 = vmatprep.subr.mxu0 0.0
          %2591 = vmatpush2.msra.mxu0 0.0
          %2592 = vmatprep.subr.mxu0 0.0
          %2593 = vmatpush2.msra.mxu0 0.0
          %2594 = vmatprep.subr.mxu0 0.0
          %2595 = vmatpush2.msra.mxu0 0.0
          %2596 = vmatprep.subr.mxu0 0.0
          %2597 = vmatpush2.msra.mxu0 0.0
          %2598 = vmatprep.subr.mxu0 0.0
          %2599 = vmatpush2.msra.mxu0 0.0
          %2600 = vmatprep.subr.mxu0 0.0
          %2601 = vmatpush2.msra.mxu0 0.0
          %2602 = vmatprep.subr.mxu0 0.0
          %2603 = vmatpush2.msra.mxu0 0.0
          %2604 = vmatprep.subr.mxu0 0.0
          %2605 = vmatpush2.msra.mxu0 0.0
          %2606 = vmatprep.subr.mxu0 0.0
          %2607 = vmatpush2.msra.mxu0 0.0
          %2608 = vmatprep.subr.mxu0 0.0
          %2609 = vmatpush2.msra.mxu0 0.0
          %2610 = vmatprep.subr.mxu0 0.0
          %2611 = vmatpush2.msra.mxu0 0.0
          %2612 = vmatprep.subr.mxu0 0.0
          %2613 = vmatpush2.msra.mxu0 0.0
          %2614 = vmatprep.subr.mxu0 0.0
          %2615 = vmatpush2.msra.mxu0 0.0
          %2616 = vmatprep.mubr.f32.mxu0 0.0
          %2617 = vmatmul.mubr.f32.gmra.mxu0 %v2524
          %v2618 = vpop.f32.mrf.mxu0
          %v2619 = vadd.f32 %v2550, %v2618
          %v2620 = vpop.f32.mrf.mxu0
          %2621 = vdwg.mxu0
          %v2622 = vxor.u32 %v2619, 2147483648
          %v2623 = vmul.f32 %v2622, 1.442695
          %v2624 = vpow.pop %v2623
          %v2625 = vadd.f32 %v2624, 1.0
          %v2626 = vrcp.pop %v2625
          %v2627 = vmul.f32 1.0, %v2626
          %v2628 = vmul.f32 %v2619, %v2627
          %v2629 = vld [vmem:[#allocation15] sm:$0xff]
          %v2630 = vld [vmem:[#allocation15 + $0x8] sm:$0xff]
          %v2631 = vld [vmem:[#allocation15 + $0x10] sm:$0xff]
          %v2632 = vld [vmem:[#allocation15 + $0x18] sm:$0xff]
          %v2633 = vld [vmem:[#allocation15 + $0x20] sm:$0xff]
          %v2634 = vld [vmem:[#allocation15 + $0x28] sm:$0xff]
          %v2635 = vld [vmem:[#allocation15 + $0x30] sm:$0xff]
          %v2636 = vld [vmem:[#allocation15 + $0x38] sm:$0xff]
          %v2637 = vld [vmem:[#allocation15 + $0x40] sm:$0xff]
          %v2638 = vld [vmem:[#allocation15 + $0x48] sm:$0xff]
          %v2639 = vld [vmem:[#allocation15 + $0x50] sm:$0xff]
          %v2640 = vld [vmem:[#allocation15 + $0x58] sm:$0xff]
          %v2641 = vld [vmem:[#allocation15 + $0x60] sm:$0xff]
          %v2642 = vld [vmem:[#allocation15 + $0x68] sm:$0xff]
          %v2643 = vld [vmem:[#allocation15 + $0x70] sm:$0xff]
          %v2644 = vld [vmem:[#allocation15 + $0x78] sm:$0xff]
          %v2645 = vld [vmem:[#allocation16] sm:$0x1]
          %v2647 = vlaneseq
          %v2648 = vshrl.u32 %v2647, 7
          %v2649 = vsub.s32 0, %v2648
          %v2650 = vrot.slane %v2645, %v2649
          %2652 = vmatprep.subr.mxu0 0.0
          %2653 = vmatpush1.msra.mxu0 %v2644
          %2654 = vmatprep.subr.mxu0 0.0
          %2655 = vmatpush1.msra.mxu0 %v2643
          %2656 = vmatprep.subr.mxu0 0.0
          %2657 = vmatpush1.msra.mxu0 %v2642
          %2658 = vmatprep.subr.mxu0 0.0
          %2659 = vmatpush1.msra.mxu0 %v2641
          %2660 = vmatprep.subr.mxu0 0.0
          %2661 = vmatpush1.msra.mxu0 %v2640
          %2662 = vmatprep.subr.mxu0 0.0
          %2663 = vmatpush1.msra.mxu0 %v2639
          %2664 = vmatprep.subr.mxu0 0.0
          %2665 = vmatpush1.msra.mxu0 %v2638
          %2666 = vmatprep.subr.mxu0 0.0
          %2667 = vmatpush1.msra.mxu0 %v2637
          %2668 = vmatprep.subr.mxu0 0.0
          %2669 = vmatpush1.msra.mxu0 %v2636
          %2670 = vmatprep.subr.mxu0 0.0
          %2671 = vmatpush1.msra.mxu0 %v2635
          %2672 = vmatprep.subr.mxu0 0.0
          %2673 = vmatpush1.msra.mxu0 %v2634
          %2674 = vmatprep.subr.mxu0 0.0
          %2675 = vmatpush1.msra.mxu0 %v2633
          %2676 = vmatprep.subr.mxu0 0.0
          %2677 = vmatpush1.msra.mxu0 %v2632
          %2678 = vmatprep.subr.mxu0 0.0
          %2679 = vmatpush1.msra.mxu0 %v2631
          %2680 = vmatprep.subr.mxu0 0.0
          %2681 = vmatpush1.msra.mxu0 %v2630
          %2682 = vmatprep.subr.mxu0 0.0
          %2683 = vmatpush1.msra.mxu0 %v2629
          %2684 = vmatprep.subr.mxu0 0.0
          %2685 = vmatpush2.msra.mxu0 0.0
          %2686 = vmatprep.subr.mxu0 0.0
          %2687 = vmatpush2.msra.mxu0 0.0
          %2688 = vmatprep.subr.mxu0 0.0
          %2689 = vmatpush2.msra.mxu0 0.0
          %2690 = vmatprep.subr.mxu0 0.0
          %2691 = vmatpush2.msra.mxu0 0.0
          %2692 = vmatprep.subr.mxu0 0.0
          %2693 = vmatpush2.msra.mxu0 0.0
          %2694 = vmatprep.subr.mxu0 0.0
          %2695 = vmatpush2.msra.mxu0 0.0
          %2696 = vmatprep.subr.mxu0 0.0
          %2697 = vmatpush2.msra.mxu0 0.0
          %2698 = vmatprep.subr.mxu0 0.0
          %2699 = vmatpush2.msra.mxu0 0.0
          %2700 = vmatprep.subr.mxu0 0.0
          %2701 = vmatpush2.msra.mxu0 0.0
          %2702 = vmatprep.subr.mxu0 0.0
          %2703 = vmatpush2.msra.mxu0 0.0
          %2704 = vmatprep.subr.mxu0 0.0
          %2705 = vmatpush2.msra.mxu0 0.0
          %2706 = vmatprep.subr.mxu0 0.0
          %2707 = vmatpush2.msra.mxu0 0.0
          %2708 = vmatprep.subr.mxu0 0.0
          %2709 = vmatpush2.msra.mxu0 0.0
          %2710 = vmatprep.subr.mxu0 0.0
          %2711 = vmatpush2.msra.mxu0 0.0
          %2712 = vmatprep.subr.mxu0 0.0
          %2713 = vmatpush2.msra.mxu0 0.0
          %2714 = vmatprep.subr.mxu0 0.0
          %2715 = vmatpush2.msra.mxu0 0.0
          %2716 = vmatprep.mubr.f32.mxu0 0.0
          %2717 = vmatmul.mubr.f32.gmra.mxu0 %v2628
          %v2718 = vpop.f32.mrf.mxu0
          %v2719 = vadd.f32 %v2650, %v2718
          %v2720 = vpop.f32.mrf.mxu0
          %2721 = vdwg.mxu0
          %2722 = vst [vmem:[#allocation18] sm:$0x3] %v2719
        $region180: #{mpnn_forward.1} parent=131 // pred_fallthru
          _
        // Predicated region
        $region181: #{mpnn_forward.1} parent=131 // pred_check
          %p2723 = pneg %p732
        $region182: #{mpnn_forward.1} parent=131 // pred_check_branch
          %2725 = sbr.rel (%p2723) target = $region184
        $region183: #{mpnn_forward.1} parent=131 // pred_region
          %s2727 = ssub.s32 32, 32
          %2728 = vsyncadd [#allocation6], %s2727
          %s2730 = sshll.u32 [#allocation18], 4
          %s2731 = int_to_ptr.vmem [resolvable:$true] %s2730
          %2733 = dma.vmem_to_hbm [thread:$0]  %s2731, 32, %s28, [#allocation6]
        $region184: #{mpnn_forward.1} parent=131 // pred_fallthru
          _
        // Predicated region
        $region185: #{mpnn_forward.1} parent=131 // pred_check
          %p2734 = pneg %p732
        $region186: #{mpnn_forward.1} parent=131 // pred_check_branch
          %2736 = sbr.rel (%p2734) target = $region188
        $region187: #{mpnn_forward.1} parent=131 // pred_region
          %2737 = dma.done [#allocation6], 32
        $region188: #{mpnn_forward.1} parent=131 // pred_fallthru
          _
      $region132: #{mpnn_forward.1} parent=5 // pred_fallthru
        _
      %p2738 = scmp.le.s32.totalorder 2, %s44
      // Predicated region
      $region189: #{mpnn_forward.1} parent=5 // pred_check
        %p2739 = pneg %p2738
      $region190: #{mpnn_forward.1} parent=5 // pred_check_branch
        %2741 = sbr.rel (%p2739) target = $region192
      $region191: #{mpnn_forward.1} parent=5 // pred_region
        %s2742 = ssub.s32 %s44, 2
      $region192: #{mpnn_forward.1} parent=5 // pred_fallthru
        _
    $region6: #{mpnn_forward.1} parent=1 // loop_footer
      %s48 = sadd.s32 1, %s44
    $region7: #{mpnn_forward.1} parent=1 // loop_footer_branch
      %43 = sbr.rel target = $region3
    $region8: #{mpnn_forward.1} parent=1 // loop_exit
      _
    %2743 = vsyncpa [#allocation5], 1
    %s2744 = scalar_lea.sflag [#allocation5], 1
    %2745 = vsyncpa %s2744, 1
    %2746 = vsyncpa [#allocation8], 1
    %s2747 = scalar_lea.sflag [#allocation8], 1
    %2748 = vsyncpa %s2747, 1
    %2749 = vsyncpa [#allocation11], 1
    %2750 = vsyncpa [#allocation14], 1
    %2751 = vsyncpa [#allocation17], 1
    %2752 = vsyncpa [#allocation6], 1
    %s2753 = scalar_lea.sflag [#allocation6], 1
    %2754 = vsyncpa %s2753, 1

</llo_original>
